<compile_context>
chip_gen: v5e
topology: v5e:2x2
jax: 0.10.0
libtpu: 0.0.40
codegen_flags: <defaults>
</compile_context>

<pallas_src>
import functools

import numpy as np
import jax
import jax.numpy as jnp
from jax import lax
from jax.experimental import pallas as pl
from jax.experimental.pallas import tpu as pltpu


# ----------------------------------------------------------------------------
# Deterministic parameter construction (quadrature, Legendre, DFT tables)
# ----------------------------------------------------------------------------
def _quadrature(nlat, grid):
    """Quadrature nodes x = cos(theta) and weights on [-1, 1], ordered by colatitude."""
    if grid == "legendre-gauss":
        x, w = np.polynomial.legendre.leggauss(nlat)
    elif grid == "equiangular":
        theta = np.linspace(0.0, np.pi, nlat)
        x = np.cos(theta)
        V = np.polynomial.legendre.legvander(x, nlat - 1).T      # (nlat, nlat)
        rhs = np.zeros(nlat)
        rhs[0] = 2.0                                             # integral of P_0 over [-1,1]
        w = np.linalg.solve(V, rhs)
    else:
        raise ValueError(f"unsupported grid: {grid}")
    theta = np.arccos(np.clip(x, -1.0, 1.0))
    order = np.argsort(theta)                                    # north -> south
    return x[order], w[order]


def _legpoly(mmax, lmax, x, csphase=True):
    """Orthonormal associated Legendre functions P̄_lm(x), shape (mmax, lmax, len(x))."""
    nmax = max(mmax, lmax)
    p = np.zeros((nmax, nmax, len(x)), dtype=np.float64)         # [m, l, k]
    p[0, 0, :] = 1.0 / np.sqrt(4.0 * np.pi)
    for l in range(1, nmax):
        p[l - 1, l] = np.sqrt(2 * l + 1) * x * p[l - 1, l - 1]
        p[l, l] = np.sqrt((2 * l + 1) * (1.0 - x) * (1.0 + x) / (2 * l)) * p[l - 1, l - 1]
    for l in range(2, nmax):
        for m in range(0, l - 1):
            a = np.sqrt((2 * l - 1) * (2 * l + 1) / ((l - m) * (l + m)))
            b = np.sqrt((2 * l + 1) * (l + m - 1) * (l - m - 1)
                        / ((2 * l - 3) * (l - m) * (l + m)))
            p[m, l] = a * x * p[m, l - 1] - b * p[m, l - 2]
    p = p[:mmax, :lmax]
    if csphase:
        for m in range(1, mmax, 2):
            p[m] *= -1.0
    return p


def _build_operators(nlat, nlon, input_grid, output_grid):
    """All deterministic tables for RealSHT (norm='backward') + InverseRealSHT."""
    mmax = nlon // 2 + 1
    lmax = nlat
    mmax_pad = ((mmax + 7) // 8) * 8          # sublane-aligned mode count (zero padded)

    x_in, w_in = _quadrature(nlat, input_grid)
    x_out, _ = _quadrature(nlat, output_grid)

    p_in = _legpoly(mmax, lmax, x_in)                            # (mmax, lmax, nlat)
    p_out = _legpoly(mmax, lmax, x_out)                          # (mmax, lmax, nlat)

    # norm='backward': forward Legendre weights get sqrt(4*pi), inverse 1/sqrt(4*pi)
    wf = np.sqrt(4.0 * np.pi) * p_in * w_in[None, None, :]       # (mmax, lmax, nlat_in)
    pinv = p_out / np.sqrt(4.0 * np.pi)                          # (mmax, lmax, nlat_out)

    # combined per-mode Legendre operator: Q[m] = Wf[m]^T @ Pinv[m]  (nlat_in, nlat_out)
    q = np.matmul(np.transpose(wf, (0, 2, 1)), pinv)             # (mmax, nlat, nlat)

    j = np.arange(nlon)
    m = np.arange(mmax)
    ang = 2.0 * np.pi * np.outer(m, j) / nlon                    # (mmax, nlon)
    # forward: 2*pi * rfft(norm="forward")  ->  fold (2*pi/nlon) into the DFT matrix
    cr = (2.0 * np.pi / nlon) * np.cos(ang)
    ci = -(2.0 * np.pi / nlon) * np.sin(ang)
    # inverse: irfft(norm="forward") * nlon with hermitian doubling factors
    c = np.full((mmax,), 2.0)
    c[0] = 1.0
    if nlon % 2 == 0:
        c[-1] = 1.0
    dr = c[:, None] * np.cos(ang)
    di = -c[:, None] * np.sin(ang)

    # pack real/imag halves into one sublane-aligned table each (zero pad rows)
    crci = np.zeros((2 * mmax_pad, nlon))
    crci[:mmax] = cr
    crci[mmax_pad:mmax_pad + mmax] = ci
    drdi = np.zeros((2 * mmax_pad, nlon))
    drdi[:mmax] = dr
    drdi[mmax_pad:mmax_pad + mmax] = di

    f32 = lambda a: jnp.asarray(a, dtype=jnp.float32)
    return {
        "crci": f32(crci),            # (2*mmax_pad, nlon)
        "drdi": f32(drdi),            # (2*mmax_pad, nlon)
        "q": f32(q),                  # (mmax, nlat_in, nlat_out)
        "wf": f32(wf),                # reference only
        "pinv": f32(pinv),            # reference only
        "mmax": mmax,
        "mmax_pad": mmax_pad,
        "lmax": lmax,
    }


# ----------------------------------------------------------------------------
# Pallas kernel: grid = (batch tile n, longitudinal mode m)   [m is sequential]
# ----------------------------------------------------------------------------
def _regrid_kernel(x_ref, crci_ref, q_ref, drdi_ref, o_ref, f_ref, g_ref,
                   *, mmax, mmax_pad, tile_n):
    m = pl.program_id(1)
    nlat_out = o_ref.shape[1]

    # ---- Stage 1 (once per batch tile): forward real DFT for ALL modes on the MXU.
    #      f_ref layout: (mmax_pad, 2*tile_n, nlat)  rows [0:tile_n] = Re, [tile_n:] = Im.
    @pl.when(m == 0)
    def _stage1():
        crci = crci_ref[...]                                     # (2*mmax_pad, nlon) resident
        for s in range(tile_n):                                  # static unroll
            xs = x_ref[s]                                        # (nlat_in, nlon)
            fs = lax.dot_general(                                # NT: contract over lon
                crci, xs, (((1,), (1,)), ((), ())),
                preferred_element_type=jnp.float32)              # (2*mmax_pad, nlat_in)
            f_ref[:, s, :] = fs[:mmax_pad]                       # Re F_m
            f_ref[:, tile_n + s, :] = fs[mmax_pad:]              # Im F_m
        if mmax_pad > mmax:                                      # zero never-written pad modes
            g_ref[mmax:, :, :] = jnp.zeros(
                (mmax_pad - mmax, 2 * tile_n, nlat_out), dtype=jnp.float32)

    # ---- Stage 2+3 (per mode m): combined Legendre analysis+synthesis, one MXU matmul.
    fm = f_ref[m]                                                # (2*tile_n, nlat_in)
    g_ref[m] = jnp.dot(fm, q_ref[0], preferred_element_type=jnp.float32)

    # ---- Stage 4 (once per batch tile): inverse real DFT for ALL modes, single output write.
    @pl.when(m == pl.num_programs(1) - 1)
    def _stage4():
        drdi = drdi_ref[...]                                     # (2*mmax_pad, nlon) resident
        for s in range(tile_n):                                  # static unroll
            gcat = jnp.concatenate(
                [g_ref[:, s, :], g_ref[:, tile_n + s, :]], axis=0)   # (2*mmax_pad, nlat_out)
            ys = lax.dot(gcat.T, drdi,
                         preferred_element_type=jnp.float32)     # (nlat_out, nlon)
            o_ref[s] = ys.astype(o_ref.dtype)


def regrid_pallas(x, ops, *, tile_n=8):
    """x: (N, nlat, nlon) float32 -> (N, nlat, nlon) float32 on the output grid."""
    crci, q, drdi = ops["crci"], ops["q"], ops["drdi"]
    mmax, mmax_pad = ops["mmax"], ops["mmax_pad"]
    N, nlat, nlon = x.shape

    tile_n = int(max(1, min(tile_n, N)))
    n_pad = (-N) % tile_n
    if n_pad:
        x = jnp.pad(x, ((0, n_pad), (0, 0), (0, 0)))
    Np = x.shape[0]

    kernel = functools.partial(_regrid_kernel, mmax=mmax, mmax_pad=mmax_pad,
                               tile_n=tile_n)

    out = pl.pallas_call(
        kernel,
        out_shape=jax.ShapeDtypeStruct((Np, nlat, nlon), jnp.float32),
        grid=(Np // tile_n, mmax),
        in_specs=[
            # x block: constant over the m sweep -> fetched once per batch tile
            pl.BlockSpec((tile_n, nlat, nlon), lambda n, m: (n, 0, 0)),
            # forward-DFT cos/sin table: fully VMEM-resident
            pl.BlockSpec((2 * mmax_pad, nlon), lambda n, m: (0, 0)),
            # combined Legendre operator: streamed one mode per grid step
            pl.BlockSpec((1, nlat, nlat), lambda n, m: (m, 0, 0)),
            # inverse-DFT cos/sin table: fully VMEM-resident
            pl.BlockSpec((2 * mmax_pad, nlon), lambda n, m: (0, 0)),
        ],
        out_specs=pl.BlockSpec((tile_n, nlat, nlon), lambda n, m: (n, 0, 0)),
        scratch_shapes=[
            pltpu.VMEM((mmax_pad, 2 * tile_n, nlat), jnp.float32),   # F (Re|Im)
            pltpu.VMEM((mmax_pad, 2 * tile_n, nlat), jnp.float32),   # G (Re|Im)
        ],
        compiler_params=pltpu.CompilerParams(
            dimension_semantics=("parallel", "arbitrary")),
    )(x, crci, q, drdi)
    return out[:N]


# ----------------------------------------------------------------------------
# Module wrapper mirroring the PyTorch Regird
# ----------------------------------------------------------------------------
class Regird:
    def __init__(self, input_grid, output_grid, sht_nlat=128, sht_nlon=256,
                 output_scaling_factor=None):
        self.input_grid = input_grid
        self.output_grid = output_grid
        self.nlat = sht_nlat
        self.nlon = sht_nlon
        self._ops = _build_operators(sht_nlat, sht_nlon, input_grid, output_grid)

    def __call__(self, x):
        # x: (B, C, nlat, nlon) — NCHW, same axis convention as the PyTorch module.
        nlat, nlon = int(x.shape[-2]), int(x.shape[-1])
        if (nlat, nlon) != (self.nlat, self.nlon):
            # same dynamic rebuild as the PyTorch forward
            self.nlat, self.nlon = nlat, nlon
            self._ops = _build_operators(nlat, nlon, self.input_grid, self.output_grid)
        lead = x.shape[:-2]
        xf = x.reshape((-1, nlat, nlon)).astype(jnp.float32)
        y = regrid_pallas(xf, self._ops)
        return y.reshape(lead + (nlat, nlon))


# ----------------------------------------------------------------------------
# Pure-JAX reference (same math, jnp.fft + einsum) for a self-consistency check
# ----------------------------------------------------------------------------
def regrid_reference(x, ops):
    nlon = x.shape[-1]
    wf, pinv = ops["wf"], ops["pinv"]
    X = 2.0 * jnp.pi * jnp.fft.rfft(x, axis=-1) / nlon            # rfft, norm='forward', *2pi
    coef_r = jnp.einsum("nkm,mlk->nlm", jnp.real(X), wf)
    coef_i = jnp.einsum("nkm,mlk->nlm", jnp.imag(X), wf)
    gr = jnp.einsum("nlm,mlk->nkm", coef_r, pinv)
    gi = jnp.einsum("nlm,mlk->nkm", coef_i, pinv)
    return jnp.fft.irfft(gr + 1j * gi, n=nlon, axis=-1) * nlon     # irfft, norm='forward'


if __name__ == "__main__":
    B, C, NLAT, NLON = 2, 4, 16, 32
    key = jax.random.PRNGKey(0)
    x = jax.random.normal(key, (B, C, NLAT, NLON), dtype=jnp.float32)

    # defaults mirror the PyTorch module; forward rebuilds transforms to match x
    mod = Regird(input_grid="equiangular", output_grid="legendre-gauss",
                 sht_nlat=128, sht_nlon=256)

    y = mod(x)
    y = jax.block_until_ready(y)
    assert y.shape == (B, C, NLAT, NLON) and y.dtype == jnp.float32

    # self-consistency check against a pure-JAX implementation of the same math
    xf = x.reshape(-1, NLAT, NLON)
    y_ref = regrid_reference(xf, mod._ops).reshape(B, C, NLAT, NLON)
    y_ref = jax.block_until_ready(y_ref)
    max_err = float(jnp.max(jnp.abs(y - y_ref)))
    assert jnp.allclose(y, y_ref, rtol=1e-3, atol=1e-3), f"max abs err {max_err}"

    print("KERNEL_OK")
</pallas_src>

<mosaic_0001>
module attributes {stable_mosaic.version = 11 : i64} {
  func.func @_regrid_kernel(%arg0: i32, %arg1: i32, %arg2: memref<8x16x32xf32, #tpu.memory_space<vmem>>, %arg3: memref<48x32xf32, #tpu.memory_space<vmem>>, %arg4: memref<1x16x16xf32, #tpu.memory_space<vmem>>, %arg5: memref<48x32xf32, #tpu.memory_space<vmem>>, %arg6: memref<8x16x32xf32, #tpu.memory_space<vmem>>, %arg7: memref<24x16x16xf32, #tpu.memory_space<vmem>>, %arg8: memref<24x16x16xf32, #tpu.memory_space<vmem>>) attributes {dimension_semantics = [#tpu.dimension_semantics<parallel>, #tpu.dimension_semantics<arbitrary>], iteration_bounds = array<i64: 1, 17>, scalar_prefetch = 0 : i64, scratch_operands = 2 : i64, tpu.core_type = #tpu.core_type<tc>, window_params = [{transform_indices = @transform_0, window_bounds = array<i64: 8, 16, 32>}, {pipeline_mode = #tpu.pipeline_mode<synchronous>, transform_indices = @transform_1, window_bounds = array<i64: 48, 32>}, {transform_indices = @transform_2, window_bounds = array<i64: 1, 16, 16>}, {pipeline_mode = #tpu.pipeline_mode<synchronous>, transform_indices = @transform_3, window_bounds = array<i64: 48, 32>}, {transform_indices = @transform_4, window_bounds = array<i64: 8, 16, 32>}]} {
    %c0_i32 = arith.constant 0 : i32
    %0 = arith.cmpi eq, %arg1, %c0_i32 : i32
    %1 = arith.extui %0 : i1 to i32
    %c0_i32_0 = arith.constant 0 : i32
    %2 = arith.cmpi ne, %1, %c0_i32_0 : i32
    scf.if %2 {
      %c0_8 = arith.constant 0 : index
      %c0_9 = arith.constant 0 : index
      %16 = vector.load %arg3[%c0_8, %c0_9] : memref<48x32xf32, #tpu.memory_space<vmem>>, vector<48x32xf32>
      %c0_10 = arith.constant 0 : index
      %c0_11 = arith.constant 0 : index
      %c0_12 = arith.constant 0 : index
      %17 = vector.load %arg2[%c0_10, %c0_11, %c0_12] : memref<8x16x32xf32, #tpu.memory_space<vmem>>, vector<1x16x32xf32>
      %18 = vector.shape_cast %17 : vector<1x16x32xf32> to vector<16x32xf32>
      %cst_13 = arith.constant dense<0.000000e+00> : vector<48x16xf32>
      %19 = tpu.matmul %16, %18, %cst_13 {dimension_numbers = #tpu.dot_dimension_numbers<[1], [1], [0], [0], [0, 0, 1, 0], [], []>} : vector<48x32xf32>, vector<16x32xf32>, vector<48x16xf32> -> vector<48x16xf32>
      %20 = vector.extract_strided_slice %19 {offsets = [0, 0], sizes = [24, 16], strides = [1, 1]} : vector<48x16xf32> to vector<24x16xf32>
      %c0_14 = arith.constant 0 : index
      %c0_15 = arith.constant 0 : index
      %c0_16 = arith.constant 0 : index
      %21 = vector.load %arg7[%c0_14, %c0_15, %c0_16] : memref<24x16x16xf32, #tpu.memory_space<vmem>>, vector<24x1x16xf32>
      %22 = vector.shape_cast %21 : vector<24x1x16xf32> to vector<24x16xf32>
      %23 = vector.shape_cast %20 : vector<24x16xf32> to vector<24x1x16xf32>
      tpu.vector_store %arg7[%c0_14, %c0_15, %c0_16], %23 {strides = array<i32>} : memref<24x16x16xf32, #tpu.memory_space<vmem>>, vector<24x1x16xf32>,
      %24 = vector.extract_strided_slice %19 {offsets = [24, 0], sizes = [24, 16], strides = [1, 1]} : vector<48x16xf32> to vector<24x16xf32>
      %c0_17 = arith.constant 0 : index
      %c8 = arith.constant 8 : index
      %c0_18 = arith.constant 0 : index
      %25 = vector.load %arg7[%c0_17, %c8, %c0_18] : memref<24x16x16xf32, #tpu.memory_space<vmem>>, vector<24x1x16xf32>
      %26 = vector.shape_cast %25 : vector<24x1x16xf32> to vector<24x16xf32>
      %27 = vector.shape_cast %24 : vector<24x16xf32> to vector<24x1x16xf32>
      tpu.vector_store %arg7[%c0_17, %c8, %c0_18], %27 {strides = array<i32>} : memref<24x16x16xf32, #tpu.memory_space<vmem>>, vector<24x1x16xf32>,
      %c1 = arith.constant 1 : index
      %c0_19 = arith.constant 0 : index
      %c0_20 = arith.constant 0 : index
      %28 = vector.load %arg2[%c1, %c0_19, %c0_20] : memref<8x16x32xf32, #tpu.memory_space<vmem>>, vector<1x16x32xf32>
      %29 = vector.shape_cast %28 : vector<1x16x32xf32> to vector<16x32xf32>
      %cst_21 = arith.constant dense<0.000000e+00> : vector<48x16xf32>
      %30 = tpu.matmul %16, %29, %cst_21 {dimension_numbers = #tpu.dot_dimension_numbers<[1], [1], [0], [0], [0, 0, 1, 0], [], []>} : vector<48x32xf32>, vector<16x32xf32>, vector<48x16xf32> -> vector<48x16xf32>
      %31 = vector.extract_strided_slice %30 {offsets = [0, 0], sizes = [24, 16], strides = [1, 1]} : vector<48x16xf32> to vector<24x16xf32>
      %c0_22 = arith.constant 0 : index
      %c1_23 = arith.constant 1 : index
      %c0_24 = arith.constant 0 : index
      %32 = vector.load %arg7[%c0_22, %c1_23, %c0_24] : memref<24x16x16xf32, #tpu.memory_space<vmem>>, vector<24x1x16xf32>
      %33 = vector.shape_cast %32 : vector<24x1x16xf32> to vector<24x16xf32>
      %34 = vector.shape_cast %31 : vector<24x16xf32> to vector<24x1x16xf32>
      tpu.vector_store %arg7[%c0_22, %c1_23, %c0_24], %34 {strides = array<i32>} : memref<24x16x16xf32, #tpu.memory_space<vmem>>, vector<24x1x16xf32>,
      %35 = vector.extract_strided_slice %30 {offsets = [24, 0], sizes = [24, 16], strides = [1, 1]} : vector<48x16xf32> to vector<24x16xf32>
      %c0_25 = arith.constant 0 : index
      %c9 = arith.constant 9 : index
      %c0_26 = arith.constant 0 : index
      %36 = vector.load %arg7[%c0_25, %c9, %c0_26] : memref<24x16x16xf32, #tpu.memory_space<vmem>>, vector<24x1x16xf32>
      %37 = vector.shape_cast %36 : vector<24x1x16xf32> to vector<24x16xf32>
      %38 = vector.shape_cast %35 : vector<24x16xf32> to vector<24x1x16xf32>
      tpu.vector_store %arg7[%c0_25, %c9, %c0_26], %38 {strides = array<i32>} : memref<24x16x16xf32, #tpu.memory_space<vmem>>, vector<24x1x16xf32>,
      %c2 = arith.constant 2 : index
      %c0_27 = arith.constant 0 : index
      %c0_28 = arith.constant 0 : index
      %39 = vector.load %arg2[%c2, %c0_27, %c0_28] : memref<8x16x32xf32, #tpu.memory_space<vmem>>, vector<1x16x32xf32>
      %40 = vector.shape_cast %39 : vector<1x16x32xf32> to vector<16x32xf32>
      %cst_29 = arith.constant dense<0.000000e+00> : vector<48x16xf32>
      %41 = tpu.matmul %16, %40, %cst_29 {dimension_numbers = #tpu.dot_dimension_numbers<[1], [1], [0], [0], [0, 0, 1, 0], [], []>} : vector<48x32xf32>, vector<16x32xf32>, vector<48x16xf32> -> vector<48x16xf32>
      %42 = vector.extract_strided_slice %41 {offsets = [0, 0], sizes = [24, 16], strides = [1, 1]} : vector<48x16xf32> to vector<24x16xf32>
      %c0_30 = arith.constant 0 : index
      %c2_31 = arith.constant 2 : index
      %c0_32 = arith.constant 0 : index
      %43 = vector.load %arg7[%c0_30, %c2_31, %c0_32] : memref<24x16x16xf32, #tpu.memory_space<vmem>>, vector<24x1x16xf32>
      %44 = vector.shape_cast %43 : vector<24x1x16xf32> to vector<24x16xf32>
      %45 = vector.shape_cast %42 : vector<24x16xf32> to vector<24x1x16xf32>
      tpu.vector_store %arg7[%c0_30, %c2_31, %c0_32], %45 {strides = array<i32>} : memref<24x16x16xf32, #tpu.memory_space<vmem>>, vector<24x1x16xf32>,
      %46 = vector.extract_strided_slice %41 {offsets = [24, 0], sizes = [24, 16], strides = [1, 1]} : vector<48x16xf32> to vector<24x16xf32>
      %c0_33 = arith.constant 0 : index
      %c10 = arith.constant 10 : index
      %c0_34 = arith.constant 0 : index
      %47 = vector.load %arg7[%c0_33, %c10, %c0_34] : memref<24x16x16xf32, #tpu.memory_space<vmem>>, vector<24x1x16xf32>
      %48 = vector.shape_cast %47 : vector<24x1x16xf32> to vector<24x16xf32>
      %49 = vector.shape_cast %46 : vector<24x16xf32> to vector<24x1x16xf32>
      tpu.vector_store %arg7[%c0_33, %c10, %c0_34], %49 {strides = array<i32>} : memref<24x16x16xf32, #tpu.memory_space<vmem>>, vector<24x1x16xf32>,
      %c3 = arith.constant 3 : index
      %c0_35 = arith.constant 0 : index
      %c0_36 = arith.constant 0 : index
      %50 = vector.load %arg2[%c3, %c0_35, %c0_36] : memref<8x16x32xf32, #tpu.memory_space<vmem>>, vector<1x16x32xf32>
      %51 = vector.shape_cast %50 : vector<1x16x32xf32> to vector<16x32xf32>
      %cst_37 = arith.constant dense<0.000000e+00> : vector<48x16xf32>
      %52 = tpu.matmul %16, %51, %cst_37 {dimension_numbers = #tpu.dot_dimension_numbers<[1], [1], [0], [0], [0, 0, 1, 0], [], []>} : vector<48x32xf32>, vector<16x32xf32>, vector<48x16xf32> -> vector<48x16xf32>
      %53 = vector.extract_strided_slice %52 {offsets = [0, 0], sizes = [24, 16], strides = [1, 1]} : vector<48x16xf32> to vector<24x16xf32>
      %c0_38 = arith.constant 0 : index
      %c3_39 = arith.constant 3 : index
      %c0_40 = arith.constant 0 : index
      %54 = vector.load %arg7[%c0_38, %c3_39, %c0_40] : memref<24x16x16xf32, #tpu.memory_space<vmem>>, vector<24x1x16xf32>
      %55 = vector.shape_cast %54 : vector<24x1x16xf32> to vector<24x16xf32>
      %56 = vector.shape_cast %53 : vector<24x16xf32> to vector<24x1x16xf32>
      tpu.vector_store %arg7[%c0_38, %c3_39, %c0_40], %56 {strides = array<i32>} : memref<24x16x16xf32, #tpu.memory_space<vmem>>, vector<24x1x16xf32>,
      %57 = vector.extract_strided_slice %52 {offsets = [24, 0], sizes = [24, 16], strides = [1, 1]} : vector<48x16xf32> to vector<24x16xf32>
      %c0_41 = arith.constant 0 : index
      %c11 = arith.constant 11 : index
      %c0_42 = arith.constant 0 : index
      %58 = vector.load %arg7[%c0_41, %c11, %c0_42] : memref<24x16x16xf32, #tpu.memory_space<vmem>>, vector<24x1x16xf32>
      %59 = vector.shape_cast %58 : vector<24x1x16xf32> to vector<24x16xf32>
      %60 = vector.shape_cast %57 : vector<24x16xf32> to vector<24x1x16xf32>
      tpu.vector_store %arg7[%c0_41, %c11, %c0_42], %60 {strides = array<i32>} : memref<24x16x16xf32, #tpu.memory_space<vmem>>, vector<24x1x16xf32>,
      %c4 = arith.constant 4 : index
      %c0_43 = arith.constant 0 : index
      %c0_44 = arith.constant 0 : index
      %61 = vector.load %arg2[%c4, %c0_43, %c0_44] : memref<8x16x32xf32, #tpu.memory_space<vmem>>, vector<1x16x32xf32>
      %62 = vector.shape_cast %61 : vector<1x16x32xf32> to vector<16x32xf32>
      %cst_45 = arith.constant dense<0.000000e+00> : vector<48x16xf32>
      %63 = tpu.matmul %16, %62, %cst_45 {dimension_numbers = #tpu.dot_dimension_numbers<[1], [1], [0], [0], [0, 0, 1, 0], [], []>} : vector<48x32xf32>, vector<16x32xf32>, vector<48x16xf32> -> vector<48x16xf32>
      %64 = vector.extract_strided_slice %63 {offsets = [0, 0], sizes = [24, 16], strides = [1, 1]} : vector<48x16xf32> to vector<24x16xf32>
      %c0_46 = arith.constant 0 : index
      %c4_47 = arith.constant 4 : index
      %c0_48 = arith.constant 0 : index
      %65 = vector.load %arg7[%c0_46, %c4_47, %c0_48] : memref<24x16x16xf32, #tpu.memory_space<vmem>>, vector<24x1x16xf32>
      %66 = vector.shape_cast %65 : vector<24x1x16xf32> to vector<24x16xf32>
      %67 = vector.shape_cast %64 : vector<24x16xf32> to vector<24x1x16xf32>
      tpu.vector_store %arg7[%c0_46, %c4_47, %c0_48], %67 {strides = array<i32>} : memref<24x16x16xf32, #tpu.memory_space<vmem>>, vector<24x1x16xf32>,
      %68 = vector.extract_strided_slice %63 {offsets = [24, 0], sizes = [24, 16], strides = [1, 1]} : vector<48x16xf32> to vector<24x16xf32>
      %c0_49 = arith.constant 0 : index
      %c12 = arith.constant 12 : index
      %c0_50 = arith.constant 0 : index
      %69 = vector.load %arg7[%c0_49, %c12, %c0_50] : memref<24x16x16xf32, #tpu.memory_space<vmem>>, vector<24x1x16xf32>
      %70 = vector.shape_cast %69 : vector<24x1x16xf32> to vector<24x16xf32>
      %71 = vector.shape_cast %68 : vector<24x16xf32> to vector<24x1x16xf32>
      tpu.vector_store %arg7[%c0_49, %c12, %c0_50], %71 {strides = array<i32>} : memref<24x16x16xf32, #tpu.memory_space<vmem>>, vector<24x1x16xf32>,
      %c5 = arith.constant 5 : index
      %c0_51 = arith.constant 0 : index
      %c0_52 = arith.constant 0 : index
      %72 = vector.load %arg2[%c5, %c0_51, %c0_52] : memref<8x16x32xf32, #tpu.memory_space<vmem>>, vector<1x16x32xf32>
      %73 = vector.shape_cast %72 : vector<1x16x32xf32> to vector<16x32xf32>
      %cst_53 = arith.constant dense<0.000000e+00> : vector<48x16xf32>
      %74 = tpu.matmul %16, %73, %cst_53 {dimension_numbers = #tpu.dot_dimension_numbers<[1], [1], [0], [0], [0, 0, 1, 0], [], []>} : vector<48x32xf32>, vector<16x32xf32>, vector<48x16xf32> -> vector<48x16xf32>
      %75 = vector.extract_strided_slice %74 {offsets = [0, 0], sizes = [24, 16], strides = [1, 1]} : vector<48x16xf32> to vector<24x16xf32>
      %c0_54 = arith.constant 0 : index
      %c5_55 = arith.constant 5 : index
      %c0_56 = arith.constant 0 : index
      %76 = vector.load %arg7[%c0_54, %c5_55, %c0_56] : memref<24x16x16xf32, #tpu.memory_space<vmem>>, vector<24x1x16xf32>
      %77 = vector.shape_cast %76 : vector<24x1x16xf32> to vector<24x16xf32>
      %78 = vector.shape_cast %75 : vector<24x16xf32> to vector<24x1x16xf32>
      tpu.vector_store %arg7[%c0_54, %c5_55, %c0_56], %78 {strides = array<i32>} : memref<24x16x16xf32, #tpu.memory_space<vmem>>, vector<24x1x16xf32>,
      %79 = vector.extract_strided_slice %74 {offsets = [24, 0], sizes = [24, 16], strides = [1, 1]} : vector<48x16xf32> to vector<24x16xf32>
      %c0_57 = arith.constant 0 : index
      %c13 = arith.constant 13 : index
      %c0_58 = arith.constant 0 : index
      %80 = vector.load %arg7[%c0_57, %c13, %c0_58] : memref<24x16x16xf32, #tpu.memory_space<vmem>>, vector<24x1x16xf32>
      %81 = vector.shape_cast %80 : vector<24x1x16xf32> to vector<24x16xf32>
      %82 = vector.shape_cast %79 : vector<24x16xf32> to vector<24x1x16xf32>
      tpu.vector_store %arg7[%c0_57, %c13, %c0_58], %82 {strides = array<i32>} : memref<24x16x16xf32, #tpu.memory_space<vmem>>, vector<24x1x16xf32>,
      %c6 = arith.constant 6 : index
      %c0_59 = arith.constant 0 : index
      %c0_60 = arith.constant 0 : index
      %83 = vector.load %arg2[%c6, %c0_59, %c0_60] : memref<8x16x32xf32, #tpu.memory_space<vmem>>, vector<1x16x32xf32>
      %84 = vector.shape_cast %83 : vector<1x16x32xf32> to vector<16x32xf32>
      %cst_61 = arith.constant dense<0.000000e+00> : vector<48x16xf32>
      %85 = tpu.matmul %16, %84, %cst_61 {dimension_numbers = #tpu.dot_dimension_numbers<[1], [1], [0], [0], [0, 0, 1, 0], [], []>} : vector<48x32xf32>, vector<16x32xf32>, vector<48x16xf32> -> vector<48x16xf32>
      %86 = vector.extract_strided_slice %85 {offsets = [0, 0], sizes = [24, 16], strides = [1, 1]} : vector<48x16xf32> to vector<24x16xf32>
      %c0_62 = arith.constant 0 : index
      %c6_63 = arith.constant 6 : index
      %c0_64 = arith.constant 0 : index
      %87 = vector.load %arg7[%c0_62, %c6_63, %c0_64] : memref<24x16x16xf32, #tpu.memory_space<vmem>>, vector<24x1x16xf32>
      %88 = vector.shape_cast %87 : vector<24x1x16xf32> to vector<24x16xf32>
      %89 = vector.shape_cast %86 : vector<24x16xf32> to vector<24x1x16xf32>
      tpu.vector_store %arg7[%c0_62, %c6_63, %c0_64], %89 {strides = array<i32>} : memref<24x16x16xf32, #tpu.memory_space<vmem>>, vector<24x1x16xf32>,
      %90 = vector.extract_strided_slice %85 {offsets = [24, 0], sizes = [24, 16], strides = [1, 1]} : vector<48x16xf32> to vector<24x16xf32>
      %c0_65 = arith.constant 0 : index
      %c14 = arith.constant 14 : index
      %c0_66 = arith.constant 0 : index
      %91 = vector.load %arg7[%c0_65, %c14, %c0_66] : memref<24x16x16xf32, #tpu.memory_space<vmem>>, vector<24x1x16xf32>
      %92 = vector.shape_cast %91 : vector<24x1x16xf32> to vector<24x16xf32>
      %93 = vector.shape_cast %90 : vector<24x16xf32> to vector<24x1x16xf32>
      tpu.vector_store %arg7[%c0_65, %c14, %c0_66], %93 {strides = array<i32>} : memref<24x16x16xf32, #tpu.memory_space<vmem>>, vector<24x1x16xf32>,
      %c7 = arith.constant 7 : index
      %c0_67 = arith.constant 0 : index
      %c0_68 = arith.constant 0 : index
      %94 = vector.load %arg2[%c7, %c0_67, %c0_68] : memref<8x16x32xf32, #tpu.memory_space<vmem>>, vector<1x16x32xf32>
      %95 = vector.shape_cast %94 : vector<1x16x32xf32> to vector<16x32xf32>
      %cst_69 = arith.constant dense<0.000000e+00> : vector<48x16xf32>
      %96 = tpu.matmul %16, %95, %cst_69 {dimension_numbers = #tpu.dot_dimension_numbers<[1], [1], [0], [0], [0, 0, 1, 0], [], []>} : vector<48x32xf32>, vector<16x32xf32>, vector<48x16xf32> -> vector<48x16xf32>
      %97 = vector.extract_strided_slice %96 {offsets = [0, 0], sizes = [24, 16], strides = [1, 1]} : vector<48x16xf32> to vector<24x16xf32>
      %c0_70 = arith.constant 0 : index
      %c7_71 = arith.constant 7 : index
      %c0_72 = arith.constant 0 : index
      %98 = vector.load %arg7[%c0_70, %c7_71, %c0_72] : memref<24x16x16xf32, #tpu.memory_space<vmem>>, vector<24x1x16xf32>
      %99 = vector.shape_cast %98 : vector<24x1x16xf32> to vector<24x16xf32>
      %100 = vector.shape_cast %97 : vector<24x16xf32> to vector<24x1x16xf32>
      tpu.vector_store %arg7[%c0_70, %c7_71, %c0_72], %100 {strides = array<i32>} : memref<24x16x16xf32, #tpu.memory_space<vmem>>, vector<24x1x16xf32>,
      %101 = vector.extract_strided_slice %96 {offsets = [24, 0], sizes = [24, 16], strides = [1, 1]} : vector<48x16xf32> to vector<24x16xf32>
      %c0_73 = arith.constant 0 : index
      %c15 = arith.constant 15 : index
      %c0_74 = arith.constant 0 : index
      %102 = vector.load %arg7[%c0_73, %c15, %c0_74] : memref<24x16x16xf32, #tpu.memory_space<vmem>>, vector<24x1x16xf32>
      %103 = vector.shape_cast %102 : vector<24x1x16xf32> to vector<24x16xf32>
      %104 = vector.shape_cast %101 : vector<24x16xf32> to vector<24x1x16xf32>
      tpu.vector_store %arg7[%c0_73, %c15, %c0_74], %104 {strides = array<i32>} : memref<24x16x16xf32, #tpu.memory_space<vmem>>, vector<24x1x16xf32>,
      %cst_75 = arith.constant 0.000000e+00 : f32
      %105 = vector.broadcast %cst_75 : f32 to vector<7x16x16xf32>
      %c17 = arith.constant 17 : index
      %c0_76 = arith.constant 0 : index
      %c0_77 = arith.constant 0 : index
      %106 = vector.load %arg8[%c17, %c0_76, %c0_77] : memref<24x16x16xf32, #tpu.memory_space<vmem>>, vector<7x16x16xf32>
      tpu.vector_store %arg8[%c17, %c0_76, %c0_77], %105 {strides = array<i32>} : memref<24x16x16xf32, #tpu.memory_space<vmem>>, vector<7x16x16xf32>,
    } else {
    }
    %3 = arith.index_cast %arg1 : i32 to index
    %c0 = arith.constant 0 : index
    %c0_1 = arith.constant 0 : index
    %4 = vector.load %arg7[%3, %c0, %c0_1] : memref<24x16x16xf32, #tpu.memory_space<vmem>>, vector<1x16x16xf32>
    %5 = vector.shape_cast %4 : vector<1x16x16xf32> to vector<16x16xf32>
    %c0_2 = arith.constant 0 : index
    %c0_3 = arith.constant 0 : index
    %c0_4 = arith.constant 0 : index
    %6 = vector.load %arg4[%c0_2, %c0_3, %c0_4] : memref<1x16x16xf32, #tpu.memory_space<vmem>>, vector<1x16x16xf32>
    %7 = vector.shape_cast %6 : vector<1x16x16xf32> to vector<16x16xf32>
    %cst = arith.constant dense<0.000000e+00> : vector<16x16xf32>
    %8 = tpu.matmul %5, %7, %cst {dimension_numbers = #tpu.dot_dimension_numbers<[1], [0], [0], [1], [0, 0, 1, 1], [], []>} : vector<16x16xf32>, vector<16x16xf32>, vector<16x16xf32> -> vector<16x16xf32>
    %9 = arith.index_cast %arg1 : i32 to index
    %c0_5 = arith.constant 0 : index
    %c0_6 = arith.constant 0 : index
    %10 = vector.load %arg8[%9, %c0_5, %c0_6] : memref<24x16x16xf32, #tpu.memory_space<vmem>>, vector<1x16x16xf32>
    %11 = vector.shape_cast %10 : vector<1x16x16xf32> to vector<16x16xf32>
    %12 = vector.shape_cast %8 : vector<16x16xf32> to vector<1x16x16xf32>
    tpu.vector_store %arg8[%9, %c0_5, %c0_6], %12 {strides = array<i32>} : memref<24x16x16xf32, #tpu.memory_space<vmem>>, vector<1x16x16xf32>,
    %c16_i32 = arith.constant 16 : i32
    %13 = arith.cmpi eq, %arg1, %c16_i32 : i32
    %14 = arith.extui %13 : i1 to i32
    %c0_i32_7 = arith.constant 0 : i32
    %15 = arith.cmpi ne, %14, %c0_i32_7 : i32
    scf.if %15 {
      %c0_8 = arith.constant 0 : index
      %c0_9 = arith.constant 0 : index
      %16 = vector.load %arg5[%c0_8, %c0_9] : memref<48x32xf32, #tpu.memory_space<vmem>>, vector<48x32xf32>
      %c0_10 = arith.constant 0 : index
      %c0_11 = arith.constant 0 : index
      %c0_12 = arith.constant 0 : index
      %17 = vector.load %arg8[%c0_10, %c0_11, %c0_12] : memref<24x16x16xf32, #tpu.memory_space<vmem>>, vector<24x1x16xf32>
      %18 = vector.shape_cast %17 : vector<24x1x16xf32> to vector<24x16xf32>
      %c0_13 = arith.constant 0 : index
      %c8 = arith.constant 8 : index
      %c0_14 = arith.constant 0 : index
      %19 = vector.load %arg8[%c0_13, %c8, %c0_14] : memref<24x16x16xf32, #tpu.memory_space<vmem>>, vector<24x1x16xf32>
      %20 = vector.shape_cast %19 : vector<24x1x16xf32> to vector<24x16xf32>
      %21 = tpu.concatenate %18, %20 in 0 : vector<24x16xf32>, vector<24x16xf32> -> vector<48x16xf32>
      %22 = tpu.transpose %21, [1, 0] : vector<48x16xf32> -> vector<16x48xf32>
      %cst_15 = arith.constant dense<0.000000e+00> : vector<16x32xf32>
      %23 = tpu.matmul %22, %16, %cst_15 {dimension_numbers = #tpu.dot_dimension_numbers<[1], [0], [0], [1], [0, 0, 1, 1], [], []>} : vector<16x48xf32>, vector<48x32xf32>, vector<16x32xf32> -> vector<16x32xf32>
      %c0_16 = arith.constant 0 : index
      %c0_17 = arith.constant 0 : index
      %c0_18 = arith.constant 0 : index
      %24 = vector.load %arg6[%c0_16, %c0_17, %c0_18] : memref<8x16x32xf32, #tpu.memory_space<vmem>>, vector<1x16x32xf32>
      %25 = vector.shape_cast %24 : vector<1x16x32xf32> to vector<16x32xf32>
      %26 = vector.shape_cast %23 : vector<16x32xf32> to vector<1x16x32xf32>
      tpu.vector_store %arg6[%c0_16, %c0_17, %c0_18], %26 {strides = array<i32>} : memref<8x16x32xf32, #tpu.memory_space<vmem>>, vector<1x16x32xf32>,
      %c0_19 = arith.constant 0 : index
      %c1 = arith.constant 1 : index
      %c0_20 = arith.constant 0 : index
      %27 = vector.load %arg8[%c0_19, %c1, %c0_20] : memref<24x16x16xf32, #tpu.memory_space<vmem>>, vector<24x1x16xf32>
      %28 = vector.shape_cast %27 : vector<24x1x16xf32> to vector<24x16xf32>
      %c0_21 = arith.constant 0 : index
      %c9 = arith.constant 9 : index
      %c0_22 = arith.constant 0 : index
      %29 = vector.load %arg8[%c0_21, %c9, %c0_22] : memref<24x16x16xf32, #tpu.memory_space<vmem>>, vector<24x1x16xf32>
      %30 = vector.shape_cast %29 : vector<24x1x16xf32> to vector<24x16xf32>
      %31 = tpu.concatenate %28, %30 in 0 : vector<24x16xf32>, vector<24x16xf32> -> vector<48x16xf32>
      %32 = tpu.transpose %31, [1, 0] : vector<48x16xf32> -> vector<16x48xf32>
      %cst_23 = arith.constant dense<0.000000e+00> : vector<16x32xf32>
      %33 = tpu.matmul %32, %16, %cst_23 {dimension_numbers = #tpu.dot_dimension_numbers<[1], [0], [0], [1], [0, 0, 1, 1], [], []>} : vector<16x48xf32>, vector<48x32xf32>, vector<16x32xf32> -> vector<16x32xf32>
      %c1_24 = arith.constant 1 : index
      %c0_25 = arith.constant 0 : index
      %c0_26 = arith.constant 0 : index
      %34 = vector.load %arg6[%c1_24, %c0_25, %c0_26] : memref<8x16x32xf32, #tpu.memory_space<vmem>>, vector<1x16x32xf32>
      %35 = vector.shape_cast %34 : vector<1x16x32xf32> to vector<16x32xf32>
      %36 = vector.shape_cast %33 : vector<16x32xf32> to vector<1x16x32xf32>
      tpu.vector_store %arg6[%c1_24, %c0_25, %c0_26], %36 {strides = array<i32>} : memref<8x16x32xf32, #tpu.memory_space<vmem>>, vector<1x16x32xf32>,
      %c0_27 = arith.constant 0 : index
      %c2 = arith.constant 2 : index
      %c0_28 = arith.constant 0 : index
      %37 = vector.load %arg8[%c0_27, %c2, %c0_28] : memref<24x16x16xf32, #tpu.memory_space<vmem>>, vector<24x1x16xf32>
      %38 = vector.shape_cast %37 : vector<24x1x16xf32> to vector<24x16xf32>
      %c0_29 = arith.constant 0 : index
      %c10 = arith.constant 10 : index
      %c0_30 = arith.constant 0 : index
      %39 = vector.load %arg8[%c0_29, %c10, %c0_30] : memref<24x16x16xf32, #tpu.memory_space<vmem>>, vector<24x1x16xf32>
      %40 = vector.shape_cast %39 : vector<24x1x16xf32> to vector<24x16xf32>
      %41 = tpu.concatenate %38, %40 in 0 : vector<24x16xf32>, vector<24x16xf32> -> vector<48x16xf32>
      %42 = tpu.transpose %41, [1, 0] : vector<48x16xf32> -> vector<16x48xf32>
      %cst_31 = arith.constant dense<0.000000e+00> : vector<16x32xf32>
      %43 = tpu.matmul %42, %16, %cst_31 {dimension_numbers = #tpu.dot_dimension_numbers<[1], [0], [0], [1], [0, 0, 1, 1], [], []>} : vector<16x48xf32>, vector<48x32xf32>, vector<16x32xf32> -> vector<16x32xf32>
      %c2_32 = arith.constant 2 : index
      %c0_33 = arith.constant 0 : index
      %c0_34 = arith.constant 0 : index
      %44 = vector.load %arg6[%c2_32, %c0_33, %c0_34] : memref<8x16x32xf32, #tpu.memory_space<vmem>>, vector<1x16x32xf32>
      %45 = vector.shape_cast %44 : vector<1x16x32xf32> to vector<16x32xf32>
      %46 = vector.shape_cast %43 : vector<16x32xf32> to vector<1x16x32xf32>
      tpu.vector_store %arg6[%c2_32, %c0_33, %c0_34], %46 {strides = array<i32>} : memref<8x16x32xf32, #tpu.memory_space<vmem>>, vector<1x16x32xf32>,
      %c0_35 = arith.constant 0 : index
      %c3 = arith.constant 3 : index
      %c0_36 = arith.constant 0 : index
      %47 = vector.load %arg8[%c0_35, %c3, %c0_36] : memref<24x16x16xf32, #tpu.memory_space<vmem>>, vector<24x1x16xf32>
      %48 = vector.shape_cast %47 : vector<24x1x16xf32> to vector<24x16xf32>
      %c0_37 = arith.constant 0 : index
      %c11 = arith.constant 11 : index
      %c0_38 = arith.constant 0 : index
      %49 = vector.load %arg8[%c0_37, %c11, %c0_38] : memref<24x16x16xf32, #tpu.memory_space<vmem>>, vector<24x1x16xf32>
      %50 = vector.shape_cast %49 : vector<24x1x16xf32> to vector<24x16xf32>
      %51 = tpu.concatenate %48, %50 in 0 : vector<24x16xf32>, vector<24x16xf32> -> vector<48x16xf32>
      %52 = tpu.transpose %51, [1, 0] : vector<48x16xf32> -> vector<16x48xf32>
      %cst_39 = arith.constant dense<0.000000e+00> : vector<16x32xf32>
      %53 = tpu.matmul %52, %16, %cst_39 {dimension_numbers = #tpu.dot_dimension_numbers<[1], [0], [0], [1], [0, 0, 1, 1], [], []>} : vector<16x48xf32>, vector<48x32xf32>, vector<16x32xf32> -> vector<16x32xf32>
      %c3_40 = arith.constant 3 : index
      %c0_41 = arith.constant 0 : index
      %c0_42 = arith.constant 0 : index
      %54 = vector.load %arg6[%c3_40, %c0_41, %c0_42] : memref<8x16x32xf32, #tpu.memory_space<vmem>>, vector<1x16x32xf32>
      %55 = vector.shape_cast %54 : vector<1x16x32xf32> to vector<16x32xf32>
      %56 = vector.shape_cast %53 : vector<16x32xf32> to vector<1x16x32xf32>
      tpu.vector_store %arg6[%c3_40, %c0_41, %c0_42], %56 {strides = array<i32>} : memref<8x16x32xf32, #tpu.memory_space<vmem>>, vector<1x16x32xf32>,
      %c0_43 = arith.constant 0 : index
      %c4 = arith.constant 4 : index
      %c0_44 = arith.constant 0 : index
      %57 = vector.load %arg8[%c0_43, %c4, %c0_44] : memref<24x16x16xf32, #tpu.memory_space<vmem>>, vector<24x1x16xf32>
      %58 = vector.shape_cast %57 : vector<24x1x16xf32> to vector<24x16xf32>
      %c0_45 = arith.constant 0 : index
      %c12 = arith.constant 12 : index
      %c0_46 = arith.constant 0 : index
      %59 = vector.load %arg8[%c0_45, %c12, %c0_46] : memref<24x16x16xf32, #tpu.memory_space<vmem>>, vector<24x1x16xf32>
      %60 = vector.shape_cast %59 : vector<24x1x16xf32> to vector<24x16xf32>
      %61 = tpu.concatenate %58, %60 in 0 : vector<24x16xf32>, vector<24x16xf32> -> vector<48x16xf32>
      %62 = tpu.transpose %61, [1, 0] : vector<48x16xf32> -> vector<16x48xf32>
      %cst_47 = arith.constant dense<0.000000e+00> : vector<16x32xf32>
      %63 = tpu.matmul %62, %16, %cst_47 {dimension_numbers = #tpu.dot_dimension_numbers<[1], [0], [0], [1], [0, 0, 1, 1], [], []>} : vector<16x48xf32>, vector<48x32xf32>, vector<16x32xf32> -> vector<16x32xf32>
      %c4_48 = arith.constant 4 : index
      %c0_49 = arith.constant 0 : index
      %c0_50 = arith.constant 0 : index
      %64 = vector.load %arg6[%c4_48, %c0_49, %c0_50] : memref<8x16x32xf32, #tpu.memory_space<vmem>>, vector<1x16x32xf32>
      %65 = vector.shape_cast %64 : vector<1x16x32xf32> to vector<16x32xf32>
      %66 = vector.shape_cast %63 : vector<16x32xf32> to vector<1x16x32xf32>
      tpu.vector_store %arg6[%c4_48, %c0_49, %c0_50], %66 {strides = array<i32>} : memref<8x16x32xf32, #tpu.memory_space<vmem>>, vector<1x16x32xf32>,
      %c0_51 = arith.constant 0 : index
      %c5 = arith.constant 5 : index
      %c0_52 = arith.constant 0 : index
      %67 = vector.load %arg8[%c0_51, %c5, %c0_52] : memref<24x16x16xf32, #tpu.memory_space<vmem>>, vector<24x1x16xf32>
      %68 = vector.shape_cast %67 : vector<24x1x16xf32> to vector<24x16xf32>
      %c0_53 = arith.constant 0 : index
      %c13 = arith.constant 13 : index
      %c0_54 = arith.constant 0 : index
      %69 = vector.load %arg8[%c0_53, %c13, %c0_54] : memref<24x16x16xf32, #tpu.memory_space<vmem>>, vector<24x1x16xf32>
      %70 = vector.shape_cast %69 : vector<24x1x16xf32> to vector<24x16xf32>
      %71 = tpu.concatenate %68, %70 in 0 : vector<24x16xf32>, vector<24x16xf32> -> vector<48x16xf32>
      %72 = tpu.transpose %71, [1, 0] : vector<48x16xf32> -> vector<16x48xf32>
      %cst_55 = arith.constant dense<0.000000e+00> : vector<16x32xf32>
      %73 = tpu.matmul %72, %16, %cst_55 {dimension_numbers = #tpu.dot_dimension_numbers<[1], [0], [0], [1], [0, 0, 1, 1], [], []>} : vector<16x48xf32>, vector<48x32xf32>, vector<16x32xf32> -> vector<16x32xf32>
      %c5_56 = arith.constant 5 : index
      %c0_57 = arith.constant 0 : index
      %c0_58 = arith.constant 0 : index
      %74 = vector.load %arg6[%c5_56, %c0_57, %c0_58] : memref<8x16x32xf32, #tpu.memory_space<vmem>>, vector<1x16x32xf32>
      %75 = vector.shape_cast %74 : vector<1x16x32xf32> to vector<16x32xf32>
      %76 = vector.shape_cast %73 : vector<16x32xf32> to vector<1x16x32xf32>
      tpu.vector_store %arg6[%c5_56, %c0_57, %c0_58], %76 {strides = array<i32>} : memref<8x16x32xf32, #tpu.memory_space<vmem>>, vector<1x16x32xf32>,
      %c0_59 = arith.constant 0 : index
      %c6 = arith.constant 6 : index
      %c0_60 = arith.constant 0 : index
      %77 = vector.load %arg8[%c0_59, %c6, %c0_60] : memref<24x16x16xf32, #tpu.memory_space<vmem>>, vector<24x1x16xf32>
      %78 = vector.shape_cast %77 : vector<24x1x16xf32> to vector<24x16xf32>
      %c0_61 = arith.constant 0 : index
      %c14 = arith.constant 14 : index
      %c0_62 = arith.constant 0 : index
      %79 = vector.load %arg8[%c0_61, %c14, %c0_62] : memref<24x16x16xf32, #tpu.memory_space<vmem>>, vector<24x1x16xf32>
      %80 = vector.shape_cast %79 : vector<24x1x16xf32> to vector<24x16xf32>
      %81 = tpu.concatenate %78, %80 in 0 : vector<24x16xf32>, vector<24x16xf32> -> vector<48x16xf32>
      %82 = tpu.transpose %81, [1, 0] : vector<48x16xf32> -> vector<16x48xf32>
      %cst_63 = arith.constant dense<0.000000e+00> : vector<16x32xf32>
      %83 = tpu.matmul %82, %16, %cst_63 {dimension_numbers = #tpu.dot_dimension_numbers<[1], [0], [0], [1], [0, 0, 1, 1], [], []>} : vector<16x48xf32>, vector<48x32xf32>, vector<16x32xf32> -> vector<16x32xf32>
      %c6_64 = arith.constant 6 : index
      %c0_65 = arith.constant 0 : index
      %c0_66 = arith.constant 0 : index
      %84 = vector.load %arg6[%c6_64, %c0_65, %c0_66] : memref<8x16x32xf32, #tpu.memory_space<vmem>>, vector<1x16x32xf32>
      %85 = vector.shape_cast %84 : vector<1x16x32xf32> to vector<16x32xf32>
      %86 = vector.shape_cast %83 : vector<16x32xf32> to vector<1x16x32xf32>
      tpu.vector_store %arg6[%c6_64, %c0_65, %c0_66], %86 {strides = array<i32>} : memref<8x16x32xf32, #tpu.memory_space<vmem>>, vector<1x16x32xf32>,
      %c0_67 = arith.constant 0 : index
      %c7 = arith.constant 7 : index
      %c0_68 = arith.constant 0 : index
      %87 = vector.load %arg8[%c0_67, %c7, %c0_68] : memref<24x16x16xf32, #tpu.memory_space<vmem>>, vector<24x1x16xf32>
      %88 = vector.shape_cast %87 : vector<24x1x16xf32> to vector<24x16xf32>
      %c0_69 = arith.constant 0 : index
      %c15 = arith.constant 15 : index
      %c0_70 = arith.constant 0 : index
      %89 = vector.load %arg8[%c0_69, %c15, %c0_70] : memref<24x16x16xf32, #tpu.memory_space<vmem>>, vector<24x1x16xf32>
      %90 = vector.shape_cast %89 : vector<24x1x16xf32> to vector<24x16xf32>
      %91 = tpu.concatenate %88, %90 in 0 : vector<24x16xf32>, vector<24x16xf32> -> vector<48x16xf32>
      %92 = tpu.transpose %91, [1, 0] : vector<48x16xf32> -> vector<16x48xf32>
      %cst_71 = arith.constant dense<0.000000e+00> : vector<16x32xf32>
      %93 = tpu.matmul %92, %16, %cst_71 {dimension_numbers = #tpu.dot_dimension_numbers<[1], [0], [0], [1], [0, 0, 1, 1], [], []>} : vector<16x48xf32>, vector<48x32xf32>, vector<16x32xf32> -> vector<16x32xf32>
      %c7_72 = arith.constant 7 : index
      %c0_73 = arith.constant 0 : index
      %c0_74 = arith.constant 0 : index
      %94 = vector.load %arg6[%c7_72, %c0_73, %c0_74] : memref<8x16x32xf32, #tpu.memory_space<vmem>>, vector<1x16x32xf32>
      %95 = vector.shape_cast %94 : vector<1x16x32xf32> to vector<16x32xf32>
      %96 = vector.shape_cast %93 : vector<16x32xf32> to vector<1x16x32xf32>
      tpu.vector_store %arg6[%c7_72, %c0_73, %c0_74], %96 {strides = array<i32>} : memref<8x16x32xf32, #tpu.memory_space<vmem>>, vector<1x16x32xf32>,
    } else {
    }
    return
  }
  func.func @transform_0(%arg0: i32, %arg1: i32) -> (i32, i32, i32) {
    %c0_i32 = arith.constant 0 : i32
    %c0_i32_0 = arith.constant 0 : i32
    %c0_i32_1 = arith.constant 0 : i32
    return %arg0, %c0_i32, %c0_i32_0 : i32, i32, i32
  }
  func.func @transform_1(%arg0: i32, %arg1: i32) -> (i32, i32) {
    %c0_i32 = arith.constant 0 : i32
    %c0_i32_0 = arith.constant 0 : i32
    %c0_i32_1 = arith.constant 0 : i32
    return %c0_i32, %c0_i32_0 : i32, i32
  }
  func.func @transform_2(%arg0: i32, %arg1: i32) -> (i32, i32, i32) {
    %c0_i32 = arith.constant 0 : i32
    %c0_i32_0 = arith.constant 0 : i32
    %c0_i32_1 = arith.constant 0 : i32
    return %arg1, %c0_i32, %c0_i32_0 : i32, i32, i32
  }
  func.func @transform_3(%arg0: i32, %arg1: i32) -> (i32, i32) {
    %c0_i32 = arith.constant 0 : i32
    %c0_i32_0 = arith.constant 0 : i32
    %c0_i32_1 = arith.constant 0 : i32
    return %c0_i32, %c0_i32_0 : i32, i32
  }
  func.func @transform_4(%arg0: i32, %arg1: i32) -> (i32, i32, i32) {
    %c0_i32 = arith.constant 0 : i32
    %c0_i32_0 = arith.constant 0 : i32
    %c0_i32_1 = arith.constant 0 : i32
    return %arg0, %c0_i32, %c0_i32_0 : i32, i32, i32
  }
}

</mosaic_0001>

<llo_original>
// kernel: tpu_custom_call.1
$region0: #{tpu_custom_call.1}
  #allocation0 [shape = 'u32[]', space=smem, size = 0x4, offset = 0x4, fixed_abs, tag = 'smem constant byte address 0x4 - core index']
  #allocation1 [shape = 'u32[72,128]{1,0:T(1,128)}', space=vmem, size = 0x9000, scoped, tag = 'internal scratch']
  #allocation2 [shape = 'f32[24,16,16]{2,1,0:T(8,128)}', space=vmem, size = 0x30000, scoped, tag = 'scratch operand']
  #allocation3 [shape = 'f32[24,16,16]{2,1,0:T(8,128)}', space=vmem, size = 0x30000, scoped, tag = 'scratch operand']
  %s0 = inlined_call_operand.vmem [shape: f32[8,16,32], index: 0, kind: input, shape index: {}]
  %s1 = inlined_call_operand.vmem [shape: f32[48,32], index: 1, kind: input, shape index: {}]
  %s2 = inlined_call_operand.vmem [shape: f32[17,16,16], index: 2, kind: input, shape index: {}]
  %s3 = inlined_call_operand.vmem [shape: f32[48,32], index: 3, kind: input, shape index: {}]
  %s4 = inlined_call_operand.hbm [shape: f32[8,16,32], index: 4, kind: output, shape index: {}]
  %s5 = sld [smem:[#allocation0]]
  $region57: #{tpu_custom_call.1} parent=0
    _
  %s7 = ssub.s32 1, %s5
  %s8 = scalar_select 0, %s7, %s5
  $region1: #{tpu_custom_call.1} parent=0
    #allocation4 [shape = 'u8[65536]{0}', space=vmem, size = 0x10000, scoped, tag = 'output window, operand 0, single buffered']
    #allocation5 [shape = 's32[2]{0}', space=sflag, size = 0x8, scoped, tag = 'scoped memory for tpu_custom_call.1']
    %9 = vsyncpa [#allocation5], 0
    loop: start=0, step=1, limit=19
    $region2: #{tpu_custom_call.1} parent=1 // loop_pre_header
      _
    $region3: #{tpu_custom_call.1} parent=1 // loop_header
      %s11 = sphi 0, %s15
      %p12 = scmp.ge.s32.totalorder %s11, 19
      %s18 = sphi 0, %s30
      %s19 = sphi 0, %s26
      %s20 = sphi 0, %s18
      %s21 = sphi 0, %s19
      %s22 = sphi 0, %s20
      %s23 = sphi 0, %s21
      %s33 = sphi 0, %s35
      %s36 = sphi 0, %s33
      %s37 = sphi 0, %s36
      %s53 = sphi 0, %s37
      %s57 = sphi 0, %s57
      %s59 = sphi 0, %s57
      %s60 = sphi 0, %s59
      %s74 = sphi 0, %s60
      %s80 = sphi 0, %s82
      %s83 = sphi 0, %s80
      %s84 = sphi 0, %s83
      %s100 = sphi 0, %s84
      %s104 = sphi 0, %s104
      %s106 = sphi 0, %s104
      %s107 = sphi 0, %s106
      %s121 = sphi 0, %s107
      %s127 = sphi 0, %s129
      %s130 = sphi 0, %s127
      %s131 = sphi 0, %s130
      %s147 = sphi 0, %s131
    $region4: #{tpu_custom_call.1} parent=1 // loop_header_branch
      %14 = sbr.rel (%p12) target = $region8
    $region5: #{tpu_custom_call.1} parent=1 // loop_body
      %s16 = ssub.s32 %s11, 1
      %s17 = ssub.s32 %s11, 2
      %s24 = sadd.s32 1, %s19
      %p25 = scmp.ge.s32.totalorder %s24, 17
      %s26 = scalar_select %p25, 0, %s24
      %s27 = sadd.s32 1, %s18
      %s28 = scalar_select %p25, %s27, %s18
      %p29 = scmp.ge.s32.totalorder %s28, 1
      %s30 = scalar_select %p29, 0, %s28
      %s31 = ssub.s32 %s18, %s30
      %p32 = scmp.eq.s32.totalorder %s31, 0
      %s34 = sadd.s32 %s33, 1
      %s35 = scalar_select %p32, %s33, %s34
      %p38 = pneg %p32
      %p39 = scmp.eq.s32.totalorder %s11, 16
      %p40 = por %p38, %p39
      %p41 = scmp.ne.s32.totalorder %s33, %s36
      %p42 = scmp.eq.s32.totalorder %s11, 0
      %p43 = por %p41, %p42
      %p44 = scmp.ne.s32.totalorder %s33, %s36
      %p45 = scmp.eq.s32.totalorder %s16, 16
      %p46 = por %p44, %p45
      %p47 = scmp.ne.s32.totalorder %s36, %s37
      %p48 = scmp.eq.s32.totalorder %s16, 0
      %p49 = por %p47, %p48
      %p50 = scmp.ne.s32.totalorder %s36, %s37
      %p51 = scmp.eq.s32.totalorder %s17, 16
      %p52 = por %p50, %p51
      %p54 = scmp.ne.s32.totalorder %s37, %s53
      %p55 = scmp.eq.s32.totalorder %s17, 0
      %p56 = por %p54, %p55
      %s58 = sadd.s32 %s57, 1
      %p61 = scmp.eq.s32.totalorder %s11, 16
      %p62 = scmp.ne.s32.totalorder %s57, %s59
      %p63 = scmp.eq.s32.totalorder %s11, 0
      %p64 = por %p62, %p63
      %p65 = scmp.ne.s32.totalorder %s57, %s59
      %p66 = scmp.eq.s32.totalorder %s16, 16
      %p67 = por %p65, %p66
      %p68 = scmp.ne.s32.totalorder %s59, %s60
      %p69 = scmp.eq.s32.totalorder %s16, 0
      %p70 = por %p68, %p69
      %p71 = scmp.ne.s32.totalorder %s59, %s60
      %p72 = scmp.eq.s32.totalorder %s17, 16
      %p73 = por %p71, %p72
      %p75 = scmp.ne.s32.totalorder %s60, %s74
      %p76 = scmp.eq.s32.totalorder %s17, 0
      %p77 = por %p75, %p76
      %s78 = ssub.s32 %s19, %s26
      %p79 = scmp.eq.s32.totalorder %s78, 0
      %s81 = sadd.s32 %s80, 1
      %s82 = scalar_select %p79, %s80, %s81
      %p85 = pneg %p79
      %p86 = scmp.eq.s32.totalorder %s11, 16
      %p87 = por %p85, %p86
      %p88 = scmp.ne.s32.totalorder %s80, %s83
      %p89 = scmp.eq.s32.totalorder %s11, 0
      %p90 = por %p88, %p89
      %p91 = scmp.ne.s32.totalorder %s80, %s83
      %p92 = scmp.eq.s32.totalorder %s16, 16
      %p93 = por %p91, %p92
      %p94 = scmp.ne.s32.totalorder %s83, %s84
      %p95 = scmp.eq.s32.totalorder %s16, 0
      %p96 = por %p94, %p95
      %p97 = scmp.ne.s32.totalorder %s83, %s84
      %p98 = scmp.eq.s32.totalorder %s17, 16
      %p99 = por %p97, %p98
      %p101 = scmp.ne.s32.totalorder %s84, %s100
      %p102 = scmp.eq.s32.totalorder %s17, 0
      %p103 = por %p101, %p102
      %s105 = sadd.s32 %s104, 1
      %p108 = scmp.eq.s32.totalorder %s11, 16
      %p109 = scmp.ne.s32.totalorder %s104, %s106
      %p110 = scmp.eq.s32.totalorder %s11, 0
      %p111 = por %p109, %p110
      %p112 = scmp.ne.s32.totalorder %s104, %s106
      %p113 = scmp.eq.s32.totalorder %s16, 16
      %p114 = por %p112, %p113
      %p115 = scmp.ne.s32.totalorder %s106, %s107
      %p116 = scmp.eq.s32.totalorder %s16, 0
      %p117 = por %p115, %p116
      %p118 = scmp.ne.s32.totalorder %s106, %s107
      %p119 = scmp.eq.s32.totalorder %s17, 16
      %p120 = por %p118, %p119
      %p122 = scmp.ne.s32.totalorder %s107, %s121
      %p123 = scmp.eq.s32.totalorder %s17, 0
      %p124 = por %p122, %p123
      %s125 = ssub.s32 %s18, %s30
      %p126 = scmp.eq.s32.totalorder %s125, 0
      %s128 = sadd.s32 %s127, 1
      %s129 = scalar_select %p126, %s127, %s128
      %p132 = pneg %p126
      %p133 = scmp.eq.s32.totalorder %s11, 16
      %p134 = por %p132, %p133
      %p135 = scmp.ne.s32.totalorder %s127, %s130
      %p136 = scmp.eq.s32.totalorder %s11, 0
      %p137 = por %p135, %p136
      %p138 = scmp.ne.s32.totalorder %s127, %s130
      %p139 = scmp.eq.s32.totalorder %s16, 16
      %p140 = por %p138, %p139
      %p141 = scmp.ne.s32.totalorder %s130, %s131
      %p142 = scmp.eq.s32.totalorder %s16, 0
      %p143 = por %p141, %p142
      %p144 = scmp.ne.s32.totalorder %s130, %s131
      %p145 = scmp.eq.s32.totalorder %s17, 16
      %p146 = por %p144, %p145
      %p148 = scmp.ne.s32.totalorder %s131, %s147
      %p149 = scmp.eq.s32.totalorder %s17, 0
      %p150 = por %p148, %p149
      %p151 = scmp.le.s32.totalorder 1, %s11
      %p152 = scmp.lt.s32.totalorder %s11, 18
      %p153 = pnand %p151, %p152
      %p154 = pneg %p153
      // Predicated region
      $region9: #{tpu_custom_call.1} parent=5 // pred_check
        _
      $region10: #{tpu_custom_call.1} parent=5 // pred_check_branch
        %156 = sbr.rel (%p153) target = $region12
      $region11: #{tpu_custom_call.1} parent=5 // pred_region
        %s157 = ssub.s32 %s11, 1
        // Predicated region
        $region13: #{tpu_custom_call.1} parent=11 // pred_check
          %p158 = pneg %p49
        $region14: #{tpu_custom_call.1} parent=11 // pred_check_branch
          %160 = sbr.rel (%p158) target = $region16
        $region15: #{tpu_custom_call.1} parent=11 // pred_region
          %s161 = smul.u32 8, %s20
          %p162 = scmp.lt.s32.totalorder %s161, 7
          %s163 = scalar_select %p162, %s161, 7
          %s164 = smul.addr %s163, 2
          %s165 = smul.addr %s164, 8
          %s166 = scalar_lea.vmem %s0, %s165
          %s167 = smul.u32 8, %s20
        $region16: #{tpu_custom_call.1} parent=11 // pred_fallthru
          _
        // Predicated region
        $region17: #{tpu_custom_call.1} parent=11 // pred_check
          %p168 = pneg %p70
        $region18: #{tpu_custom_call.1} parent=11 // pred_check_branch
          %170 = sbr.rel (%p168) target = $region20
        $region19: #{tpu_custom_call.1} parent=11 // pred_region
          _
        $region20: #{tpu_custom_call.1} parent=11 // pred_fallthru
          _
        // Predicated region
        $region21: #{tpu_custom_call.1} parent=11 // pred_check
          %p171 = pneg %p117
        $region22: #{tpu_custom_call.1} parent=11 // pred_check_branch
          %173 = sbr.rel (%p171) target = $region24
        $region23: #{tpu_custom_call.1} parent=11 // pred_region
          _
        $region24: #{tpu_custom_call.1} parent=11 // pred_fallthru
          _
      $region12: #{tpu_custom_call.1} parent=5 // pred_fallthru
        _
      %p174 = scmp.lt.s32.totalorder %s11, 17
      // Predicated region
      $region25: #{tpu_custom_call.1} parent=5 // pred_check
        %p175 = pneg %p174
      $region26: #{tpu_custom_call.1} parent=5 // pred_check_branch
        %177 = sbr.rel (%p175) target = $region28
      $region27: #{tpu_custom_call.1} parent=5 // pred_region
        // Predicated region
        $region29: #{tpu_custom_call.1} parent=27 // pred_check
          %p178 = pneg %p90
        $region30: #{tpu_custom_call.1} parent=27 // pred_check_branch
          %180 = sbr.rel (%p178) target = $region32
        $region31: #{tpu_custom_call.1} parent=27 // pred_region
          %p181 = scmp.lt.s32.totalorder %s19, 16
          %s182 = scalar_select %p181, %s19, 16
          %s183 = smul.addr %s182, 2
          %s184 = smul.addr %s183, 8
          %s185 = scalar_lea.vmem %s2, %s184
        $region32: #{tpu_custom_call.1} parent=27 // pred_fallthru
          _
      $region28: #{tpu_custom_call.1} parent=5 // pred_fallthru
        _
      %p186 = scmp.le.s32.totalorder 1, %s11
      %p187 = scmp.lt.s32.totalorder %s11, 18
      %p188 = pnand %p186, %p187
      %p189 = pneg %p188
      // Predicated region
      $region33: #{tpu_custom_call.1} parent=5 // pred_check
        _
      $region34: #{tpu_custom_call.1} parent=5 // pred_check_branch
        %191 = sbr.rel (%p188) target = $region36
      $region35: #{tpu_custom_call.1} parent=5 // pred_region
        %s192 = ssub.s32 %s11, 1
        %s193 = smul.u32 8, %s20
        %p194 = scmp.lt.s32.totalorder %s193, 7
        %s195 = scalar_select %p194, %s193, 7
        %s196 = smul.addr %s195, 2
        %s197 = smul.addr %s196, 8
        %s198 = scalar_lea.vmem %s0, %s197
        %p199 = pneg %p49
        %p200 = pneg %p46
        %p201 = pneg %p70
        %p202 = pneg %p67
        %p203 = scmp.lt.s32.totalorder %s21, 16
        %s204 = scalar_select %p203, %s21, 16
        %s205 = smul.addr %s204, 2
        %s206 = smul.addr %s205, 8
        %s207 = scalar_lea.vmem %s2, %s206
        %p208 = pneg %p96
        %p209 = pneg %p93
        %p210 = pneg %p117
        %p211 = pneg %p114
        %p212 = pneg %p143
        %p213 = pneg %p140
        %s214 = smul.u32 8, %s20
        %p215 = scmp.lt.s32.totalorder %s214, 7
        %s216 = scalar_select %p215, %s214, 7
        %s217 = smul.addr %s216, 2
        %s218 = smul.addr %s217, 8
        %s219 = scalar_lea.vmem %s0, %s218
        %s220 = smul.u32 8, %s20
        %p221 = scmp.lt.s32.totalorder %s21, 16
        %s222 = scalar_select %p221, %s21, 16
        %s223 = smul.addr %s222, 2
        %s224 = smul.addr %s223, 8
        %s225 = scalar_lea.vmem %s2, %s224
        %s226 = smul.u32 8, %s20
        %p227 = scmp.eq.s32.totalorder %s21, 0
        // Predicated region
        $region37: #{tpu_custom_call.1} parent=35 // pred_check
          %p228 = pneg %p227
        $region38: #{tpu_custom_call.1} parent=35 // pred_check_branch
          %230 = sbr.rel (%p228) target = $region40
        $region39: #{tpu_custom_call.1} parent=35 // pred_region
          %v231 = vld [vmem:[%s1] sm:$0xff]
          %v232 = vld [vmem:[%s1 + $0x8] sm:$0xff]
          %v233 = vld [vmem:[%s1 + $0x10] sm:$0xff]
          %v234 = vld [vmem:[%s1 + $0x18] sm:$0xff]
          %v235 = vld [vmem:[%s1 + $0x20] sm:$0xff]
          %v236 = vld [vmem:[%s1 + $0x28] sm:$0xff]
          %v237 = vld [vmem:[%s219] sm:$0xff]
          %v238 = vld [vmem:[%s219 + $0x8] sm:$0xff]
          %vm239 = vcmask 261120
          %v241 = vsel %vm239, %v231, 0
          %v244 = vsel %vm239, %v232, 0
          %v247 = vsel %vm239, %v233, 0
          %v250 = vsel %vm239, %v234, 0
          %v253 = vsel %vm239, %v235, 0
          %v256 = vsel %vm239, %v236, 0
          %v259 = vsel %vm239, %v237, 0
          %v262 = vsel %vm239, %v238, 0
          %264 = vmatpush.xpose.msra.mxu0 0.0
          %265 = vmatpush.xpose.msra.mxu0 0.0
          %266 = vmatpush.xpose.msra.mxu0 0.0
          %267 = vmatpush.xpose.msra.mxu0 0.0
          %268 = vmatpush.xpose.msra.mxu0 0.0
          %269 = vmatpush.xpose.msra.mxu0 0.0
          %270 = vmatpush.xpose.msra.mxu0 0.0
          %271 = vmatpush.xpose.msra.mxu0 0.0
          %272 = vmatpush.xpose.msra.mxu0 0.0
          %273 = vmatpush.xpose.msra.mxu0 0.0
          %274 = vmatpush.xpose.msra.mxu0 0.0
          %275 = vmatpush.xpose.msra.mxu0 0.0
          %276 = vmatpush.xpose.msra.mxu0 0.0
          %277 = vmatpush.xpose.msra.mxu0 0.0
          %278 = vmatpush.xpose.msra.mxu0 %v262
          %279 = vmatpush.xpose.msra.mxu0 %v259
          %280 = vmatmul.f32.gmra.mxu0 %v241
          %v281 = vpop.f32.mrf.mxu0
          %v282 = vadd.f32 0.0, %v281
          %283 = vmatmul.f32.gmra.mxu0 %v244
          %v284 = vpop.f32.mrf.mxu0
          %v285 = vadd.f32 0.0, %v284
          %286 = vmatmul.f32.gmra.mxu0 %v247
          %v287 = vpop.f32.mrf.mxu0
          %v288 = vadd.f32 0.0, %v287
          %289 = vmatmul.f32.gmra.mxu0 %v250
          %v290 = vpop.f32.mrf.mxu0
          %v291 = vadd.f32 0.0, %v290
          %292 = vmatmul.f32.gmra.mxu0 %v253
          %v293 = vpop.f32.mrf.mxu0
          %v294 = vadd.f32 0.0, %v293
          %295 = vmatmul.f32.gmra.mxu0 %v256
          %v296 = vpop.f32.mrf.mxu0
          %v297 = vadd.f32 0.0, %v296
          %298 = vdwg.mxu0
          %v302 = vrot.slane %v282, 1
          %v303 = vrot.slane %v282, 2
          %v304 = vrot.slane %v282, 3
          %v305 = vrot.slane %v282, 4
          %v306 = vrot.slane %v282, 5
          %v307 = vrot.slane %v282, 6
          %v308 = vrot.slane %v282, 7
          %v309 = vrot.slane %v285, 1
          %v310 = vrot.slane %v285, 2
          %v311 = vrot.slane %v285, 3
          %v312 = vrot.slane %v285, 4
          %v313 = vrot.slane %v285, 5
          %v314 = vrot.slane %v285, 6
          %v315 = vrot.slane %v285, 7
          %v316 = vrot.slane %v288, 1
          %v317 = vrot.slane %v288, 2
          %v318 = vrot.slane %v288, 3
          %v319 = vrot.slane %v288, 4
          %v320 = vrot.slane %v288, 5
          %v321 = vrot.slane %v288, 6
          %v322 = vrot.slane %v288, 7
          %vm344 = vcmask 122880
          %345 = vst.msk [vmem:[#allocation2] sm:$0x1] %vm344, %v282
          %346 = vst.msk [vmem:[#allocation2 + $0x10] sm:$0x1] %vm344, %v302
          %347 = vst.msk [vmem:[#allocation2 + $0x20] sm:$0x1] %vm344, %v303
          %348 = vst.msk [vmem:[#allocation2 + $0x30] sm:$0x1] %vm344, %v304
          %349 = vst.msk [vmem:[#allocation2 + $0x40] sm:$0x1] %vm344, %v305
          %350 = vst.msk [vmem:[#allocation2 + $0x50] sm:$0x1] %vm344, %v306
          %351 = vst.msk [vmem:[#allocation2 + $0x60] sm:$0x1] %vm344, %v307
          %352 = vst.msk [vmem:[#allocation2 + $0x70] sm:$0x1] %vm344, %v308
          %353 = vst.msk [vmem:[#allocation2 + $0x80] sm:$0x1] %vm344, %v285
          %354 = vst.msk [vmem:[#allocation2 + $0x90] sm:$0x1] %vm344, %v309
          %355 = vst.msk [vmem:[#allocation2 + $0xa0] sm:$0x1] %vm344, %v310
          %356 = vst.msk [vmem:[#allocation2 + $0xb0] sm:$0x1] %vm344, %v311
          %357 = vst.msk [vmem:[#allocation2 + $0xc0] sm:$0x1] %vm344, %v312
          %358 = vst.msk [vmem:[#allocation2 + $0xd0] sm:$0x1] %vm344, %v313
          %359 = vst.msk [vmem:[#allocation2 + $0xe0] sm:$0x1] %vm344, %v314
          %360 = vst.msk [vmem:[#allocation2 + $0xf0] sm:$0x1] %vm344, %v315
          %361 = vst.msk [vmem:[#allocation2 + $0x100] sm:$0x1] %vm344, %v288
          %362 = vst.msk [vmem:[#allocation2 + $0x110] sm:$0x1] %vm344, %v316
          %363 = vst.msk [vmem:[#allocation2 + $0x120] sm:$0x1] %vm344, %v317
          %364 = vst.msk [vmem:[#allocation2 + $0x130] sm:$0x1] %vm344, %v318
          %365 = vst.msk [vmem:[#allocation2 + $0x140] sm:$0x1] %vm344, %v319
          %366 = vst.msk [vmem:[#allocation2 + $0x150] sm:$0x1] %vm344, %v320
          %367 = vst.msk [vmem:[#allocation2 + $0x160] sm:$0x1] %vm344, %v321
          %368 = vst.msk [vmem:[#allocation2 + $0x170] sm:$0x1] %vm344, %v322
          %v372 = vrot.slane %v291, 1
          %v373 = vrot.slane %v291, 2
          %v374 = vrot.slane %v291, 3
          %v375 = vrot.slane %v291, 4
          %v376 = vrot.slane %v291, 5
          %v377 = vrot.slane %v291, 6
          %v378 = vrot.slane %v291, 7
          %v379 = vrot.slane %v294, 1
          %v380 = vrot.slane %v294, 2
          %v381 = vrot.slane %v294, 3
          %v382 = vrot.slane %v294, 4
          %v383 = vrot.slane %v294, 5
          %v384 = vrot.slane %v294, 6
          %v385 = vrot.slane %v294, 7
          %v386 = vrot.slane %v297, 1
          %v387 = vrot.slane %v297, 2
          %v388 = vrot.slane %v297, 3
          %v389 = vrot.slane %v297, 4
          %v390 = vrot.slane %v297, 5
          %v391 = vrot.slane %v297, 6
          %v392 = vrot.slane %v297, 7
          %414 = vst.msk [vmem:[#allocation2 + $0x8] sm:$0x1] %vm344, %v291
          %415 = vst.msk [vmem:[#allocation2 + $0x18] sm:$0x1] %vm344, %v372
          %416 = vst.msk [vmem:[#allocation2 + $0x28] sm:$0x1] %vm344, %v373
          %417 = vst.msk [vmem:[#allocation2 + $0x38] sm:$0x1] %vm344, %v374
          %418 = vst.msk [vmem:[#allocation2 + $0x48] sm:$0x1] %vm344, %v375
          %419 = vst.msk [vmem:[#allocation2 + $0x58] sm:$0x1] %vm344, %v376
          %420 = vst.msk [vmem:[#allocation2 + $0x68] sm:$0x1] %vm344, %v377
          %421 = vst.msk [vmem:[#allocation2 + $0x78] sm:$0x1] %vm344, %v378
          %422 = vst.msk [vmem:[#allocation2 + $0x88] sm:$0x1] %vm344, %v294
          %423 = vst.msk [vmem:[#allocation2 + $0x98] sm:$0x1] %vm344, %v379
          %424 = vst.msk [vmem:[#allocation2 + $0xa8] sm:$0x1] %vm344, %v380
          %425 = vst.msk [vmem:[#allocation2 + $0xb8] sm:$0x1] %vm344, %v381
          %426 = vst.msk [vmem:[#allocation2 + $0xc8] sm:$0x1] %vm344, %v382
          %427 = vst.msk [vmem:[#allocation2 + $0xd8] sm:$0x1] %vm344, %v383
          %428 = vst.msk [vmem:[#allocation2 + $0xe8] sm:$0x1] %vm344, %v384
          %429 = vst.msk [vmem:[#allocation2 + $0xf8] sm:$0x1] %vm344, %v385
          %430 = vst.msk [vmem:[#allocation2 + $0x108] sm:$0x1] %vm344, %v297
          %431 = vst.msk [vmem:[#allocation2 + $0x118] sm:$0x1] %vm344, %v386
          %432 = vst.msk [vmem:[#allocation2 + $0x128] sm:$0x1] %vm344, %v387
          %433 = vst.msk [vmem:[#allocation2 + $0x138] sm:$0x1] %vm344, %v388
          %434 = vst.msk [vmem:[#allocation2 + $0x148] sm:$0x1] %vm344, %v389
          %435 = vst.msk [vmem:[#allocation2 + $0x158] sm:$0x1] %vm344, %v390
          %436 = vst.msk [vmem:[#allocation2 + $0x168] sm:$0x1] %vm344, %v391
          %437 = vst.msk [vmem:[#allocation2 + $0x178] sm:$0x1] %vm344, %v392
          %s438 = scalar_lea.vmem %s219, 16
          %v439 = vld [vmem:[%s438] sm:$0xff]
          %v440 = vld [vmem:[%s438 + $0x8] sm:$0xff]
          %v442 = vsel %vm239, %v439, 0
          %v445 = vsel %vm239, %v440, 0
          %447 = vmatpush.xpose.msra.mxu0 0.0
          %448 = vmatpush.xpose.msra.mxu0 0.0
          %449 = vmatpush.xpose.msra.mxu0 0.0
          %450 = vmatpush.xpose.msra.mxu0 0.0
          %451 = vmatpush.xpose.msra.mxu0 0.0
          %452 = vmatpush.xpose.msra.mxu0 0.0
          %453 = vmatpush.xpose.msra.mxu0 0.0
          %454 = vmatpush.xpose.msra.mxu0 0.0
          %455 = vmatpush.xpose.msra.mxu0 0.0
          %456 = vmatpush.xpose.msra.mxu0 0.0
          %457 = vmatpush.xpose.msra.mxu0 0.0
          %458 = vmatpush.xpose.msra.mxu0 0.0
          %459 = vmatpush.xpose.msra.mxu0 0.0
          %460 = vmatpush.xpose.msra.mxu0 0.0
          %461 = vmatpush.xpose.msra.mxu0 %v445
          %462 = vmatpush.xpose.msra.mxu0 %v442
          %463 = vmatmul.f32.gmra.mxu0 %v241
          %v464 = vpop.f32.mrf.mxu0
          %v465 = vadd.f32 0.0, %v464
          %466 = vmatmul.f32.gmra.mxu0 %v244
          %v467 = vpop.f32.mrf.mxu0
          %v468 = vadd.f32 0.0, %v467
          %469 = vmatmul.f32.gmra.mxu0 %v247
          %v470 = vpop.f32.mrf.mxu0
          %v471 = vadd.f32 0.0, %v470
          %472 = vmatmul.f32.gmra.mxu0 %v250
          %v473 = vpop.f32.mrf.mxu0
          %v474 = vadd.f32 0.0, %v473
          %475 = vmatmul.f32.gmra.mxu0 %v253
          %v476 = vpop.f32.mrf.mxu0
          %v477 = vadd.f32 0.0, %v476
          %478 = vmatmul.f32.gmra.mxu0 %v256
          %v479 = vpop.f32.mrf.mxu0
          %v480 = vadd.f32 0.0, %v479
          %481 = vdwg.mxu0
          %v485 = vrot.slane %v465, 1
          %v486 = vrot.slane %v465, 2
          %v487 = vrot.slane %v465, 3
          %v488 = vrot.slane %v465, 4
          %v489 = vrot.slane %v465, 5
          %v490 = vrot.slane %v465, 6
          %v491 = vrot.slane %v465, 7
          %v492 = vrot.slane %v468, 1
          %v493 = vrot.slane %v468, 2
          %v494 = vrot.slane %v468, 3
          %v495 = vrot.slane %v468, 4
          %v496 = vrot.slane %v468, 5
          %v497 = vrot.slane %v468, 6
          %v498 = vrot.slane %v468, 7
          %v499 = vrot.slane %v471, 1
          %v500 = vrot.slane %v471, 2
          %v501 = vrot.slane %v471, 3
          %v502 = vrot.slane %v471, 4
          %v503 = vrot.slane %v471, 5
          %v504 = vrot.slane %v471, 6
          %v505 = vrot.slane %v471, 7
          %527 = vst.msk [vmem:[#allocation2 + $0x1] sm:$0x1] %vm344, %v465
          %528 = vst.msk [vmem:[#allocation2 + $0x11] sm:$0x1] %vm344, %v485
          %529 = vst.msk [vmem:[#allocation2 + $0x21] sm:$0x1] %vm344, %v486
          %530 = vst.msk [vmem:[#allocation2 + $0x31] sm:$0x1] %vm344, %v487
          %531 = vst.msk [vmem:[#allocation2 + $0x41] sm:$0x1] %vm344, %v488
          %532 = vst.msk [vmem:[#allocation2 + $0x51] sm:$0x1] %vm344, %v489
          %533 = vst.msk [vmem:[#allocation2 + $0x61] sm:$0x1] %vm344, %v490
          %534 = vst.msk [vmem:[#allocation2 + $0x71] sm:$0x1] %vm344, %v491
          %535 = vst.msk [vmem:[#allocation2 + $0x81] sm:$0x1] %vm344, %v468
          %536 = vst.msk [vmem:[#allocation2 + $0x91] sm:$0x1] %vm344, %v492
          %537 = vst.msk [vmem:[#allocation2 + $0xa1] sm:$0x1] %vm344, %v493
          %538 = vst.msk [vmem:[#allocation2 + $0xb1] sm:$0x1] %vm344, %v494
          %539 = vst.msk [vmem:[#allocation2 + $0xc1] sm:$0x1] %vm344, %v495
          %540 = vst.msk [vmem:[#allocation2 + $0xd1] sm:$0x1] %vm344, %v496
          %541 = vst.msk [vmem:[#allocation2 + $0xe1] sm:$0x1] %vm344, %v497
          %542 = vst.msk [vmem:[#allocation2 + $0xf1] sm:$0x1] %vm344, %v498
          %543 = vst.msk [vmem:[#allocation2 + $0x101] sm:$0x1] %vm344, %v471
          %544 = vst.msk [vmem:[#allocation2 + $0x111] sm:$0x1] %vm344, %v499
          %545 = vst.msk [vmem:[#allocation2 + $0x121] sm:$0x1] %vm344, %v500
          %546 = vst.msk [vmem:[#allocation2 + $0x131] sm:$0x1] %vm344, %v501
          %547 = vst.msk [vmem:[#allocation2 + $0x141] sm:$0x1] %vm344, %v502
          %548 = vst.msk [vmem:[#allocation2 + $0x151] sm:$0x1] %vm344, %v503
          %549 = vst.msk [vmem:[#allocation2 + $0x161] sm:$0x1] %vm344, %v504
          %550 = vst.msk [vmem:[#allocation2 + $0x171] sm:$0x1] %vm344, %v505
          %v554 = vrot.slane %v474, 1
          %v555 = vrot.slane %v474, 2
          %v556 = vrot.slane %v474, 3
          %v557 = vrot.slane %v474, 4
          %v558 = vrot.slane %v474, 5
          %v559 = vrot.slane %v474, 6
          %v560 = vrot.slane %v474, 7
          %v561 = vrot.slane %v477, 1
          %v562 = vrot.slane %v477, 2
          %v563 = vrot.slane %v477, 3
          %v564 = vrot.slane %v477, 4
          %v565 = vrot.slane %v477, 5
          %v566 = vrot.slane %v477, 6
          %v567 = vrot.slane %v477, 7
          %v568 = vrot.slane %v480, 1
          %v569 = vrot.slane %v480, 2
          %v570 = vrot.slane %v480, 3
          %v571 = vrot.slane %v480, 4
          %v572 = vrot.slane %v480, 5
          %v573 = vrot.slane %v480, 6
          %v574 = vrot.slane %v480, 7
          %596 = vst.msk [vmem:[#allocation2 + $0x9] sm:$0x1] %vm344, %v474
          %597 = vst.msk [vmem:[#allocation2 + $0x19] sm:$0x1] %vm344, %v554
          %598 = vst.msk [vmem:[#allocation2 + $0x29] sm:$0x1] %vm344, %v555
          %599 = vst.msk [vmem:[#allocation2 + $0x39] sm:$0x1] %vm344, %v556
          %600 = vst.msk [vmem:[#allocation2 + $0x49] sm:$0x1] %vm344, %v557
          %601 = vst.msk [vmem:[#allocation2 + $0x59] sm:$0x1] %vm344, %v558
          %602 = vst.msk [vmem:[#allocation2 + $0x69] sm:$0x1] %vm344, %v559
          %603 = vst.msk [vmem:[#allocation2 + $0x79] sm:$0x1] %vm344, %v560
          %604 = vst.msk [vmem:[#allocation2 + $0x89] sm:$0x1] %vm344, %v477
          %605 = vst.msk [vmem:[#allocation2 + $0x99] sm:$0x1] %vm344, %v561
          %606 = vst.msk [vmem:[#allocation2 + $0xa9] sm:$0x1] %vm344, %v562
          %607 = vst.msk [vmem:[#allocation2 + $0xb9] sm:$0x1] %vm344, %v563
          %608 = vst.msk [vmem:[#allocation2 + $0xc9] sm:$0x1] %vm344, %v564
          %609 = vst.msk [vmem:[#allocation2 + $0xd9] sm:$0x1] %vm344, %v565
          %610 = vst.msk [vmem:[#allocation2 + $0xe9] sm:$0x1] %vm344, %v566
          %611 = vst.msk [vmem:[#allocation2 + $0xf9] sm:$0x1] %vm344, %v567
          %612 = vst.msk [vmem:[#allocation2 + $0x109] sm:$0x1] %vm344, %v480
          %613 = vst.msk [vmem:[#allocation2 + $0x119] sm:$0x1] %vm344, %v568
          %614 = vst.msk [vmem:[#allocation2 + $0x129] sm:$0x1] %vm344, %v569
          %615 = vst.msk [vmem:[#allocation2 + $0x139] sm:$0x1] %vm344, %v570
          %616 = vst.msk [vmem:[#allocation2 + $0x149] sm:$0x1] %vm344, %v571
          %617 = vst.msk [vmem:[#allocation2 + $0x159] sm:$0x1] %vm344, %v572
          %618 = vst.msk [vmem:[#allocation2 + $0x169] sm:$0x1] %vm344, %v573
          %619 = vst.msk [vmem:[#allocation2 + $0x179] sm:$0x1] %vm344, %v574
          %s620 = scalar_lea.vmem %s219, 32
          %v621 = vld [vmem:[%s620] sm:$0xff]
          %v622 = vld [vmem:[%s620 + $0x8] sm:$0xff]
          %v624 = vsel %vm239, %v621, 0
          %v627 = vsel %vm239, %v622, 0
          %629 = vmatpush.xpose.msra.mxu0 0.0
          %630 = vmatpush.xpose.msra.mxu0 0.0
          %631 = vmatpush.xpose.msra.mxu0 0.0
          %632 = vmatpush.xpose.msra.mxu0 0.0
          %633 = vmatpush.xpose.msra.mxu0 0.0
          %634 = vmatpush.xpose.msra.mxu0 0.0
          %635 = vmatpush.xpose.msra.mxu0 0.0
          %636 = vmatpush.xpose.msra.mxu0 0.0
          %637 = vmatpush.xpose.msra.mxu0 0.0
          %638 = vmatpush.xpose.msra.mxu0 0.0
          %639 = vmatpush.xpose.msra.mxu0 0.0
          %640 = vmatpush.xpose.msra.mxu0 0.0
          %641 = vmatpush.xpose.msra.mxu0 0.0
          %642 = vmatpush.xpose.msra.mxu0 0.0
          %643 = vmatpush.xpose.msra.mxu0 %v627
          %644 = vmatpush.xpose.msra.mxu0 %v624
          %645 = vmatmul.f32.gmra.mxu0 %v241
          %v646 = vpop.f32.mrf.mxu0
          %v647 = vadd.f32 0.0, %v646
          %648 = vmatmul.f32.gmra.mxu0 %v244
          %v649 = vpop.f32.mrf.mxu0
          %v650 = vadd.f32 0.0, %v649
          %651 = vmatmul.f32.gmra.mxu0 %v247
          %v652 = vpop.f32.mrf.mxu0
          %v653 = vadd.f32 0.0, %v652
          %654 = vmatmul.f32.gmra.mxu0 %v250
          %v655 = vpop.f32.mrf.mxu0
          %v656 = vadd.f32 0.0, %v655
          %657 = vmatmul.f32.gmra.mxu0 %v253
          %v658 = vpop.f32.mrf.mxu0
          %v659 = vadd.f32 0.0, %v658
          %660 = vmatmul.f32.gmra.mxu0 %v256
          %v661 = vpop.f32.mrf.mxu0
          %v662 = vadd.f32 0.0, %v661
          %663 = vdwg.mxu0
          %v667 = vrot.slane %v647, 1
          %v668 = vrot.slane %v647, 2
          %v669 = vrot.slane %v647, 3
          %v670 = vrot.slane %v647, 4
          %v671 = vrot.slane %v647, 5
          %v672 = vrot.slane %v647, 6
          %v673 = vrot.slane %v647, 7
          %v674 = vrot.slane %v650, 1
          %v675 = vrot.slane %v650, 2
          %v676 = vrot.slane %v650, 3
          %v677 = vrot.slane %v650, 4
          %v678 = vrot.slane %v650, 5
          %v679 = vrot.slane %v650, 6
          %v680 = vrot.slane %v650, 7
          %v681 = vrot.slane %v653, 1
          %v682 = vrot.slane %v653, 2
          %v683 = vrot.slane %v653, 3
          %v684 = vrot.slane %v653, 4
          %v685 = vrot.slane %v653, 5
          %v686 = vrot.slane %v653, 6
          %v687 = vrot.slane %v653, 7
          %709 = vst.msk [vmem:[#allocation2 + $0x2] sm:$0x1] %vm344, %v647
          %710 = vst.msk [vmem:[#allocation2 + $0x12] sm:$0x1] %vm344, %v667
          %711 = vst.msk [vmem:[#allocation2 + $0x22] sm:$0x1] %vm344, %v668
          %712 = vst.msk [vmem:[#allocation2 + $0x32] sm:$0x1] %vm344, %v669
          %713 = vst.msk [vmem:[#allocation2 + $0x42] sm:$0x1] %vm344, %v670
          %714 = vst.msk [vmem:[#allocation2 + $0x52] sm:$0x1] %vm344, %v671
          %715 = vst.msk [vmem:[#allocation2 + $0x62] sm:$0x1] %vm344, %v672
          %716 = vst.msk [vmem:[#allocation2 + $0x72] sm:$0x1] %vm344, %v673
          %717 = vst.msk [vmem:[#allocation2 + $0x82] sm:$0x1] %vm344, %v650
          %718 = vst.msk [vmem:[#allocation2 + $0x92] sm:$0x1] %vm344, %v674
          %719 = vst.msk [vmem:[#allocation2 + $0xa2] sm:$0x1] %vm344, %v675
          %720 = vst.msk [vmem:[#allocation2 + $0xb2] sm:$0x1] %vm344, %v676
          %721 = vst.msk [vmem:[#allocation2 + $0xc2] sm:$0x1] %vm344, %v677
          %722 = vst.msk [vmem:[#allocation2 + $0xd2] sm:$0x1] %vm344, %v678
          %723 = vst.msk [vmem:[#allocation2 + $0xe2] sm:$0x1] %vm344, %v679
          %724 = vst.msk [vmem:[#allocation2 + $0xf2] sm:$0x1] %vm344, %v680
          %725 = vst.msk [vmem:[#allocation2 + $0x102] sm:$0x1] %vm344, %v653
          %726 = vst.msk [vmem:[#allocation2 + $0x112] sm:$0x1] %vm344, %v681
          %727 = vst.msk [vmem:[#allocation2 + $0x122] sm:$0x1] %vm344, %v682
          %728 = vst.msk [vmem:[#allocation2 + $0x132] sm:$0x1] %vm344, %v683
          %729 = vst.msk [vmem:[#allocation2 + $0x142] sm:$0x1] %vm344, %v684
          %730 = vst.msk [vmem:[#allocation2 + $0x152] sm:$0x1] %vm344, %v685
          %731 = vst.msk [vmem:[#allocation2 + $0x162] sm:$0x1] %vm344, %v686
          %732 = vst.msk [vmem:[#allocation2 + $0x172] sm:$0x1] %vm344, %v687
          %v736 = vrot.slane %v656, 1
          %v737 = vrot.slane %v656, 2
          %v738 = vrot.slane %v656, 3
          %v739 = vrot.slane %v656, 4
          %v740 = vrot.slane %v656, 5
          %v741 = vrot.slane %v656, 6
          %v742 = vrot.slane %v656, 7
          %v743 = vrot.slane %v659, 1
          %v744 = vrot.slane %v659, 2
          %v745 = vrot.slane %v659, 3
          %v746 = vrot.slane %v659, 4
          %v747 = vrot.slane %v659, 5
          %v748 = vrot.slane %v659, 6
          %v749 = vrot.slane %v659, 7
          %v750 = vrot.slane %v662, 1
          %v751 = vrot.slane %v662, 2
          %v752 = vrot.slane %v662, 3
          %v753 = vrot.slane %v662, 4
          %v754 = vrot.slane %v662, 5
          %v755 = vrot.slane %v662, 6
          %v756 = vrot.slane %v662, 7
          %778 = vst.msk [vmem:[#allocation2 + $0xa] sm:$0x1] %vm344, %v656
          %779 = vst.msk [vmem:[#allocation2 + $0x1a] sm:$0x1] %vm344, %v736
          %780 = vst.msk [vmem:[#allocation2 + $0x2a] sm:$0x1] %vm344, %v737
          %781 = vst.msk [vmem:[#allocation2 + $0x3a] sm:$0x1] %vm344, %v738
          %782 = vst.msk [vmem:[#allocation2 + $0x4a] sm:$0x1] %vm344, %v739
          %783 = vst.msk [vmem:[#allocation2 + $0x5a] sm:$0x1] %vm344, %v740
          %784 = vst.msk [vmem:[#allocation2 + $0x6a] sm:$0x1] %vm344, %v741
          %785 = vst.msk [vmem:[#allocation2 + $0x7a] sm:$0x1] %vm344, %v742
          %786 = vst.msk [vmem:[#allocation2 + $0x8a] sm:$0x1] %vm344, %v659
          %787 = vst.msk [vmem:[#allocation2 + $0x9a] sm:$0x1] %vm344, %v743
          %788 = vst.msk [vmem:[#allocation2 + $0xaa] sm:$0x1] %vm344, %v744
          %789 = vst.msk [vmem:[#allocation2 + $0xba] sm:$0x1] %vm344, %v745
          %790 = vst.msk [vmem:[#allocation2 + $0xca] sm:$0x1] %vm344, %v746
          %791 = vst.msk [vmem:[#allocation2 + $0xda] sm:$0x1] %vm344, %v747
          %792 = vst.msk [vmem:[#allocation2 + $0xea] sm:$0x1] %vm344, %v748
          %793 = vst.msk [vmem:[#allocation2 + $0xfa] sm:$0x1] %vm344, %v749
          %794 = vst.msk [vmem:[#allocation2 + $0x10a] sm:$0x1] %vm344, %v662
          %795 = vst.msk [vmem:[#allocation2 + $0x11a] sm:$0x1] %vm344, %v750
          %796 = vst.msk [vmem:[#allocation2 + $0x12a] sm:$0x1] %vm344, %v751
          %797 = vst.msk [vmem:[#allocation2 + $0x13a] sm:$0x1] %vm344, %v752
          %798 = vst.msk [vmem:[#allocation2 + $0x14a] sm:$0x1] %vm344, %v753
          %799 = vst.msk [vmem:[#allocation2 + $0x15a] sm:$0x1] %vm344, %v754
          %800 = vst.msk [vmem:[#allocation2 + $0x16a] sm:$0x1] %vm344, %v755
          %801 = vst.msk [vmem:[#allocation2 + $0x17a] sm:$0x1] %vm344, %v756
          %s802 = scalar_lea.vmem %s219, 48
          %v803 = vld [vmem:[%s802] sm:$0xff]
          %v804 = vld [vmem:[%s802 + $0x8] sm:$0xff]
          %v806 = vsel %vm239, %v803, 0
          %v809 = vsel %vm239, %v804, 0
          %811 = vmatpush.xpose.msra.mxu0 0.0
          %812 = vmatpush.xpose.msra.mxu0 0.0
          %813 = vmatpush.xpose.msra.mxu0 0.0
          %814 = vmatpush.xpose.msra.mxu0 0.0
          %815 = vmatpush.xpose.msra.mxu0 0.0
          %816 = vmatpush.xpose.msra.mxu0 0.0
          %817 = vmatpush.xpose.msra.mxu0 0.0
          %818 = vmatpush.xpose.msra.mxu0 0.0
          %819 = vmatpush.xpose.msra.mxu0 0.0
          %820 = vmatpush.xpose.msra.mxu0 0.0
          %821 = vmatpush.xpose.msra.mxu0 0.0
          %822 = vmatpush.xpose.msra.mxu0 0.0
          %823 = vmatpush.xpose.msra.mxu0 0.0
          %824 = vmatpush.xpose.msra.mxu0 0.0
          %825 = vmatpush.xpose.msra.mxu0 %v809
          %826 = vmatpush.xpose.msra.mxu0 %v806
          %827 = vmatmul.f32.gmra.mxu0 %v241
          %v828 = vpop.f32.mrf.mxu0
          %v829 = vadd.f32 0.0, %v828
          %830 = vmatmul.f32.gmra.mxu0 %v244
          %v831 = vpop.f32.mrf.mxu0
          %v832 = vadd.f32 0.0, %v831
          %833 = vmatmul.f32.gmra.mxu0 %v247
          %v834 = vpop.f32.mrf.mxu0
          %v835 = vadd.f32 0.0, %v834
          %836 = vmatmul.f32.gmra.mxu0 %v250
          %v837 = vpop.f32.mrf.mxu0
          %v838 = vadd.f32 0.0, %v837
          %839 = vmatmul.f32.gmra.mxu0 %v253
          %v840 = vpop.f32.mrf.mxu0
          %v841 = vadd.f32 0.0, %v840
          %842 = vmatmul.f32.gmra.mxu0 %v256
          %v843 = vpop.f32.mrf.mxu0
          %v844 = vadd.f32 0.0, %v843
          %845 = vdwg.mxu0
          %v849 = vrot.slane %v829, 1
          %v850 = vrot.slane %v829, 2
          %v851 = vrot.slane %v829, 3
          %v852 = vrot.slane %v829, 4
          %v853 = vrot.slane %v829, 5
          %v854 = vrot.slane %v829, 6
          %v855 = vrot.slane %v829, 7
          %v856 = vrot.slane %v832, 1
          %v857 = vrot.slane %v832, 2
          %v858 = vrot.slane %v832, 3
          %v859 = vrot.slane %v832, 4
          %v860 = vrot.slane %v832, 5
          %v861 = vrot.slane %v832, 6
          %v862 = vrot.slane %v832, 7
          %v863 = vrot.slane %v835, 1
          %v864 = vrot.slane %v835, 2
          %v865 = vrot.slane %v835, 3
          %v866 = vrot.slane %v835, 4
          %v867 = vrot.slane %v835, 5
          %v868 = vrot.slane %v835, 6
          %v869 = vrot.slane %v835, 7
          %891 = vst.msk [vmem:[#allocation2 + $0x3] sm:$0x1] %vm344, %v829
          %892 = vst.msk [vmem:[#allocation2 + $0x13] sm:$0x1] %vm344, %v849
          %893 = vst.msk [vmem:[#allocation2 + $0x23] sm:$0x1] %vm344, %v850
          %894 = vst.msk [vmem:[#allocation2 + $0x33] sm:$0x1] %vm344, %v851
          %895 = vst.msk [vmem:[#allocation2 + $0x43] sm:$0x1] %vm344, %v852
          %896 = vst.msk [vmem:[#allocation2 + $0x53] sm:$0x1] %vm344, %v853
          %897 = vst.msk [vmem:[#allocation2 + $0x63] sm:$0x1] %vm344, %v854
          %898 = vst.msk [vmem:[#allocation2 + $0x73] sm:$0x1] %vm344, %v855
          %899 = vst.msk [vmem:[#allocation2 + $0x83] sm:$0x1] %vm344, %v832
          %900 = vst.msk [vmem:[#allocation2 + $0x93] sm:$0x1] %vm344, %v856
          %901 = vst.msk [vmem:[#allocation2 + $0xa3] sm:$0x1] %vm344, %v857
          %902 = vst.msk [vmem:[#allocation2 + $0xb3] sm:$0x1] %vm344, %v858
          %903 = vst.msk [vmem:[#allocation2 + $0xc3] sm:$0x1] %vm344, %v859
          %904 = vst.msk [vmem:[#allocation2 + $0xd3] sm:$0x1] %vm344, %v860
          %905 = vst.msk [vmem:[#allocation2 + $0xe3] sm:$0x1] %vm344, %v861
          %906 = vst.msk [vmem:[#allocation2 + $0xf3] sm:$0x1] %vm344, %v862
          %907 = vst.msk [vmem:[#allocation2 + $0x103] sm:$0x1] %vm344, %v835
          %908 = vst.msk [vmem:[#allocation2 + $0x113] sm:$0x1] %vm344, %v863
          %909 = vst.msk [vmem:[#allocation2 + $0x123] sm:$0x1] %vm344, %v864
          %910 = vst.msk [vmem:[#allocation2 + $0x133] sm:$0x1] %vm344, %v865
          %911 = vst.msk [vmem:[#allocation2 + $0x143] sm:$0x1] %vm344, %v866
          %912 = vst.msk [vmem:[#allocation2 + $0x153] sm:$0x1] %vm344, %v867
          %913 = vst.msk [vmem:[#allocation2 + $0x163] sm:$0x1] %vm344, %v868
          %914 = vst.msk [vmem:[#allocation2 + $0x173] sm:$0x1] %vm344, %v869
          %v918 = vrot.slane %v838, 1
          %v919 = vrot.slane %v838, 2
          %v920 = vrot.slane %v838, 3
          %v921 = vrot.slane %v838, 4
          %v922 = vrot.slane %v838, 5
          %v923 = vrot.slane %v838, 6
          %v924 = vrot.slane %v838, 7
          %v925 = vrot.slane %v841, 1
          %v926 = vrot.slane %v841, 2
          %v927 = vrot.slane %v841, 3
          %v928 = vrot.slane %v841, 4
          %v929 = vrot.slane %v841, 5
          %v930 = vrot.slane %v841, 6
          %v931 = vrot.slane %v841, 7
          %v932 = vrot.slane %v844, 1
          %v933 = vrot.slane %v844, 2
          %v934 = vrot.slane %v844, 3
          %v935 = vrot.slane %v844, 4
          %v936 = vrot.slane %v844, 5
          %v937 = vrot.slane %v844, 6
          %v938 = vrot.slane %v844, 7
          %960 = vst.msk [vmem:[#allocation2 + $0xb] sm:$0x1] %vm344, %v838
          %961 = vst.msk [vmem:[#allocation2 + $0x1b] sm:$0x1] %vm344, %v918
          %962 = vst.msk [vmem:[#allocation2 + $0x2b] sm:$0x1] %vm344, %v919
          %963 = vst.msk [vmem:[#allocation2 + $0x3b] sm:$0x1] %vm344, %v920
          %964 = vst.msk [vmem:[#allocation2 + $0x4b] sm:$0x1] %vm344, %v921
          %965 = vst.msk [vmem:[#allocation2 + $0x5b] sm:$0x1] %vm344, %v922
          %966 = vst.msk [vmem:[#allocation2 + $0x6b] sm:$0x1] %vm344, %v923
          %967 = vst.msk [vmem:[#allocation2 + $0x7b] sm:$0x1] %vm344, %v924
          %968 = vst.msk [vmem:[#allocation2 + $0x8b] sm:$0x1] %vm344, %v841
          %969 = vst.msk [vmem:[#allocation2 + $0x9b] sm:$0x1] %vm344, %v925
          %970 = vst.msk [vmem:[#allocation2 + $0xab] sm:$0x1] %vm344, %v926
          %971 = vst.msk [vmem:[#allocation2 + $0xbb] sm:$0x1] %vm344, %v927
          %972 = vst.msk [vmem:[#allocation2 + $0xcb] sm:$0x1] %vm344, %v928
          %973 = vst.msk [vmem:[#allocation2 + $0xdb] sm:$0x1] %vm344, %v929
          %974 = vst.msk [vmem:[#allocation2 + $0xeb] sm:$0x1] %vm344, %v930
          %975 = vst.msk [vmem:[#allocation2 + $0xfb] sm:$0x1] %vm344, %v931
          %976 = vst.msk [vmem:[#allocation2 + $0x10b] sm:$0x1] %vm344, %v844
          %977 = vst.msk [vmem:[#allocation2 + $0x11b] sm:$0x1] %vm344, %v932
          %978 = vst.msk [vmem:[#allocation2 + $0x12b] sm:$0x1] %vm344, %v933
          %979 = vst.msk [vmem:[#allocation2 + $0x13b] sm:$0x1] %vm344, %v934
          %980 = vst.msk [vmem:[#allocation2 + $0x14b] sm:$0x1] %vm344, %v935
          %981 = vst.msk [vmem:[#allocation2 + $0x15b] sm:$0x1] %vm344, %v936
          %982 = vst.msk [vmem:[#allocation2 + $0x16b] sm:$0x1] %vm344, %v937
          %983 = vst.msk [vmem:[#allocation2 + $0x17b] sm:$0x1] %vm344, %v938
          %s984 = scalar_lea.vmem %s219, 64
          %v985 = vld [vmem:[%s984] sm:$0xff]
          %v986 = vld [vmem:[%s984 + $0x8] sm:$0xff]
          %v988 = vsel %vm239, %v985, 0
          %v991 = vsel %vm239, %v986, 0
          %993 = vmatpush.xpose.msra.mxu0 0.0
          %994 = vmatpush.xpose.msra.mxu0 0.0
          %995 = vmatpush.xpose.msra.mxu0 0.0
          %996 = vmatpush.xpose.msra.mxu0 0.0
          %997 = vmatpush.xpose.msra.mxu0 0.0
          %998 = vmatpush.xpose.msra.mxu0 0.0
          %999 = vmatpush.xpose.msra.mxu0 0.0
          %1000 = vmatpush.xpose.msra.mxu0 0.0
          %1001 = vmatpush.xpose.msra.mxu0 0.0
          %1002 = vmatpush.xpose.msra.mxu0 0.0
          %1003 = vmatpush.xpose.msra.mxu0 0.0
          %1004 = vmatpush.xpose.msra.mxu0 0.0
          %1005 = vmatpush.xpose.msra.mxu0 0.0
          %1006 = vmatpush.xpose.msra.mxu0 0.0
          %1007 = vmatpush.xpose.msra.mxu0 %v991
          %1008 = vmatpush.xpose.msra.mxu0 %v988
          %1009 = vmatmul.f32.gmra.mxu0 %v241
          %v1010 = vpop.f32.mrf.mxu0
          %v1011 = vadd.f32 0.0, %v1010
          %1012 = vmatmul.f32.gmra.mxu0 %v244
          %v1013 = vpop.f32.mrf.mxu0
          %v1014 = vadd.f32 0.0, %v1013
          %1015 = vmatmul.f32.gmra.mxu0 %v247
          %v1016 = vpop.f32.mrf.mxu0
          %v1017 = vadd.f32 0.0, %v1016
          %1018 = vmatmul.f32.gmra.mxu0 %v250
          %v1019 = vpop.f32.mrf.mxu0
          %v1020 = vadd.f32 0.0, %v1019
          %1021 = vmatmul.f32.gmra.mxu0 %v253
          %v1022 = vpop.f32.mrf.mxu0
          %v1023 = vadd.f32 0.0, %v1022
          %1024 = vmatmul.f32.gmra.mxu0 %v256
          %v1025 = vpop.f32.mrf.mxu0
          %v1026 = vadd.f32 0.0, %v1025
          %1027 = vdwg.mxu0
          %v1031 = vrot.slane %v1011, 1
          %v1032 = vrot.slane %v1011, 2
          %v1033 = vrot.slane %v1011, 3
          %v1034 = vrot.slane %v1011, 4
          %v1035 = vrot.slane %v1011, 5
          %v1036 = vrot.slane %v1011, 6
          %v1037 = vrot.slane %v1011, 7
          %v1038 = vrot.slane %v1014, 1
          %v1039 = vrot.slane %v1014, 2
          %v1040 = vrot.slane %v1014, 3
          %v1041 = vrot.slane %v1014, 4
          %v1042 = vrot.slane %v1014, 5
          %v1043 = vrot.slane %v1014, 6
          %v1044 = vrot.slane %v1014, 7
          %v1045 = vrot.slane %v1017, 1
          %v1046 = vrot.slane %v1017, 2
          %v1047 = vrot.slane %v1017, 3
          %v1048 = vrot.slane %v1017, 4
          %v1049 = vrot.slane %v1017, 5
          %v1050 = vrot.slane %v1017, 6
          %v1051 = vrot.slane %v1017, 7
          %1073 = vst.msk [vmem:[#allocation2 + $0x4] sm:$0x1] %vm344, %v1011
          %1074 = vst.msk [vmem:[#allocation2 + $0x14] sm:$0x1] %vm344, %v1031
          %1075 = vst.msk [vmem:[#allocation2 + $0x24] sm:$0x1] %vm344, %v1032
          %1076 = vst.msk [vmem:[#allocation2 + $0x34] sm:$0x1] %vm344, %v1033
          %1077 = vst.msk [vmem:[#allocation2 + $0x44] sm:$0x1] %vm344, %v1034
          %1078 = vst.msk [vmem:[#allocation2 + $0x54] sm:$0x1] %vm344, %v1035
          %1079 = vst.msk [vmem:[#allocation2 + $0x64] sm:$0x1] %vm344, %v1036
          %1080 = vst.msk [vmem:[#allocation2 + $0x74] sm:$0x1] %vm344, %v1037
          %1081 = vst.msk [vmem:[#allocation2 + $0x84] sm:$0x1] %vm344, %v1014
          %1082 = vst.msk [vmem:[#allocation2 + $0x94] sm:$0x1] %vm344, %v1038
          %1083 = vst.msk [vmem:[#allocation2 + $0xa4] sm:$0x1] %vm344, %v1039
          %1084 = vst.msk [vmem:[#allocation2 + $0xb4] sm:$0x1] %vm344, %v1040
          %1085 = vst.msk [vmem:[#allocation2 + $0xc4] sm:$0x1] %vm344, %v1041
          %1086 = vst.msk [vmem:[#allocation2 + $0xd4] sm:$0x1] %vm344, %v1042
          %1087 = vst.msk [vmem:[#allocation2 + $0xe4] sm:$0x1] %vm344, %v1043
          %1088 = vst.msk [vmem:[#allocation2 + $0xf4] sm:$0x1] %vm344, %v1044
          %1089 = vst.msk [vmem:[#allocation2 + $0x104] sm:$0x1] %vm344, %v1017
          %1090 = vst.msk [vmem:[#allocation2 + $0x114] sm:$0x1] %vm344, %v1045
          %1091 = vst.msk [vmem:[#allocation2 + $0x124] sm:$0x1] %vm344, %v1046
          %1092 = vst.msk [vmem:[#allocation2 + $0x134] sm:$0x1] %vm344, %v1047
          %1093 = vst.msk [vmem:[#allocation2 + $0x144] sm:$0x1] %vm344, %v1048
          %1094 = vst.msk [vmem:[#allocation2 + $0x154] sm:$0x1] %vm344, %v1049
          %1095 = vst.msk [vmem:[#allocation2 + $0x164] sm:$0x1] %vm344, %v1050
          %1096 = vst.msk [vmem:[#allocation2 + $0x174] sm:$0x1] %vm344, %v1051
          %v1100 = vrot.slane %v1020, 1
          %v1101 = vrot.slane %v1020, 2
          %v1102 = vrot.slane %v1020, 3
          %v1103 = vrot.slane %v1020, 4
          %v1104 = vrot.slane %v1020, 5
          %v1105 = vrot.slane %v1020, 6
          %v1106 = vrot.slane %v1020, 7
          %v1107 = vrot.slane %v1023, 1
          %v1108 = vrot.slane %v1023, 2
          %v1109 = vrot.slane %v1023, 3
          %v1110 = vrot.slane %v1023, 4
          %v1111 = vrot.slane %v1023, 5
          %v1112 = vrot.slane %v1023, 6
          %v1113 = vrot.slane %v1023, 7
          %v1114 = vrot.slane %v1026, 1
          %v1115 = vrot.slane %v1026, 2
          %v1116 = vrot.slane %v1026, 3
          %v1117 = vrot.slane %v1026, 4
          %v1118 = vrot.slane %v1026, 5
          %v1119 = vrot.slane %v1026, 6
          %v1120 = vrot.slane %v1026, 7
          %1142 = vst.msk [vmem:[#allocation2 + $0xc] sm:$0x1] %vm344, %v1020
          %1143 = vst.msk [vmem:[#allocation2 + $0x1c] sm:$0x1] %vm344, %v1100
          %1144 = vst.msk [vmem:[#allocation2 + $0x2c] sm:$0x1] %vm344, %v1101
          %1145 = vst.msk [vmem:[#allocation2 + $0x3c] sm:$0x1] %vm344, %v1102
          %1146 = vst.msk [vmem:[#allocation2 + $0x4c] sm:$0x1] %vm344, %v1103
          %1147 = vst.msk [vmem:[#allocation2 + $0x5c] sm:$0x1] %vm344, %v1104
          %1148 = vst.msk [vmem:[#allocation2 + $0x6c] sm:$0x1] %vm344, %v1105
          %1149 = vst.msk [vmem:[#allocation2 + $0x7c] sm:$0x1] %vm344, %v1106
          %1150 = vst.msk [vmem:[#allocation2 + $0x8c] sm:$0x1] %vm344, %v1023
          %1151 = vst.msk [vmem:[#allocation2 + $0x9c] sm:$0x1] %vm344, %v1107
          %1152 = vst.msk [vmem:[#allocation2 + $0xac] sm:$0x1] %vm344, %v1108
          %1153 = vst.msk [vmem:[#allocation2 + $0xbc] sm:$0x1] %vm344, %v1109
          %1154 = vst.msk [vmem:[#allocation2 + $0xcc] sm:$0x1] %vm344, %v1110
          %1155 = vst.msk [vmem:[#allocation2 + $0xdc] sm:$0x1] %vm344, %v1111
          %1156 = vst.msk [vmem:[#allocation2 + $0xec] sm:$0x1] %vm344, %v1112
          %1157 = vst.msk [vmem:[#allocation2 + $0xfc] sm:$0x1] %vm344, %v1113
          %1158 = vst.msk [vmem:[#allocation2 + $0x10c] sm:$0x1] %vm344, %v1026
          %1159 = vst.msk [vmem:[#allocation2 + $0x11c] sm:$0x1] %vm344, %v1114
          %1160 = vst.msk [vmem:[#allocation2 + $0x12c] sm:$0x1] %vm344, %v1115
          %1161 = vst.msk [vmem:[#allocation2 + $0x13c] sm:$0x1] %vm344, %v1116
          %1162 = vst.msk [vmem:[#allocation2 + $0x14c] sm:$0x1] %vm344, %v1117
          %1163 = vst.msk [vmem:[#allocation2 + $0x15c] sm:$0x1] %vm344, %v1118
          %1164 = vst.msk [vmem:[#allocation2 + $0x16c] sm:$0x1] %vm344, %v1119
          %1165 = vst.msk [vmem:[#allocation2 + $0x17c] sm:$0x1] %vm344, %v1120
          %s1166 = scalar_lea.vmem %s219, 80
          %v1167 = vld [vmem:[%s1166] sm:$0xff]
          %v1168 = vld [vmem:[%s1166 + $0x8] sm:$0xff]
          %v1170 = vsel %vm239, %v1167, 0
          %v1173 = vsel %vm239, %v1168, 0
          %1175 = vmatpush.xpose.msra.mxu0 0.0
          %1176 = vmatpush.xpose.msra.mxu0 0.0
          %1177 = vmatpush.xpose.msra.mxu0 0.0
          %1178 = vmatpush.xpose.msra.mxu0 0.0
          %1179 = vmatpush.xpose.msra.mxu0 0.0
          %1180 = vmatpush.xpose.msra.mxu0 0.0
          %1181 = vmatpush.xpose.msra.mxu0 0.0
          %1182 = vmatpush.xpose.msra.mxu0 0.0
          %1183 = vmatpush.xpose.msra.mxu0 0.0
          %1184 = vmatpush.xpose.msra.mxu0 0.0
          %1185 = vmatpush.xpose.msra.mxu0 0.0
          %1186 = vmatpush.xpose.msra.mxu0 0.0
          %1187 = vmatpush.xpose.msra.mxu0 0.0
          %1188 = vmatpush.xpose.msra.mxu0 0.0
          %1189 = vmatpush.xpose.msra.mxu0 %v1173
          %1190 = vmatpush.xpose.msra.mxu0 %v1170
          %1191 = vmatmul.f32.gmra.mxu0 %v241
          %v1192 = vpop.f32.mrf.mxu0
          %v1193 = vadd.f32 0.0, %v1192
          %1194 = vmatmul.f32.gmra.mxu0 %v244
          %v1195 = vpop.f32.mrf.mxu0
          %v1196 = vadd.f32 0.0, %v1195
          %1197 = vmatmul.f32.gmra.mxu0 %v247
          %v1198 = vpop.f32.mrf.mxu0
          %v1199 = vadd.f32 0.0, %v1198
          %1200 = vmatmul.f32.gmra.mxu0 %v250
          %v1201 = vpop.f32.mrf.mxu0
          %v1202 = vadd.f32 0.0, %v1201
          %1203 = vmatmul.f32.gmra.mxu0 %v253
          %v1204 = vpop.f32.mrf.mxu0
          %v1205 = vadd.f32 0.0, %v1204
          %1206 = vmatmul.f32.gmra.mxu0 %v256
          %v1207 = vpop.f32.mrf.mxu0
          %v1208 = vadd.f32 0.0, %v1207
          %1209 = vdwg.mxu0
          %v1213 = vrot.slane %v1193, 1
          %v1214 = vrot.slane %v1193, 2
          %v1215 = vrot.slane %v1193, 3
          %v1216 = vrot.slane %v1193, 4
          %v1217 = vrot.slane %v1193, 5
          %v1218 = vrot.slane %v1193, 6
          %v1219 = vrot.slane %v1193, 7
          %v1220 = vrot.slane %v1196, 1
          %v1221 = vrot.slane %v1196, 2
          %v1222 = vrot.slane %v1196, 3
          %v1223 = vrot.slane %v1196, 4
          %v1224 = vrot.slane %v1196, 5
          %v1225 = vrot.slane %v1196, 6
          %v1226 = vrot.slane %v1196, 7
          %v1227 = vrot.slane %v1199, 1
          %v1228 = vrot.slane %v1199, 2
          %v1229 = vrot.slane %v1199, 3
          %v1230 = vrot.slane %v1199, 4
          %v1231 = vrot.slane %v1199, 5
          %v1232 = vrot.slane %v1199, 6
          %v1233 = vrot.slane %v1199, 7
          %1255 = vst.msk [vmem:[#allocation2 + $0x5] sm:$0x1] %vm344, %v1193
          %1256 = vst.msk [vmem:[#allocation2 + $0x15] sm:$0x1] %vm344, %v1213
          %1257 = vst.msk [vmem:[#allocation2 + $0x25] sm:$0x1] %vm344, %v1214
          %1258 = vst.msk [vmem:[#allocation2 + $0x35] sm:$0x1] %vm344, %v1215
          %1259 = vst.msk [vmem:[#allocation2 + $0x45] sm:$0x1] %vm344, %v1216
          %1260 = vst.msk [vmem:[#allocation2 + $0x55] sm:$0x1] %vm344, %v1217
          %1261 = vst.msk [vmem:[#allocation2 + $0x65] sm:$0x1] %vm344, %v1218
          %1262 = vst.msk [vmem:[#allocation2 + $0x75] sm:$0x1] %vm344, %v1219
          %1263 = vst.msk [vmem:[#allocation2 + $0x85] sm:$0x1] %vm344, %v1196
          %1264 = vst.msk [vmem:[#allocation2 + $0x95] sm:$0x1] %vm344, %v1220
          %1265 = vst.msk [vmem:[#allocation2 + $0xa5] sm:$0x1] %vm344, %v1221
          %1266 = vst.msk [vmem:[#allocation2 + $0xb5] sm:$0x1] %vm344, %v1222
          %1267 = vst.msk [vmem:[#allocation2 + $0xc5] sm:$0x1] %vm344, %v1223
          %1268 = vst.msk [vmem:[#allocation2 + $0xd5] sm:$0x1] %vm344, %v1224
          %1269 = vst.msk [vmem:[#allocation2 + $0xe5] sm:$0x1] %vm344, %v1225
          %1270 = vst.msk [vmem:[#allocation2 + $0xf5] sm:$0x1] %vm344, %v1226
          %1271 = vst.msk [vmem:[#allocation2 + $0x105] sm:$0x1] %vm344, %v1199
          %1272 = vst.msk [vmem:[#allocation2 + $0x115] sm:$0x1] %vm344, %v1227
          %1273 = vst.msk [vmem:[#allocation2 + $0x125] sm:$0x1] %vm344, %v1228
          %1274 = vst.msk [vmem:[#allocation2 + $0x135] sm:$0x1] %vm344, %v1229
          %1275 = vst.msk [vmem:[#allocation2 + $0x145] sm:$0x1] %vm344, %v1230
          %1276 = vst.msk [vmem:[#allocation2 + $0x155] sm:$0x1] %vm344, %v1231
          %1277 = vst.msk [vmem:[#allocation2 + $0x165] sm:$0x1] %vm344, %v1232
          %1278 = vst.msk [vmem:[#allocation2 + $0x175] sm:$0x1] %vm344, %v1233
          %v1282 = vrot.slane %v1202, 1
          %v1283 = vrot.slane %v1202, 2
          %v1284 = vrot.slane %v1202, 3
          %v1285 = vrot.slane %v1202, 4
          %v1286 = vrot.slane %v1202, 5
          %v1287 = vrot.slane %v1202, 6
          %v1288 = vrot.slane %v1202, 7
          %v1289 = vrot.slane %v1205, 1
          %v1290 = vrot.slane %v1205, 2
          %v1291 = vrot.slane %v1205, 3
          %v1292 = vrot.slane %v1205, 4
          %v1293 = vrot.slane %v1205, 5
          %v1294 = vrot.slane %v1205, 6
          %v1295 = vrot.slane %v1205, 7
          %v1296 = vrot.slane %v1208, 1
          %v1297 = vrot.slane %v1208, 2
          %v1298 = vrot.slane %v1208, 3
          %v1299 = vrot.slane %v1208, 4
          %v1300 = vrot.slane %v1208, 5
          %v1301 = vrot.slane %v1208, 6
          %v1302 = vrot.slane %v1208, 7
          %1324 = vst.msk [vmem:[#allocation2 + $0xd] sm:$0x1] %vm344, %v1202
          %1325 = vst.msk [vmem:[#allocation2 + $0x1d] sm:$0x1] %vm344, %v1282
          %1326 = vst.msk [vmem:[#allocation2 + $0x2d] sm:$0x1] %vm344, %v1283
          %1327 = vst.msk [vmem:[#allocation2 + $0x3d] sm:$0x1] %vm344, %v1284
          %1328 = vst.msk [vmem:[#allocation2 + $0x4d] sm:$0x1] %vm344, %v1285
          %1329 = vst.msk [vmem:[#allocation2 + $0x5d] sm:$0x1] %vm344, %v1286
          %1330 = vst.msk [vmem:[#allocation2 + $0x6d] sm:$0x1] %vm344, %v1287
          %1331 = vst.msk [vmem:[#allocation2 + $0x7d] sm:$0x1] %vm344, %v1288
          %1332 = vst.msk [vmem:[#allocation2 + $0x8d] sm:$0x1] %vm344, %v1205
          %1333 = vst.msk [vmem:[#allocation2 + $0x9d] sm:$0x1] %vm344, %v1289
          %1334 = vst.msk [vmem:[#allocation2 + $0xad] sm:$0x1] %vm344, %v1290
          %1335 = vst.msk [vmem:[#allocation2 + $0xbd] sm:$0x1] %vm344, %v1291
          %1336 = vst.msk [vmem:[#allocation2 + $0xcd] sm:$0x1] %vm344, %v1292
          %1337 = vst.msk [vmem:[#allocation2 + $0xdd] sm:$0x1] %vm344, %v1293
          %1338 = vst.msk [vmem:[#allocation2 + $0xed] sm:$0x1] %vm344, %v1294
          %1339 = vst.msk [vmem:[#allocation2 + $0xfd] sm:$0x1] %vm344, %v1295
          %1340 = vst.msk [vmem:[#allocation2 + $0x10d] sm:$0x1] %vm344, %v1208
          %1341 = vst.msk [vmem:[#allocation2 + $0x11d] sm:$0x1] %vm344, %v1296
          %1342 = vst.msk [vmem:[#allocation2 + $0x12d] sm:$0x1] %vm344, %v1297
          %1343 = vst.msk [vmem:[#allocation2 + $0x13d] sm:$0x1] %vm344, %v1298
          %1344 = vst.msk [vmem:[#allocation2 + $0x14d] sm:$0x1] %vm344, %v1299
          %1345 = vst.msk [vmem:[#allocation2 + $0x15d] sm:$0x1] %vm344, %v1300
          %1346 = vst.msk [vmem:[#allocation2 + $0x16d] sm:$0x1] %vm344, %v1301
          %1347 = vst.msk [vmem:[#allocation2 + $0x17d] sm:$0x1] %vm344, %v1302
          %s1348 = scalar_lea.vmem %s219, 96
          %v1349 = vld [vmem:[%s1348] sm:$0xff]
          %v1350 = vld [vmem:[%s1348 + $0x8] sm:$0xff]
          %v1352 = vsel %vm239, %v1349, 0
          %v1355 = vsel %vm239, %v1350, 0
          %1357 = vmatpush.xpose.msra.mxu0 0.0
          %1358 = vmatpush.xpose.msra.mxu0 0.0
          %1359 = vmatpush.xpose.msra.mxu0 0.0
          %1360 = vmatpush.xpose.msra.mxu0 0.0
          %1361 = vmatpush.xpose.msra.mxu0 0.0
          %1362 = vmatpush.xpose.msra.mxu0 0.0
          %1363 = vmatpush.xpose.msra.mxu0 0.0
          %1364 = vmatpush.xpose.msra.mxu0 0.0
          %1365 = vmatpush.xpose.msra.mxu0 0.0
          %1366 = vmatpush.xpose.msra.mxu0 0.0
          %1367 = vmatpush.xpose.msra.mxu0 0.0
          %1368 = vmatpush.xpose.msra.mxu0 0.0
          %1369 = vmatpush.xpose.msra.mxu0 0.0
          %1370 = vmatpush.xpose.msra.mxu0 0.0
          %1371 = vmatpush.xpose.msra.mxu0 %v1355
          %1372 = vmatpush.xpose.msra.mxu0 %v1352
          %1373 = vmatmul.f32.gmra.mxu0 %v241
          %v1374 = vpop.f32.mrf.mxu0
          %v1375 = vadd.f32 0.0, %v1374
          %1376 = vmatmul.f32.gmra.mxu0 %v244
          %v1377 = vpop.f32.mrf.mxu0
          %v1378 = vadd.f32 0.0, %v1377
          %1379 = vmatmul.f32.gmra.mxu0 %v247
          %v1380 = vpop.f32.mrf.mxu0
          %v1381 = vadd.f32 0.0, %v1380
          %1382 = vmatmul.f32.gmra.mxu0 %v250
          %v1383 = vpop.f32.mrf.mxu0
          %v1384 = vadd.f32 0.0, %v1383
          %1385 = vmatmul.f32.gmra.mxu0 %v253
          %v1386 = vpop.f32.mrf.mxu0
          %v1387 = vadd.f32 0.0, %v1386
          %1388 = vmatmul.f32.gmra.mxu0 %v256
          %v1389 = vpop.f32.mrf.mxu0
          %v1390 = vadd.f32 0.0, %v1389
          %1391 = vdwg.mxu0
          %v1395 = vrot.slane %v1375, 1
          %v1396 = vrot.slane %v1375, 2
          %v1397 = vrot.slane %v1375, 3
          %v1398 = vrot.slane %v1375, 4
          %v1399 = vrot.slane %v1375, 5
          %v1400 = vrot.slane %v1375, 6
          %v1401 = vrot.slane %v1375, 7
          %v1402 = vrot.slane %v1378, 1
          %v1403 = vrot.slane %v1378, 2
          %v1404 = vrot.slane %v1378, 3
          %v1405 = vrot.slane %v1378, 4
          %v1406 = vrot.slane %v1378, 5
          %v1407 = vrot.slane %v1378, 6
          %v1408 = vrot.slane %v1378, 7
          %v1409 = vrot.slane %v1381, 1
          %v1410 = vrot.slane %v1381, 2
          %v1411 = vrot.slane %v1381, 3
          %v1412 = vrot.slane %v1381, 4
          %v1413 = vrot.slane %v1381, 5
          %v1414 = vrot.slane %v1381, 6
          %v1415 = vrot.slane %v1381, 7
          %1437 = vst.msk [vmem:[#allocation2 + $0x6] sm:$0x1] %vm344, %v1375
          %1438 = vst.msk [vmem:[#allocation2 + $0x16] sm:$0x1] %vm344, %v1395
          %1439 = vst.msk [vmem:[#allocation2 + $0x26] sm:$0x1] %vm344, %v1396
          %1440 = vst.msk [vmem:[#allocation2 + $0x36] sm:$0x1] %vm344, %v1397
          %1441 = vst.msk [vmem:[#allocation2 + $0x46] sm:$0x1] %vm344, %v1398
          %1442 = vst.msk [vmem:[#allocation2 + $0x56] sm:$0x1] %vm344, %v1399
          %1443 = vst.msk [vmem:[#allocation2 + $0x66] sm:$0x1] %vm344, %v1400
          %1444 = vst.msk [vmem:[#allocation2 + $0x76] sm:$0x1] %vm344, %v1401
          %1445 = vst.msk [vmem:[#allocation2 + $0x86] sm:$0x1] %vm344, %v1378
          %1446 = vst.msk [vmem:[#allocation2 + $0x96] sm:$0x1] %vm344, %v1402
          %1447 = vst.msk [vmem:[#allocation2 + $0xa6] sm:$0x1] %vm344, %v1403
          %1448 = vst.msk [vmem:[#allocation2 + $0xb6] sm:$0x1] %vm344, %v1404
          %1449 = vst.msk [vmem:[#allocation2 + $0xc6] sm:$0x1] %vm344, %v1405
          %1450 = vst.msk [vmem:[#allocation2 + $0xd6] sm:$0x1] %vm344, %v1406
          %1451 = vst.msk [vmem:[#allocation2 + $0xe6] sm:$0x1] %vm344, %v1407
          %1452 = vst.msk [vmem:[#allocation2 + $0xf6] sm:$0x1] %vm344, %v1408
          %1453 = vst.msk [vmem:[#allocation2 + $0x106] sm:$0x1] %vm344, %v1381
          %1454 = vst.msk [vmem:[#allocation2 + $0x116] sm:$0x1] %vm344, %v1409
          %1455 = vst.msk [vmem:[#allocation2 + $0x126] sm:$0x1] %vm344, %v1410
          %1456 = vst.msk [vmem:[#allocation2 + $0x136] sm:$0x1] %vm344, %v1411
          %1457 = vst.msk [vmem:[#allocation2 + $0x146] sm:$0x1] %vm344, %v1412
          %1458 = vst.msk [vmem:[#allocation2 + $0x156] sm:$0x1] %vm344, %v1413
          %1459 = vst.msk [vmem:[#allocation2 + $0x166] sm:$0x1] %vm344, %v1414
          %1460 = vst.msk [vmem:[#allocation2 + $0x176] sm:$0x1] %vm344, %v1415
          %v1464 = vrot.slane %v1384, 1
          %v1465 = vrot.slane %v1384, 2
          %v1466 = vrot.slane %v1384, 3
          %v1467 = vrot.slane %v1384, 4
          %v1468 = vrot.slane %v1384, 5
          %v1469 = vrot.slane %v1384, 6
          %v1470 = vrot.slane %v1384, 7
          %v1471 = vrot.slane %v1387, 1
          %v1472 = vrot.slane %v1387, 2
          %v1473 = vrot.slane %v1387, 3
          %v1474 = vrot.slane %v1387, 4
          %v1475 = vrot.slane %v1387, 5
          %v1476 = vrot.slane %v1387, 6
          %v1477 = vrot.slane %v1387, 7
          %v1478 = vrot.slane %v1390, 1
          %v1479 = vrot.slane %v1390, 2
          %v1480 = vrot.slane %v1390, 3
          %v1481 = vrot.slane %v1390, 4
          %v1482 = vrot.slane %v1390, 5
          %v1483 = vrot.slane %v1390, 6
          %v1484 = vrot.slane %v1390, 7
          %1506 = vst.msk [vmem:[#allocation2 + $0xe] sm:$0x1] %vm344, %v1384
          %1507 = vst.msk [vmem:[#allocation2 + $0x1e] sm:$0x1] %vm344, %v1464
          %1508 = vst.msk [vmem:[#allocation2 + $0x2e] sm:$0x1] %vm344, %v1465
          %1509 = vst.msk [vmem:[#allocation2 + $0x3e] sm:$0x1] %vm344, %v1466
          %1510 = vst.msk [vmem:[#allocation2 + $0x4e] sm:$0x1] %vm344, %v1467
          %1511 = vst.msk [vmem:[#allocation2 + $0x5e] sm:$0x1] %vm344, %v1468
          %1512 = vst.msk [vmem:[#allocation2 + $0x6e] sm:$0x1] %vm344, %v1469
          %1513 = vst.msk [vmem:[#allocation2 + $0x7e] sm:$0x1] %vm344, %v1470
          %1514 = vst.msk [vmem:[#allocation2 + $0x8e] sm:$0x1] %vm344, %v1387
          %1515 = vst.msk [vmem:[#allocation2 + $0x9e] sm:$0x1] %vm344, %v1471
          %1516 = vst.msk [vmem:[#allocation2 + $0xae] sm:$0x1] %vm344, %v1472
          %1517 = vst.msk [vmem:[#allocation2 + $0xbe] sm:$0x1] %vm344, %v1473
          %1518 = vst.msk [vmem:[#allocation2 + $0xce] sm:$0x1] %vm344, %v1474
          %1519 = vst.msk [vmem:[#allocation2 + $0xde] sm:$0x1] %vm344, %v1475
          %1520 = vst.msk [vmem:[#allocation2 + $0xee] sm:$0x1] %vm344, %v1476
          %1521 = vst.msk [vmem:[#allocation2 + $0xfe] sm:$0x1] %vm344, %v1477
          %1522 = vst.msk [vmem:[#allocation2 + $0x10e] sm:$0x1] %vm344, %v1390
          %1523 = vst.msk [vmem:[#allocation2 + $0x11e] sm:$0x1] %vm344, %v1478
          %1524 = vst.msk [vmem:[#allocation2 + $0x12e] sm:$0x1] %vm344, %v1479
          %1525 = vst.msk [vmem:[#allocation2 + $0x13e] sm:$0x1] %vm344, %v1480
          %1526 = vst.msk [vmem:[#allocation2 + $0x14e] sm:$0x1] %vm344, %v1481
          %1527 = vst.msk [vmem:[#allocation2 + $0x15e] sm:$0x1] %vm344, %v1482
          %1528 = vst.msk [vmem:[#allocation2 + $0x16e] sm:$0x1] %vm344, %v1483
          %1529 = vst.msk [vmem:[#allocation2 + $0x17e] sm:$0x1] %vm344, %v1484
          %s1530 = scalar_lea.vmem %s219, 112
          %v1531 = vld [vmem:[%s1530] sm:$0xff]
          %v1532 = vld [vmem:[%s1530 + $0x8] sm:$0xff]
          %v1534 = vsel %vm239, %v1531, 0
          %v1537 = vsel %vm239, %v1532, 0
          %1539 = vmatpush.xpose.msra.mxu0 0.0
          %1540 = vmatpush.xpose.msra.mxu0 0.0
          %1541 = vmatpush.xpose.msra.mxu0 0.0
          %1542 = vmatpush.xpose.msra.mxu0 0.0
          %1543 = vmatpush.xpose.msra.mxu0 0.0
          %1544 = vmatpush.xpose.msra.mxu0 0.0
          %1545 = vmatpush.xpose.msra.mxu0 0.0
          %1546 = vmatpush.xpose.msra.mxu0 0.0
          %1547 = vmatpush.xpose.msra.mxu0 0.0
          %1548 = vmatpush.xpose.msra.mxu0 0.0
          %1549 = vmatpush.xpose.msra.mxu0 0.0
          %1550 = vmatpush.xpose.msra.mxu0 0.0
          %1551 = vmatpush.xpose.msra.mxu0 0.0
          %1552 = vmatpush.xpose.msra.mxu0 0.0
          %1553 = vmatpush.xpose.msra.mxu0 %v1537
          %1554 = vmatpush.xpose.msra.mxu0 %v1534
          %1555 = vmatmul.f32.gmra.mxu0 %v241
          %v1556 = vpop.f32.mrf.mxu0
          %v1557 = vadd.f32 0.0, %v1556
          %1558 = vmatmul.f32.gmra.mxu0 %v244
          %v1559 = vpop.f32.mrf.mxu0
          %v1560 = vadd.f32 0.0, %v1559
          %1561 = vmatmul.f32.gmra.mxu0 %v247
          %v1562 = vpop.f32.mrf.mxu0
          %v1563 = vadd.f32 0.0, %v1562
          %1564 = vmatmul.f32.gmra.mxu0 %v250
          %v1565 = vpop.f32.mrf.mxu0
          %v1566 = vadd.f32 0.0, %v1565
          %1567 = vmatmul.f32.gmra.mxu0 %v253
          %v1568 = vpop.f32.mrf.mxu0
          %v1569 = vadd.f32 0.0, %v1568
          %1570 = vmatmul.f32.gmra.mxu0 %v256
          %v1571 = vpop.f32.mrf.mxu0
          %v1572 = vadd.f32 0.0, %v1571
          %1573 = vdwg.mxu0
          %v1577 = vrot.slane %v1557, 1
          %v1578 = vrot.slane %v1557, 2
          %v1579 = vrot.slane %v1557, 3
          %v1580 = vrot.slane %v1557, 4
          %v1581 = vrot.slane %v1557, 5
          %v1582 = vrot.slane %v1557, 6
          %v1583 = vrot.slane %v1557, 7
          %v1584 = vrot.slane %v1560, 1
          %v1585 = vrot.slane %v1560, 2
          %v1586 = vrot.slane %v1560, 3
          %v1587 = vrot.slane %v1560, 4
          %v1588 = vrot.slane %v1560, 5
          %v1589 = vrot.slane %v1560, 6
          %v1590 = vrot.slane %v1560, 7
          %v1591 = vrot.slane %v1563, 1
          %v1592 = vrot.slane %v1563, 2
          %v1593 = vrot.slane %v1563, 3
          %v1594 = vrot.slane %v1563, 4
          %v1595 = vrot.slane %v1563, 5
          %v1596 = vrot.slane %v1563, 6
          %v1597 = vrot.slane %v1563, 7
          %1619 = vst.msk [vmem:[#allocation2 + $0x7] sm:$0x1] %vm344, %v1557
          %1620 = vst.msk [vmem:[#allocation2 + $0x17] sm:$0x1] %vm344, %v1577
          %1621 = vst.msk [vmem:[#allocation2 + $0x27] sm:$0x1] %vm344, %v1578
          %1622 = vst.msk [vmem:[#allocation2 + $0x37] sm:$0x1] %vm344, %v1579
          %1623 = vst.msk [vmem:[#allocation2 + $0x47] sm:$0x1] %vm344, %v1580
          %1624 = vst.msk [vmem:[#allocation2 + $0x57] sm:$0x1] %vm344, %v1581
          %1625 = vst.msk [vmem:[#allocation2 + $0x67] sm:$0x1] %vm344, %v1582
          %1626 = vst.msk [vmem:[#allocation2 + $0x77] sm:$0x1] %vm344, %v1583
          %1627 = vst.msk [vmem:[#allocation2 + $0x87] sm:$0x1] %vm344, %v1560
          %1628 = vst.msk [vmem:[#allocation2 + $0x97] sm:$0x1] %vm344, %v1584
          %1629 = vst.msk [vmem:[#allocation2 + $0xa7] sm:$0x1] %vm344, %v1585
          %1630 = vst.msk [vmem:[#allocation2 + $0xb7] sm:$0x1] %vm344, %v1586
          %1631 = vst.msk [vmem:[#allocation2 + $0xc7] sm:$0x1] %vm344, %v1587
          %1632 = vst.msk [vmem:[#allocation2 + $0xd7] sm:$0x1] %vm344, %v1588
          %1633 = vst.msk [vmem:[#allocation2 + $0xe7] sm:$0x1] %vm344, %v1589
          %1634 = vst.msk [vmem:[#allocation2 + $0xf7] sm:$0x1] %vm344, %v1590
          %1635 = vst.msk [vmem:[#allocation2 + $0x107] sm:$0x1] %vm344, %v1563
          %1636 = vst.msk [vmem:[#allocation2 + $0x117] sm:$0x1] %vm344, %v1591
          %1637 = vst.msk [vmem:[#allocation2 + $0x127] sm:$0x1] %vm344, %v1592
          %1638 = vst.msk [vmem:[#allocation2 + $0x137] sm:$0x1] %vm344, %v1593
          %1639 = vst.msk [vmem:[#allocation2 + $0x147] sm:$0x1] %vm344, %v1594
          %1640 = vst.msk [vmem:[#allocation2 + $0x157] sm:$0x1] %vm344, %v1595
          %1641 = vst.msk [vmem:[#allocation2 + $0x167] sm:$0x1] %vm344, %v1596
          %1642 = vst.msk [vmem:[#allocation2 + $0x177] sm:$0x1] %vm344, %v1597
          %v1646 = vrot.slane %v1566, 1
          %v1647 = vrot.slane %v1566, 2
          %v1648 = vrot.slane %v1566, 3
          %v1649 = vrot.slane %v1566, 4
          %v1650 = vrot.slane %v1566, 5
          %v1651 = vrot.slane %v1566, 6
          %v1652 = vrot.slane %v1566, 7
          %v1653 = vrot.slane %v1569, 1
          %v1654 = vrot.slane %v1569, 2
          %v1655 = vrot.slane %v1569, 3
          %v1656 = vrot.slane %v1569, 4
          %v1657 = vrot.slane %v1569, 5
          %v1658 = vrot.slane %v1569, 6
          %v1659 = vrot.slane %v1569, 7
          %v1660 = vrot.slane %v1572, 1
          %v1661 = vrot.slane %v1572, 2
          %v1662 = vrot.slane %v1572, 3
          %v1663 = vrot.slane %v1572, 4
          %v1664 = vrot.slane %v1572, 5
          %v1665 = vrot.slane %v1572, 6
          %v1666 = vrot.slane %v1572, 7
          %1688 = vst.msk [vmem:[#allocation2 + $0xf] sm:$0x1] %vm344, %v1566
          %1689 = vst.msk [vmem:[#allocation2 + $0x1f] sm:$0x1] %vm344, %v1646
          %1690 = vst.msk [vmem:[#allocation2 + $0x2f] sm:$0x1] %vm344, %v1647
          %1691 = vst.msk [vmem:[#allocation2 + $0x3f] sm:$0x1] %vm344, %v1648
          %1692 = vst.msk [vmem:[#allocation2 + $0x4f] sm:$0x1] %vm344, %v1649
          %1693 = vst.msk [vmem:[#allocation2 + $0x5f] sm:$0x1] %vm344, %v1650
          %1694 = vst.msk [vmem:[#allocation2 + $0x6f] sm:$0x1] %vm344, %v1651
          %1695 = vst.msk [vmem:[#allocation2 + $0x7f] sm:$0x1] %vm344, %v1652
          %1696 = vst.msk [vmem:[#allocation2 + $0x8f] sm:$0x1] %vm344, %v1569
          %1697 = vst.msk [vmem:[#allocation2 + $0x9f] sm:$0x1] %vm344, %v1653
          %1698 = vst.msk [vmem:[#allocation2 + $0xaf] sm:$0x1] %vm344, %v1654
          %1699 = vst.msk [vmem:[#allocation2 + $0xbf] sm:$0x1] %vm344, %v1655
          %1700 = vst.msk [vmem:[#allocation2 + $0xcf] sm:$0x1] %vm344, %v1656
          %1701 = vst.msk [vmem:[#allocation2 + $0xdf] sm:$0x1] %vm344, %v1657
          %1702 = vst.msk [vmem:[#allocation2 + $0xef] sm:$0x1] %vm344, %v1658
          %1703 = vst.msk [vmem:[#allocation2 + $0xff] sm:$0x1] %vm344, %v1659
          %1704 = vst.msk [vmem:[#allocation2 + $0x10f] sm:$0x1] %vm344, %v1572
          %1705 = vst.msk [vmem:[#allocation2 + $0x11f] sm:$0x1] %vm344, %v1660
          %1706 = vst.msk [vmem:[#allocation2 + $0x12f] sm:$0x1] %vm344, %v1661
          %1707 = vst.msk [vmem:[#allocation2 + $0x13f] sm:$0x1] %vm344, %v1662
          %1708 = vst.msk [vmem:[#allocation2 + $0x14f] sm:$0x1] %vm344, %v1663
          %1709 = vst.msk [vmem:[#allocation2 + $0x15f] sm:$0x1] %vm344, %v1664
          %1710 = vst.msk [vmem:[#allocation2 + $0x16f] sm:$0x1] %vm344, %v1665
          %1711 = vst.msk [vmem:[#allocation2 + $0x17f] sm:$0x1] %vm344, %v1666
          %s1712 = scalar_lea.vmem [#allocation3], 272
          %vm1713 = vcmask 130048
          %1714 = vst.msk [vmem:[%s1712] sm:$0xff] %vm1713, 0.0
          %1715 = vst.msk [vmem:[%s1712 + $0x8] sm:$0xff] %vm1713, 0.0
          %1716 = vst.msk [vmem:[%s1712 + $0x10] sm:$0xff] %vm1713, 0.0
          %1717 = vst.msk [vmem:[%s1712 + $0x18] sm:$0xff] %vm1713, 0.0
          %1718 = vst.msk [vmem:[%s1712 + $0x20] sm:$0xff] %vm1713, 0.0
          %1719 = vst.msk [vmem:[%s1712 + $0x28] sm:$0xff] %vm1713, 0.0
          %1720 = vst.msk [vmem:[%s1712 + $0x30] sm:$0xff] %vm1713, 0.0
          %1721 = vst.msk [vmem:[%s1712 + $0x38] sm:$0xff] %vm1713, 0.0
          %1722 = vst.msk [vmem:[%s1712 + $0x40] sm:$0xff] %vm1713, 0.0
          %1723 = vst.msk [vmem:[%s1712 + $0x48] sm:$0xff] %vm1713, 0.0
          %1724 = vst.msk [vmem:[%s1712 + $0x50] sm:$0xff] %vm1713, 0.0
          %1725 = vst.msk [vmem:[%s1712 + $0x58] sm:$0xff] %vm1713, 0.0
          %1726 = vst.msk [vmem:[%s1712 + $0x60] sm:$0xff] %vm1713, 0.0
          %1727 = vst.msk [vmem:[%s1712 + $0x68] sm:$0xff] %vm1713, 0.0
        $region40: #{tpu_custom_call.1} parent=35 // pred_fallthru
          _
        %s1728 = smul.u32 %s21, 16
        %s1729 = scalar_lea.vmem [#allocation2], %s1728
        %v1730 = vld [vmem:[%s1729] sm:$0xff]
        %v1731 = vld [vmem:[%s1729 + $0x8] sm:$0xff]
        %v1732 = vld [vmem:[%s225] sm:$0xff]
        %v1733 = vld [vmem:[%s225 + $0x8] sm:$0xff]
        %vm1734 = vcmask 130048
        %v1736 = vsel %vm1734, %v1730, 0
        %v1739 = vsel %vm1734, %v1731, 0
        %1741 = vmatpush.msra.mxu0 0.0
        %1742 = vmatpush.msra.mxu0 0.0
        %1743 = vmatpush.msra.mxu0 0.0
        %1744 = vmatpush.msra.mxu0 0.0
        %1745 = vmatpush.msra.mxu0 0.0
        %1746 = vmatpush.msra.mxu0 0.0
        %1747 = vmatpush.msra.mxu0 0.0
        %1748 = vmatpush.msra.mxu0 0.0
        %1749 = vmatpush.msra.mxu0 0.0
        %1750 = vmatpush.msra.mxu0 0.0
        %1751 = vmatpush.msra.mxu0 0.0
        %1752 = vmatpush.msra.mxu0 0.0
        %1753 = vmatpush.msra.mxu0 0.0
        %1754 = vmatpush.msra.mxu0 0.0
        %1755 = vmatpush.msra.mxu0 %v1733
        %1756 = vmatpush.msra.mxu0 %v1732
        %1757 = vmatmul.f32.gmra.mxu0 %v1736
        %v1758 = vpop.f32.mrf.mxu0
        %v1759 = vadd.f32 0.0, %v1758
        %1760 = vmatmul.f32.gmra.mxu0 %v1739
        %v1761 = vpop.f32.mrf.mxu0
        %v1762 = vadd.f32 0.0, %v1761
        %1763 = vdwg.mxu0
        %s1764 = scalar_lea.vmem [#allocation3], %s1728
        %1765 = vst.msk [vmem:[%s1764] sm:$0xff] %vm1734, %v1759
        %1766 = vst.msk [vmem:[%s1764 + $0x8] sm:$0xff] %vm1734, %v1762
        %p1767 = scmp.eq.s32.totalorder %s21, 16
        // Predicated region
        $region41: #{tpu_custom_call.1} parent=35 // pred_check
          %p1768 = pneg %p1767
        $region42: #{tpu_custom_call.1} parent=35 // pred_check_branch
          %1770 = sbr.rel (%p1768) target = $region44
        $region43: #{tpu_custom_call.1} parent=35 // pred_region
          %v1771 = vld [vmem:[%s3] sm:$0xff]
          %v1772 = vld [vmem:[%s3 + $0x8] sm:$0xff]
          %v1773 = vld [vmem:[%s3 + $0x10] sm:$0xff]
          %v1774 = vld [vmem:[%s3 + $0x18] sm:$0xff]
          %v1775 = vld [vmem:[%s3 + $0x20] sm:$0xff]
          %v1776 = vld [vmem:[%s3 + $0x28] sm:$0xff]
          %v1777 = vld [vmem:[#allocation3] sm:$0x1]
          %v1778 = vld [vmem:[#allocation3 + $0x10] sm:$0x1]
          %v1779 = vld [vmem:[#allocation3 + $0x20] sm:$0x1]
          %v1780 = vld [vmem:[#allocation3 + $0x30] sm:$0x1]
          %v1781 = vld [vmem:[#allocation3 + $0x40] sm:$0x1]
          %v1782 = vld [vmem:[#allocation3 + $0x50] sm:$0x1]
          %v1783 = vld [vmem:[#allocation3 + $0x60] sm:$0x1]
          %v1784 = vld [vmem:[#allocation3 + $0x70] sm:$0x1]
          %v1785 = vld [vmem:[#allocation3 + $0x80] sm:$0x1]
          %v1786 = vld [vmem:[#allocation3 + $0x90] sm:$0x1]
          %v1787 = vld [vmem:[#allocation3 + $0xa0] sm:$0x1]
          %v1788 = vld [vmem:[#allocation3 + $0xb0] sm:$0x1]
          %v1789 = vld [vmem:[#allocation3 + $0xc0] sm:$0x1]
          %v1790 = vld [vmem:[#allocation3 + $0xd0] sm:$0x1]
          %v1791 = vld [vmem:[#allocation3 + $0xe0] sm:$0x1]
          %v1792 = vld [vmem:[#allocation3 + $0xf0] sm:$0x1]
          %v1793 = vld [vmem:[#allocation3 + $0x100] sm:$0x1]
          %v1794 = vld [vmem:[#allocation3 + $0x110] sm:$0x1]
          %v1795 = vld [vmem:[#allocation3 + $0x120] sm:$0x1]
          %v1796 = vld [vmem:[#allocation3 + $0x130] sm:$0x1]
          %v1797 = vld [vmem:[#allocation3 + $0x140] sm:$0x1]
          %v1798 = vld [vmem:[#allocation3 + $0x150] sm:$0x1]
          %v1799 = vld [vmem:[#allocation3 + $0x160] sm:$0x1]
          %v1800 = vld [vmem:[#allocation3 + $0x170] sm:$0x1]
          %v1801 = vld [vmem:[#allocation3 + $0x8] sm:$0x1]
          %v1802 = vld [vmem:[#allocation3 + $0x18] sm:$0x1]
          %v1803 = vld [vmem:[#allocation3 + $0x28] sm:$0x1]
          %v1804 = vld [vmem:[#allocation3 + $0x38] sm:$0x1]
          %v1805 = vld [vmem:[#allocation3 + $0x48] sm:$0x1]
          %v1806 = vld [vmem:[#allocation3 + $0x58] sm:$0x1]
          %v1807 = vld [vmem:[#allocation3 + $0x68] sm:$0x1]
          %v1808 = vld [vmem:[#allocation3 + $0x78] sm:$0x1]
          %v1809 = vld [vmem:[#allocation3 + $0x88] sm:$0x1]
          %v1810 = vld [vmem:[#allocation3 + $0x98] sm:$0x1]
          %v1811 = vld [vmem:[#allocation3 + $0xa8] sm:$0x1]
          %v1812 = vld [vmem:[#allocation3 + $0xb8] sm:$0x1]
          %v1813 = vld [vmem:[#allocation3 + $0xc8] sm:$0x1]
          %v1814 = vld [vmem:[#allocation3 + $0xd8] sm:$0x1]
          %v1815 = vld [vmem:[#allocation3 + $0xe8] sm:$0x1]
          %v1816 = vld [vmem:[#allocation3 + $0xf8] sm:$0x1]
          %v1817 = vld [vmem:[#allocation3 + $0x108] sm:$0x1]
          %v1818 = vld [vmem:[#allocation3 + $0x118] sm:$0x1]
          %v1819 = vld [vmem:[#allocation3 + $0x128] sm:$0x1]
          %v1820 = vld [vmem:[#allocation3 + $0x138] sm:$0x1]
          %v1821 = vld [vmem:[#allocation3 + $0x148] sm:$0x1]
          %v1822 = vld [vmem:[#allocation3 + $0x158] sm:$0x1]
          %v1823 = vld [vmem:[#allocation3 + $0x168] sm:$0x1]
          %v1824 = vld [vmem:[#allocation3 + $0x178] sm:$0x1]
          %v1849 = vrot.slane %v1778, 7
          %vm1850 = vcmask 1041409
          %v1851 = vsel %vm1850, %v1849, %v1777
          %v1852 = vrot.slane %v1779, 6
          %vm1853 = vcmask 1042434
          %v1854 = vsel %vm1853, %v1852, %v1851
          %v1855 = vrot.slane %v1780, 5
          %vm1856 = vcmask 1043459
          %v1857 = vsel %vm1856, %v1855, %v1854
          %v1858 = vrot.slane %v1781, 4
          %vm1859 = vcmask 1044484
          %v1860 = vsel %vm1859, %v1858, %v1857
          %v1861 = vrot.slane %v1782, 3
          %vm1862 = vcmask 1045509
          %v1863 = vsel %vm1862, %v1861, %v1860
          %v1864 = vrot.slane %v1783, 2
          %vm1865 = vcmask 1046534
          %v1866 = vsel %vm1865, %v1864, %v1863
          %v1867 = vrot.slane %v1784, 1
          %vm1868 = vcmask 1047559
          %v1869 = vsel %vm1868, %v1867, %v1866
          %v1870 = vrot.slane %v1786, 7
          %v1871 = vsel %vm1850, %v1870, %v1785
          %v1872 = vrot.slane %v1787, 6
          %v1873 = vsel %vm1853, %v1872, %v1871
          %v1874 = vrot.slane %v1788, 5
          %v1875 = vsel %vm1856, %v1874, %v1873
          %v1876 = vrot.slane %v1789, 4
          %v1877 = vsel %vm1859, %v1876, %v1875
          %v1878 = vrot.slane %v1790, 3
          %v1879 = vsel %vm1862, %v1878, %v1877
          %v1880 = vrot.slane %v1791, 2
          %v1881 = vsel %vm1865, %v1880, %v1879
          %v1882 = vrot.slane %v1792, 1
          %v1883 = vsel %vm1868, %v1882, %v1881
          %v1884 = vrot.slane %v1794, 7
          %v1885 = vsel %vm1850, %v1884, %v1793
          %v1886 = vrot.slane %v1795, 6
          %v1887 = vsel %vm1853, %v1886, %v1885
          %v1888 = vrot.slane %v1796, 5
          %v1889 = vsel %vm1856, %v1888, %v1887
          %v1890 = vrot.slane %v1797, 4
          %v1891 = vsel %vm1859, %v1890, %v1889
          %v1892 = vrot.slane %v1798, 3
          %v1893 = vsel %vm1862, %v1892, %v1891
          %v1894 = vrot.slane %v1799, 2
          %v1895 = vsel %vm1865, %v1894, %v1893
          %v1896 = vrot.slane %v1800, 1
          %v1897 = vsel %vm1868, %v1896, %v1895
          %v1925 = vrot.slane %v1802, 7
          %v1926 = vsel %vm1850, %v1925, %v1801
          %v1927 = vrot.slane %v1803, 6
          %v1928 = vsel %vm1853, %v1927, %v1926
          %v1929 = vrot.slane %v1804, 5
          %v1930 = vsel %vm1856, %v1929, %v1928
          %v1931 = vrot.slane %v1805, 4
          %v1932 = vsel %vm1859, %v1931, %v1930
          %v1933 = vrot.slane %v1806, 3
          %v1934 = vsel %vm1862, %v1933, %v1932
          %v1935 = vrot.slane %v1807, 2
          %v1936 = vsel %vm1865, %v1935, %v1934
          %v1937 = vrot.slane %v1808, 1
          %v1938 = vsel %vm1868, %v1937, %v1936
          %v1939 = vrot.slane %v1810, 7
          %v1940 = vsel %vm1850, %v1939, %v1809
          %v1941 = vrot.slane %v1811, 6
          %v1942 = vsel %vm1853, %v1941, %v1940
          %v1943 = vrot.slane %v1812, 5
          %v1944 = vsel %vm1856, %v1943, %v1942
          %v1945 = vrot.slane %v1813, 4
          %v1946 = vsel %vm1859, %v1945, %v1944
          %v1947 = vrot.slane %v1814, 3
          %v1948 = vsel %vm1862, %v1947, %v1946
          %v1949 = vrot.slane %v1815, 2
          %v1950 = vsel %vm1865, %v1949, %v1948
          %v1951 = vrot.slane %v1816, 1
          %v1952 = vsel %vm1868, %v1951, %v1950
          %v1953 = vrot.slane %v1818, 7
          %v1954 = vsel %vm1850, %v1953, %v1817
          %v1955 = vrot.slane %v1819, 6
          %v1956 = vsel %vm1853, %v1955, %v1954
          %v1957 = vrot.slane %v1820, 5
          %v1958 = vsel %vm1856, %v1957, %v1956
          %v1959 = vrot.slane %v1821, 4
          %v1960 = vsel %vm1859, %v1959, %v1958
          %v1961 = vrot.slane %v1822, 3
          %v1962 = vsel %vm1862, %v1961, %v1960
          %v1963 = vrot.slane %v1823, 2
          %v1964 = vsel %vm1865, %v1963, %v1962
          %v1965 = vrot.slane %v1824, 1
          %v1966 = vsel %vm1868, %v1965, %v1964
          %1970 = vxpose.xlu0.b32.start [1/16] %v1869, 128
          %1971 = vxpose.xlu0.b32.cont [2/16] %v1883, 128
          %1972 = vxpose.xlu0.b32.cont [3/16] %v1897, 128
          %1973 = vxpose.xlu0.b32.cont [4/16] %v1938, 128
          %1974 = vxpose.xlu0.b32.cont [5/16] %v1952, 128
          %1975 = vxpose.xlu0.b32.cont [6/16] %v1966, 128
          %1976 = vxpose.xlu0.b32.cont [7/16] 0.0, 128
          %1977 = vxpose.xlu0.b32.cont [8/16] 0.0, 128
          %1978 = vxpose.xlu0.b32.cont [9/16] 0.0, 128
          %1979 = vxpose.xlu0.b32.cont [10/16] 0.0, 128
          %1980 = vxpose.xlu0.b32.cont [11/16] 0.0, 128
          %1981 = vxpose.xlu0.b32.cont [12/16] 0.0, 128
          %1982 = vxpose.xlu0.b32.cont [13/16] 0.0, 128
          %1983 = vxpose.xlu0.b32.cont [14/16] 0.0, 128
          %1984 = vxpose.xlu0.b32.cont [15/16] 0.0, 128
          %1985 = vxpose.xlu0.b32.end [16/16] 0.0, 128
          %v1986 = vpop.trf.xlu0
          %v1987 = vpop.trf.xlu0
          %v1988 = vpop.trf.xlu0
          %v1989 = vpop.trf.xlu0
          %v1990 = vpop.trf.xlu0
          %v1991 = vpop.trf.xlu0
          %v1992 = vpop.trf.xlu0
          %v1993 = vpop.trf.xlu0
          %v1994 = vpop.trf.xlu0
          %v1995 = vpop.trf.xlu0
          %v1996 = vpop.trf.xlu0
          %v1997 = vpop.trf.xlu0
          %v1998 = vpop.trf.xlu0
          %v1999 = vpop.trf.xlu0
          %v2000 = vpop.trf.xlu0
          %v2001 = vpop.trf.xlu0
          %vm2002 = vcmask 392192
          %v2004 = vsel %vm2002, %v1986, 0
          %v2007 = vsel %vm2002, %v1987, 0
          %2009 = vmatpush.msra.mxu0 0.0
          %2010 = vmatpush.msra.mxu0 0.0
          %2011 = vmatpush.msra.mxu0 0.0
          %2012 = vmatpush.msra.mxu0 0.0
          %2013 = vmatpush.msra.mxu0 0.0
          %2014 = vmatpush.msra.mxu0 0.0
          %2015 = vmatpush.msra.mxu0 0.0
          %2016 = vmatpush.msra.mxu0 0.0
          %2017 = vmatpush.msra.mxu0 0.0
          %2018 = vmatpush.msra.mxu0 0.0
          %2019 = vmatpush.msra.mxu0 %v1776
          %2020 = vmatpush.msra.mxu0 %v1775
          %2021 = vmatpush.msra.mxu0 %v1774
          %2022 = vmatpush.msra.mxu0 %v1773
          %2023 = vmatpush.msra.mxu0 %v1772
          %2024 = vmatpush.msra.mxu0 %v1771
          %2025 = vmatmul.f32.gmra.mxu0 %v2004
          %v2026 = vpop.f32.mrf.mxu0
          %v2027 = vadd.f32 0.0, %v2026
          %2028 = vmatmul.f32.gmra.mxu0 %v2007
          %v2029 = vpop.f32.mrf.mxu0
          %v2030 = vadd.f32 0.0, %v2029
          %2031 = vdwg.mxu0
          %vm2032 = vcmask 261120
          %2033 = vst.msk [vmem:[#allocation4] sm:$0xff] %vm2032, %v2027
          %2034 = vst.msk [vmem:[#allocation4 + $0x8] sm:$0xff] %vm2032, %v2030
          %v2035 = vld [vmem:[#allocation3 + $0x1] sm:$0x1]
          %v2036 = vld [vmem:[#allocation3 + $0x11] sm:$0x1]
          %v2037 = vld [vmem:[#allocation3 + $0x21] sm:$0x1]
          %v2038 = vld [vmem:[#allocation3 + $0x31] sm:$0x1]
          %v2039 = vld [vmem:[#allocation3 + $0x41] sm:$0x1]
          %v2040 = vld [vmem:[#allocation3 + $0x51] sm:$0x1]
          %v2041 = vld [vmem:[#allocation3 + $0x61] sm:$0x1]
          %v2042 = vld [vmem:[#allocation3 + $0x71] sm:$0x1]
          %v2043 = vld [vmem:[#allocation3 + $0x81] sm:$0x1]
          %v2044 = vld [vmem:[#allocation3 + $0x91] sm:$0x1]
          %v2045 = vld [vmem:[#allocation3 + $0xa1] sm:$0x1]
          %v2046 = vld [vmem:[#allocation3 + $0xb1] sm:$0x1]
          %v2047 = vld [vmem:[#allocation3 + $0xc1] sm:$0x1]
          %v2048 = vld [vmem:[#allocation3 + $0xd1] sm:$0x1]
          %v2049 = vld [vmem:[#allocation3 + $0xe1] sm:$0x1]
          %v2050 = vld [vmem:[#allocation3 + $0xf1] sm:$0x1]
          %v2051 = vld [vmem:[#allocation3 + $0x101] sm:$0x1]
          %v2052 = vld [vmem:[#allocation3 + $0x111] sm:$0x1]
          %v2053 = vld [vmem:[#allocation3 + $0x121] sm:$0x1]
          %v2054 = vld [vmem:[#allocation3 + $0x131] sm:$0x1]
          %v2055 = vld [vmem:[#allocation3 + $0x141] sm:$0x1]
          %v2056 = vld [vmem:[#allocation3 + $0x151] sm:$0x1]
          %v2057 = vld [vmem:[#allocation3 + $0x161] sm:$0x1]
          %v2058 = vld [vmem:[#allocation3 + $0x171] sm:$0x1]
          %v2059 = vld [vmem:[#allocation3 + $0x9] sm:$0x1]
          %v2060 = vld [vmem:[#allocation3 + $0x19] sm:$0x1]
          %v2061 = vld [vmem:[#allocation3 + $0x29] sm:$0x1]
          %v2062 = vld [vmem:[#allocation3 + $0x39] sm:$0x1]
          %v2063 = vld [vmem:[#allocation3 + $0x49] sm:$0x1]
          %v2064 = vld [vmem:[#allocation3 + $0x59] sm:$0x1]
          %v2065 = vld [vmem:[#allocation3 + $0x69] sm:$0x1]
          %v2066 = vld [vmem:[#allocation3 + $0x79] sm:$0x1]
          %v2067 = vld [vmem:[#allocation3 + $0x89] sm:$0x1]
          %v2068 = vld [vmem:[#allocation3 + $0x99] sm:$0x1]
          %v2069 = vld [vmem:[#allocation3 + $0xa9] sm:$0x1]
          %v2070 = vld [vmem:[#allocation3 + $0xb9] sm:$0x1]
          %v2071 = vld [vmem:[#allocation3 + $0xc9] sm:$0x1]
          %v2072 = vld [vmem:[#allocation3 + $0xd9] sm:$0x1]
          %v2073 = vld [vmem:[#allocation3 + $0xe9] sm:$0x1]
          %v2074 = vld [vmem:[#allocation3 + $0xf9] sm:$0x1]
          %v2075 = vld [vmem:[#allocation3 + $0x109] sm:$0x1]
          %v2076 = vld [vmem:[#allocation3 + $0x119] sm:$0x1]
          %v2077 = vld [vmem:[#allocation3 + $0x129] sm:$0x1]
          %v2078 = vld [vmem:[#allocation3 + $0x139] sm:$0x1]
          %v2079 = vld [vmem:[#allocation3 + $0x149] sm:$0x1]
          %v2080 = vld [vmem:[#allocation3 + $0x159] sm:$0x1]
          %v2081 = vld [vmem:[#allocation3 + $0x169] sm:$0x1]
          %v2082 = vld [vmem:[#allocation3 + $0x179] sm:$0x1]
          %v2107 = vrot.slane %v2036, 7
          %v2108 = vsel %vm1850, %v2107, %v2035
          %v2109 = vrot.slane %v2037, 6
          %v2110 = vsel %vm1853, %v2109, %v2108
          %v2111 = vrot.slane %v2038, 5
          %v2112 = vsel %vm1856, %v2111, %v2110
          %v2113 = vrot.slane %v2039, 4
          %v2114 = vsel %vm1859, %v2113, %v2112
          %v2115 = vrot.slane %v2040, 3
          %v2116 = vsel %vm1862, %v2115, %v2114
          %v2117 = vrot.slane %v2041, 2
          %v2118 = vsel %vm1865, %v2117, %v2116
          %v2119 = vrot.slane %v2042, 1
          %v2120 = vsel %vm1868, %v2119, %v2118
          %v2121 = vrot.slane %v2044, 7
          %v2122 = vsel %vm1850, %v2121, %v2043
          %v2123 = vrot.slane %v2045, 6
          %v2124 = vsel %vm1853, %v2123, %v2122
          %v2125 = vrot.slane %v2046, 5
          %v2126 = vsel %vm1856, %v2125, %v2124
          %v2127 = vrot.slane %v2047, 4
          %v2128 = vsel %vm1859, %v2127, %v2126
          %v2129 = vrot.slane %v2048, 3
          %v2130 = vsel %vm1862, %v2129, %v2128
          %v2131 = vrot.slane %v2049, 2
          %v2132 = vsel %vm1865, %v2131, %v2130
          %v2133 = vrot.slane %v2050, 1
          %v2134 = vsel %vm1868, %v2133, %v2132
          %v2135 = vrot.slane %v2052, 7
          %v2136 = vsel %vm1850, %v2135, %v2051
          %v2137 = vrot.slane %v2053, 6
          %v2138 = vsel %vm1853, %v2137, %v2136
          %v2139 = vrot.slane %v2054, 5
          %v2140 = vsel %vm1856, %v2139, %v2138
          %v2141 = vrot.slane %v2055, 4
          %v2142 = vsel %vm1859, %v2141, %v2140
          %v2143 = vrot.slane %v2056, 3
          %v2144 = vsel %vm1862, %v2143, %v2142
          %v2145 = vrot.slane %v2057, 2
          %v2146 = vsel %vm1865, %v2145, %v2144
          %v2147 = vrot.slane %v2058, 1
          %v2148 = vsel %vm1868, %v2147, %v2146
          %v2176 = vrot.slane %v2060, 7
          %v2177 = vsel %vm1850, %v2176, %v2059
          %v2178 = vrot.slane %v2061, 6
          %v2179 = vsel %vm1853, %v2178, %v2177
          %v2180 = vrot.slane %v2062, 5
          %v2181 = vsel %vm1856, %v2180, %v2179
          %v2182 = vrot.slane %v2063, 4
          %v2183 = vsel %vm1859, %v2182, %v2181
          %v2184 = vrot.slane %v2064, 3
          %v2185 = vsel %vm1862, %v2184, %v2183
          %v2186 = vrot.slane %v2065, 2
          %v2187 = vsel %vm1865, %v2186, %v2185
          %v2188 = vrot.slane %v2066, 1
          %v2189 = vsel %vm1868, %v2188, %v2187
          %v2190 = vrot.slane %v2068, 7
          %v2191 = vsel %vm1850, %v2190, %v2067
          %v2192 = vrot.slane %v2069, 6
          %v2193 = vsel %vm1853, %v2192, %v2191
          %v2194 = vrot.slane %v2070, 5
          %v2195 = vsel %vm1856, %v2194, %v2193
          %v2196 = vrot.slane %v2071, 4
          %v2197 = vsel %vm1859, %v2196, %v2195
          %v2198 = vrot.slane %v2072, 3
          %v2199 = vsel %vm1862, %v2198, %v2197
          %v2200 = vrot.slane %v2073, 2
          %v2201 = vsel %vm1865, %v2200, %v2199
          %v2202 = vrot.slane %v2074, 1
          %v2203 = vsel %vm1868, %v2202, %v2201
          %v2204 = vrot.slane %v2076, 7
          %v2205 = vsel %vm1850, %v2204, %v2075
          %v2206 = vrot.slane %v2077, 6
          %v2207 = vsel %vm1853, %v2206, %v2205
          %v2208 = vrot.slane %v2078, 5
          %v2209 = vsel %vm1856, %v2208, %v2207
          %v2210 = vrot.slane %v2079, 4
          %v2211 = vsel %vm1859, %v2210, %v2209
          %v2212 = vrot.slane %v2080, 3
          %v2213 = vsel %vm1862, %v2212, %v2211
          %v2214 = vrot.slane %v2081, 2
          %v2215 = vsel %vm1865, %v2214, %v2213
          %v2216 = vrot.slane %v2082, 1
          %v2217 = vsel %vm1868, %v2216, %v2215
          %2221 = vxpose.xlu0.b32.start [1/16] %v2120, 128
          %2222 = vxpose.xlu0.b32.cont [2/16] %v2134, 128
          %2223 = vxpose.xlu0.b32.cont [3/16] %v2148, 128
          %2224 = vxpose.xlu0.b32.cont [4/16] %v2189, 128
          %2225 = vxpose.xlu0.b32.cont [5/16] %v2203, 128
          %2226 = vxpose.xlu0.b32.cont [6/16] %v2217, 128
          %2227 = vxpose.xlu0.b32.cont [7/16] 0.0, 128
          %2228 = vxpose.xlu0.b32.cont [8/16] 0.0, 128
          %2229 = vxpose.xlu0.b32.cont [9/16] 0.0, 128
          %2230 = vxpose.xlu0.b32.cont [10/16] 0.0, 128
          %2231 = vxpose.xlu0.b32.cont [11/16] 0.0, 128
          %2232 = vxpose.xlu0.b32.cont [12/16] 0.0, 128
          %2233 = vxpose.xlu0.b32.cont [13/16] 0.0, 128
          %2234 = vxpose.xlu0.b32.cont [14/16] 0.0, 128
          %2235 = vxpose.xlu0.b32.cont [15/16] 0.0, 128
          %2236 = vxpose.xlu0.b32.end [16/16] 0.0, 128
          %v2237 = vpop.trf.xlu0
          %v2238 = vpop.trf.xlu0
          %v2239 = vpop.trf.xlu0
          %v2240 = vpop.trf.xlu0
          %v2241 = vpop.trf.xlu0
          %v2242 = vpop.trf.xlu0
          %v2243 = vpop.trf.xlu0
          %v2244 = vpop.trf.xlu0
          %v2245 = vpop.trf.xlu0
          %v2246 = vpop.trf.xlu0
          %v2247 = vpop.trf.xlu0
          %v2248 = vpop.trf.xlu0
          %v2249 = vpop.trf.xlu0
          %v2250 = vpop.trf.xlu0
          %v2251 = vpop.trf.xlu0
          %v2252 = vpop.trf.xlu0
          %v2254 = vsel %vm2002, %v2237, 0
          %v2257 = vsel %vm2002, %v2238, 0
          %2259 = vmatpush.msra.mxu0 0.0
          %2260 = vmatpush.msra.mxu0 0.0
          %2261 = vmatpush.msra.mxu0 0.0
          %2262 = vmatpush.msra.mxu0 0.0
          %2263 = vmatpush.msra.mxu0 0.0
          %2264 = vmatpush.msra.mxu0 0.0
          %2265 = vmatpush.msra.mxu0 0.0
          %2266 = vmatpush.msra.mxu0 0.0
          %2267 = vmatpush.msra.mxu0 0.0
          %2268 = vmatpush.msra.mxu0 0.0
          %2269 = vmatpush.msra.mxu0 %v1776
          %2270 = vmatpush.msra.mxu0 %v1775
          %2271 = vmatpush.msra.mxu0 %v1774
          %2272 = vmatpush.msra.mxu0 %v1773
          %2273 = vmatpush.msra.mxu0 %v1772
          %2274 = vmatpush.msra.mxu0 %v1771
          %2275 = vmatmul.f32.gmra.mxu0 %v2254
          %v2276 = vpop.f32.mrf.mxu0
          %v2277 = vadd.f32 0.0, %v2276
          %2278 = vmatmul.f32.gmra.mxu0 %v2257
          %v2279 = vpop.f32.mrf.mxu0
          %v2280 = vadd.f32 0.0, %v2279
          %2281 = vdwg.mxu0
          %s2282 = scalar_lea.vmem [#allocation4], 16
          %2283 = vst.msk [vmem:[%s2282] sm:$0xff] %vm2032, %v2277
          %2284 = vst.msk [vmem:[%s2282 + $0x8] sm:$0xff] %vm2032, %v2280
          %v2285 = vld [vmem:[#allocation3 + $0x2] sm:$0x1]
          %v2286 = vld [vmem:[#allocation3 + $0x12] sm:$0x1]
          %v2287 = vld [vmem:[#allocation3 + $0x22] sm:$0x1]
          %v2288 = vld [vmem:[#allocation3 + $0x32] sm:$0x1]
          %v2289 = vld [vmem:[#allocation3 + $0x42] sm:$0x1]
          %v2290 = vld [vmem:[#allocation3 + $0x52] sm:$0x1]
          %v2291 = vld [vmem:[#allocation3 + $0x62] sm:$0x1]
          %v2292 = vld [vmem:[#allocation3 + $0x72] sm:$0x1]
          %v2293 = vld [vmem:[#allocation3 + $0x82] sm:$0x1]
          %v2294 = vld [vmem:[#allocation3 + $0x92] sm:$0x1]
          %v2295 = vld [vmem:[#allocation3 + $0xa2] sm:$0x1]
          %v2296 = vld [vmem:[#allocation3 + $0xb2] sm:$0x1]
          %v2297 = vld [vmem:[#allocation3 + $0xc2] sm:$0x1]
          %v2298 = vld [vmem:[#allocation3 + $0xd2] sm:$0x1]
          %v2299 = vld [vmem:[#allocation3 + $0xe2] sm:$0x1]
          %v2300 = vld [vmem:[#allocation3 + $0xf2] sm:$0x1]
          %v2301 = vld [vmem:[#allocation3 + $0x102] sm:$0x1]
          %v2302 = vld [vmem:[#allocation3 + $0x112] sm:$0x1]
          %v2303 = vld [vmem:[#allocation3 + $0x122] sm:$0x1]
          %v2304 = vld [vmem:[#allocation3 + $0x132] sm:$0x1]
          %v2305 = vld [vmem:[#allocation3 + $0x142] sm:$0x1]
          %v2306 = vld [vmem:[#allocation3 + $0x152] sm:$0x1]
          %v2307 = vld [vmem:[#allocation3 + $0x162] sm:$0x1]
          %v2308 = vld [vmem:[#allocation3 + $0x172] sm:$0x1]
          %v2309 = vld [vmem:[#allocation3 + $0xa] sm:$0x1]
          %v2310 = vld [vmem:[#allocation3 + $0x1a] sm:$0x1]
          %v2311 = vld [vmem:[#allocation3 + $0x2a] sm:$0x1]
          %v2312 = vld [vmem:[#allocation3 + $0x3a] sm:$0x1]
          %v2313 = vld [vmem:[#allocation3 + $0x4a] sm:$0x1]
          %v2314 = vld [vmem:[#allocation3 + $0x5a] sm:$0x1]
          %v2315 = vld [vmem:[#allocation3 + $0x6a] sm:$0x1]
          %v2316 = vld [vmem:[#allocation3 + $0x7a] sm:$0x1]
          %v2317 = vld [vmem:[#allocation3 + $0x8a] sm:$0x1]
          %v2318 = vld [vmem:[#allocation3 + $0x9a] sm:$0x1]
          %v2319 = vld [vmem:[#allocation3 + $0xaa] sm:$0x1]
          %v2320 = vld [vmem:[#allocation3 + $0xba] sm:$0x1]
          %v2321 = vld [vmem:[#allocation3 + $0xca] sm:$0x1]
          %v2322 = vld [vmem:[#allocation3 + $0xda] sm:$0x1]
          %v2323 = vld [vmem:[#allocation3 + $0xea] sm:$0x1]
          %v2324 = vld [vmem:[#allocation3 + $0xfa] sm:$0x1]
          %v2325 = vld [vmem:[#allocation3 + $0x10a] sm:$0x1]
          %v2326 = vld [vmem:[#allocation3 + $0x11a] sm:$0x1]
          %v2327 = vld [vmem:[#allocation3 + $0x12a] sm:$0x1]
          %v2328 = vld [vmem:[#allocation3 + $0x13a] sm:$0x1]
          %v2329 = vld [vmem:[#allocation3 + $0x14a] sm:$0x1]
          %v2330 = vld [vmem:[#allocation3 + $0x15a] sm:$0x1]
          %v2331 = vld [vmem:[#allocation3 + $0x16a] sm:$0x1]
          %v2332 = vld [vmem:[#allocation3 + $0x17a] sm:$0x1]
          %v2357 = vrot.slane %v2286, 7
          %v2358 = vsel %vm1850, %v2357, %v2285
          %v2359 = vrot.slane %v2287, 6
          %v2360 = vsel %vm1853, %v2359, %v2358
          %v2361 = vrot.slane %v2288, 5
          %v2362 = vsel %vm1856, %v2361, %v2360
          %v2363 = vrot.slane %v2289, 4
          %v2364 = vsel %vm1859, %v2363, %v2362
          %v2365 = vrot.slane %v2290, 3
          %v2366 = vsel %vm1862, %v2365, %v2364
          %v2367 = vrot.slane %v2291, 2
          %v2368 = vsel %vm1865, %v2367, %v2366
          %v2369 = vrot.slane %v2292, 1
          %v2370 = vsel %vm1868, %v2369, %v2368
          %v2371 = vrot.slane %v2294, 7
          %v2372 = vsel %vm1850, %v2371, %v2293
          %v2373 = vrot.slane %v2295, 6
          %v2374 = vsel %vm1853, %v2373, %v2372
          %v2375 = vrot.slane %v2296, 5
          %v2376 = vsel %vm1856, %v2375, %v2374
          %v2377 = vrot.slane %v2297, 4
          %v2378 = vsel %vm1859, %v2377, %v2376
          %v2379 = vrot.slane %v2298, 3
          %v2380 = vsel %vm1862, %v2379, %v2378
          %v2381 = vrot.slane %v2299, 2
          %v2382 = vsel %vm1865, %v2381, %v2380
          %v2383 = vrot.slane %v2300, 1
          %v2384 = vsel %vm1868, %v2383, %v2382
          %v2385 = vrot.slane %v2302, 7
          %v2386 = vsel %vm1850, %v2385, %v2301
          %v2387 = vrot.slane %v2303, 6
          %v2388 = vsel %vm1853, %v2387, %v2386
          %v2389 = vrot.slane %v2304, 5
          %v2390 = vsel %vm1856, %v2389, %v2388
          %v2391 = vrot.slane %v2305, 4
          %v2392 = vsel %vm1859, %v2391, %v2390
          %v2393 = vrot.slane %v2306, 3
          %v2394 = vsel %vm1862, %v2393, %v2392
          %v2395 = vrot.slane %v2307, 2
          %v2396 = vsel %vm1865, %v2395, %v2394
          %v2397 = vrot.slane %v2308, 1
          %v2398 = vsel %vm1868, %v2397, %v2396
          %v2426 = vrot.slane %v2310, 7
          %v2427 = vsel %vm1850, %v2426, %v2309
          %v2428 = vrot.slane %v2311, 6
          %v2429 = vsel %vm1853, %v2428, %v2427
          %v2430 = vrot.slane %v2312, 5
          %v2431 = vsel %vm1856, %v2430, %v2429
          %v2432 = vrot.slane %v2313, 4
          %v2433 = vsel %vm1859, %v2432, %v2431
          %v2434 = vrot.slane %v2314, 3
          %v2435 = vsel %vm1862, %v2434, %v2433
          %v2436 = vrot.slane %v2315, 2
          %v2437 = vsel %vm1865, %v2436, %v2435
          %v2438 = vrot.slane %v2316, 1
          %v2439 = vsel %vm1868, %v2438, %v2437
          %v2440 = vrot.slane %v2318, 7
          %v2441 = vsel %vm1850, %v2440, %v2317
          %v2442 = vrot.slane %v2319, 6
          %v2443 = vsel %vm1853, %v2442, %v2441
          %v2444 = vrot.slane %v2320, 5
          %v2445 = vsel %vm1856, %v2444, %v2443
          %v2446 = vrot.slane %v2321, 4
          %v2447 = vsel %vm1859, %v2446, %v2445
          %v2448 = vrot.slane %v2322, 3
          %v2449 = vsel %vm1862, %v2448, %v2447
          %v2450 = vrot.slane %v2323, 2
          %v2451 = vsel %vm1865, %v2450, %v2449
          %v2452 = vrot.slane %v2324, 1
          %v2453 = vsel %vm1868, %v2452, %v2451
          %v2454 = vrot.slane %v2326, 7
          %v2455 = vsel %vm1850, %v2454, %v2325
          %v2456 = vrot.slane %v2327, 6
          %v2457 = vsel %vm1853, %v2456, %v2455
          %v2458 = vrot.slane %v2328, 5
          %v2459 = vsel %vm1856, %v2458, %v2457
          %v2460 = vrot.slane %v2329, 4
          %v2461 = vsel %vm1859, %v2460, %v2459
          %v2462 = vrot.slane %v2330, 3
          %v2463 = vsel %vm1862, %v2462, %v2461
          %v2464 = vrot.slane %v2331, 2
          %v2465 = vsel %vm1865, %v2464, %v2463
          %v2466 = vrot.slane %v2332, 1
          %v2467 = vsel %vm1868, %v2466, %v2465
          %2471 = vxpose.xlu0.b32.start [1/16] %v2370, 128
          %2472 = vxpose.xlu0.b32.cont [2/16] %v2384, 128
          %2473 = vxpose.xlu0.b32.cont [3/16] %v2398, 128
          %2474 = vxpose.xlu0.b32.cont [4/16] %v2439, 128
          %2475 = vxpose.xlu0.b32.cont [5/16] %v2453, 128
          %2476 = vxpose.xlu0.b32.cont [6/16] %v2467, 128
          %2477 = vxpose.xlu0.b32.cont [7/16] 0.0, 128
          %2478 = vxpose.xlu0.b32.cont [8/16] 0.0, 128
          %2479 = vxpose.xlu0.b32.cont [9/16] 0.0, 128
          %2480 = vxpose.xlu0.b32.cont [10/16] 0.0, 128
          %2481 = vxpose.xlu0.b32.cont [11/16] 0.0, 128
          %2482 = vxpose.xlu0.b32.cont [12/16] 0.0, 128
          %2483 = vxpose.xlu0.b32.cont [13/16] 0.0, 128
          %2484 = vxpose.xlu0.b32.cont [14/16] 0.0, 128
          %2485 = vxpose.xlu0.b32.cont [15/16] 0.0, 128
          %2486 = vxpose.xlu0.b32.end [16/16] 0.0, 128
          %v2487 = vpop.trf.xlu0
          %v2488 = vpop.trf.xlu0
          %v2489 = vpop.trf.xlu0
          %v2490 = vpop.trf.xlu0
          %v2491 = vpop.trf.xlu0
          %v2492 = vpop.trf.xlu0
          %v2493 = vpop.trf.xlu0
          %v2494 = vpop.trf.xlu0
          %v2495 = vpop.trf.xlu0
          %v2496 = vpop.trf.xlu0
          %v2497 = vpop.trf.xlu0
          %v2498 = vpop.trf.xlu0
          %v2499 = vpop.trf.xlu0
          %v2500 = vpop.trf.xlu0
          %v2501 = vpop.trf.xlu0
          %v2502 = vpop.trf.xlu0
          %v2504 = vsel %vm2002, %v2487, 0
          %v2507 = vsel %vm2002, %v2488, 0
          %2509 = vmatpush.msra.mxu0 0.0
          %2510 = vmatpush.msra.mxu0 0.0
          %2511 = vmatpush.msra.mxu0 0.0
          %2512 = vmatpush.msra.mxu0 0.0
          %2513 = vmatpush.msra.mxu0 0.0
          %2514 = vmatpush.msra.mxu0 0.0
          %2515 = vmatpush.msra.mxu0 0.0
          %2516 = vmatpush.msra.mxu0 0.0
          %2517 = vmatpush.msra.mxu0 0.0
          %2518 = vmatpush.msra.mxu0 0.0
          %2519 = vmatpush.msra.mxu0 %v1776
          %2520 = vmatpush.msra.mxu0 %v1775
          %2521 = vmatpush.msra.mxu0 %v1774
          %2522 = vmatpush.msra.mxu0 %v1773
          %2523 = vmatpush.msra.mxu0 %v1772
          %2524 = vmatpush.msra.mxu0 %v1771
          %2525 = vmatmul.f32.gmra.mxu0 %v2504
          %v2526 = vpop.f32.mrf.mxu0
          %v2527 = vadd.f32 0.0, %v2526
          %2528 = vmatmul.f32.gmra.mxu0 %v2507
          %v2529 = vpop.f32.mrf.mxu0
          %v2530 = vadd.f32 0.0, %v2529
          %2531 = vdwg.mxu0
          %s2532 = scalar_lea.vmem [#allocation4], 32
          %2533 = vst.msk [vmem:[%s2532] sm:$0xff] %vm2032, %v2527
          %2534 = vst.msk [vmem:[%s2532 + $0x8] sm:$0xff] %vm2032, %v2530
          %v2535 = vld [vmem:[#allocation3 + $0x3] sm:$0x1]
          %v2536 = vld [vmem:[#allocation3 + $0x13] sm:$0x1]
          %v2537 = vld [vmem:[#allocation3 + $0x23] sm:$0x1]
          %v2538 = vld [vmem:[#allocation3 + $0x33] sm:$0x1]
          %v2539 = vld [vmem:[#allocation3 + $0x43] sm:$0x1]
          %v2540 = vld [vmem:[#allocation3 + $0x53] sm:$0x1]
          %v2541 = vld [vmem:[#allocation3 + $0x63] sm:$0x1]
          %v2542 = vld [vmem:[#allocation3 + $0x73] sm:$0x1]
          %v2543 = vld [vmem:[#allocation3 + $0x83] sm:$0x1]
          %v2544 = vld [vmem:[#allocation3 + $0x93] sm:$0x1]
          %v2545 = vld [vmem:[#allocation3 + $0xa3] sm:$0x1]
          %v2546 = vld [vmem:[#allocation3 + $0xb3] sm:$0x1]
          %v2547 = vld [vmem:[#allocation3 + $0xc3] sm:$0x1]
          %v2548 = vld [vmem:[#allocation3 + $0xd3] sm:$0x1]
          %v2549 = vld [vmem:[#allocation3 + $0xe3] sm:$0x1]
          %v2550 = vld [vmem:[#allocation3 + $0xf3] sm:$0x1]
          %v2551 = vld [vmem:[#allocation3 + $0x103] sm:$0x1]
          %v2552 = vld [vmem:[#allocation3 + $0x113] sm:$0x1]
          %v2553 = vld [vmem:[#allocation3 + $0x123] sm:$0x1]
          %v2554 = vld [vmem:[#allocation3 + $0x133] sm:$0x1]
          %v2555 = vld [vmem:[#allocation3 + $0x143] sm:$0x1]
          %v2556 = vld [vmem:[#allocation3 + $0x153] sm:$0x1]
          %v2557 = vld [vmem:[#allocation3 + $0x163] sm:$0x1]
          %v2558 = vld [vmem:[#allocation3 + $0x173] sm:$0x1]
          %v2559 = vld [vmem:[#allocation3 + $0xb] sm:$0x1]
          %v2560 = vld [vmem:[#allocation3 + $0x1b] sm:$0x1]
          %v2561 = vld [vmem:[#allocation3 + $0x2b] sm:$0x1]
          %v2562 = vld [vmem:[#allocation3 + $0x3b] sm:$0x1]
          %v2563 = vld [vmem:[#allocation3 + $0x4b] sm:$0x1]
          %v2564 = vld [vmem:[#allocation3 + $0x5b] sm:$0x1]
          %v2565 = vld [vmem:[#allocation3 + $0x6b] sm:$0x1]
          %v2566 = vld [vmem:[#allocation3 + $0x7b] sm:$0x1]
          %v2567 = vld [vmem:[#allocation3 + $0x8b] sm:$0x1]
          %v2568 = vld [vmem:[#allocation3 + $0x9b] sm:$0x1]
          %v2569 = vld [vmem:[#allocation3 + $0xab] sm:$0x1]
          %v2570 = vld [vmem:[#allocation3 + $0xbb] sm:$0x1]
          %v2571 = vld [vmem:[#allocation3 + $0xcb] sm:$0x1]
          %v2572 = vld [vmem:[#allocation3 + $0xdb] sm:$0x1]
          %v2573 = vld [vmem:[#allocation3 + $0xeb] sm:$0x1]
          %v2574 = vld [vmem:[#allocation3 + $0xfb] sm:$0x1]
          %v2575 = vld [vmem:[#allocation3 + $0x10b] sm:$0x1]
          %v2576 = vld [vmem:[#allocation3 + $0x11b] sm:$0x1]
          %v2577 = vld [vmem:[#allocation3 + $0x12b] sm:$0x1]
          %v2578 = vld [vmem:[#allocation3 + $0x13b] sm:$0x1]
          %v2579 = vld [vmem:[#allocation3 + $0x14b] sm:$0x1]
          %v2580 = vld [vmem:[#allocation3 + $0x15b] sm:$0x1]
          %v2581 = vld [vmem:[#allocation3 + $0x16b] sm:$0x1]
          %v2582 = vld [vmem:[#allocation3 + $0x17b] sm:$0x1]
          %v2607 = vrot.slane %v2536, 7
          %v2608 = vsel %vm1850, %v2607, %v2535
          %v2609 = vrot.slane %v2537, 6
          %v2610 = vsel %vm1853, %v2609, %v2608
          %v2611 = vrot.slane %v2538, 5
          %v2612 = vsel %vm1856, %v2611, %v2610
          %v2613 = vrot.slane %v2539, 4
          %v2614 = vsel %vm1859, %v2613, %v2612
          %v2615 = vrot.slane %v2540, 3
          %v2616 = vsel %vm1862, %v2615, %v2614
          %v2617 = vrot.slane %v2541, 2
          %v2618 = vsel %vm1865, %v2617, %v2616
          %v2619 = vrot.slane %v2542, 1
          %v2620 = vsel %vm1868, %v2619, %v2618
          %v2621 = vrot.slane %v2544, 7
          %v2622 = vsel %vm1850, %v2621, %v2543
          %v2623 = vrot.slane %v2545, 6
          %v2624 = vsel %vm1853, %v2623, %v2622
          %v2625 = vrot.slane %v2546, 5
          %v2626 = vsel %vm1856, %v2625, %v2624
          %v2627 = vrot.slane %v2547, 4
          %v2628 = vsel %vm1859, %v2627, %v2626
          %v2629 = vrot.slane %v2548, 3
          %v2630 = vsel %vm1862, %v2629, %v2628
          %v2631 = vrot.slane %v2549, 2
          %v2632 = vsel %vm1865, %v2631, %v2630
          %v2633 = vrot.slane %v2550, 1
          %v2634 = vsel %vm1868, %v2633, %v2632
          %v2635 = vrot.slane %v2552, 7
          %v2636 = vsel %vm1850, %v2635, %v2551
          %v2637 = vrot.slane %v2553, 6
          %v2638 = vsel %vm1853, %v2637, %v2636
          %v2639 = vrot.slane %v2554, 5
          %v2640 = vsel %vm1856, %v2639, %v2638
          %v2641 = vrot.slane %v2555, 4
          %v2642 = vsel %vm1859, %v2641, %v2640
          %v2643 = vrot.slane %v2556, 3
          %v2644 = vsel %vm1862, %v2643, %v2642
          %v2645 = vrot.slane %v2557, 2
          %v2646 = vsel %vm1865, %v2645, %v2644
          %v2647 = vrot.slane %v2558, 1
          %v2648 = vsel %vm1868, %v2647, %v2646
          %v2676 = vrot.slane %v2560, 7
          %v2677 = vsel %vm1850, %v2676, %v2559
          %v2678 = vrot.slane %v2561, 6
          %v2679 = vsel %vm1853, %v2678, %v2677
          %v2680 = vrot.slane %v2562, 5
          %v2681 = vsel %vm1856, %v2680, %v2679
          %v2682 = vrot.slane %v2563, 4
          %v2683 = vsel %vm1859, %v2682, %v2681
          %v2684 = vrot.slane %v2564, 3
          %v2685 = vsel %vm1862, %v2684, %v2683
          %v2686 = vrot.slane %v2565, 2
          %v2687 = vsel %vm1865, %v2686, %v2685
          %v2688 = vrot.slane %v2566, 1
          %v2689 = vsel %vm1868, %v2688, %v2687
          %v2690 = vrot.slane %v2568, 7
          %v2691 = vsel %vm1850, %v2690, %v2567
          %v2692 = vrot.slane %v2569, 6
          %v2693 = vsel %vm1853, %v2692, %v2691
          %v2694 = vrot.slane %v2570, 5
          %v2695 = vsel %vm1856, %v2694, %v2693
          %v2696 = vrot.slane %v2571, 4
          %v2697 = vsel %vm1859, %v2696, %v2695
          %v2698 = vrot.slane %v2572, 3
          %v2699 = vsel %vm1862, %v2698, %v2697
          %v2700 = vrot.slane %v2573, 2
          %v2701 = vsel %vm1865, %v2700, %v2699
          %v2702 = vrot.slane %v2574, 1
          %v2703 = vsel %vm1868, %v2702, %v2701
          %v2704 = vrot.slane %v2576, 7
          %v2705 = vsel %vm1850, %v2704, %v2575
          %v2706 = vrot.slane %v2577, 6
          %v2707 = vsel %vm1853, %v2706, %v2705
          %v2708 = vrot.slane %v2578, 5
          %v2709 = vsel %vm1856, %v2708, %v2707
          %v2710 = vrot.slane %v2579, 4
          %v2711 = vsel %vm1859, %v2710, %v2709
          %v2712 = vrot.slane %v2580, 3
          %v2713 = vsel %vm1862, %v2712, %v2711
          %v2714 = vrot.slane %v2581, 2
          %v2715 = vsel %vm1865, %v2714, %v2713
          %v2716 = vrot.slane %v2582, 1
          %v2717 = vsel %vm1868, %v2716, %v2715
          %2721 = vxpose.xlu0.b32.start [1/16] %v2620, 128
          %2722 = vxpose.xlu0.b32.cont [2/16] %v2634, 128
          %2723 = vxpose.xlu0.b32.cont [3/16] %v2648, 128
          %2724 = vxpose.xlu0.b32.cont [4/16] %v2689, 128
          %2725 = vxpose.xlu0.b32.cont [5/16] %v2703, 128
          %2726 = vxpose.xlu0.b32.cont [6/16] %v2717, 128
          %2727 = vxpose.xlu0.b32.cont [7/16] 0.0, 128
          %2728 = vxpose.xlu0.b32.cont [8/16] 0.0, 128
          %2729 = vxpose.xlu0.b32.cont [9/16] 0.0, 128
          %2730 = vxpose.xlu0.b32.cont [10/16] 0.0, 128
          %2731 = vxpose.xlu0.b32.cont [11/16] 0.0, 128
          %2732 = vxpose.xlu0.b32.cont [12/16] 0.0, 128
          %2733 = vxpose.xlu0.b32.cont [13/16] 0.0, 128
          %2734 = vxpose.xlu0.b32.cont [14/16] 0.0, 128
          %2735 = vxpose.xlu0.b32.cont [15/16] 0.0, 128
          %2736 = vxpose.xlu0.b32.end [16/16] 0.0, 128
          %v2737 = vpop.trf.xlu0
          %v2738 = vpop.trf.xlu0
          %v2739 = vpop.trf.xlu0
          %v2740 = vpop.trf.xlu0
          %v2741 = vpop.trf.xlu0
          %v2742 = vpop.trf.xlu0
          %v2743 = vpop.trf.xlu0
          %v2744 = vpop.trf.xlu0
          %v2745 = vpop.trf.xlu0
          %v2746 = vpop.trf.xlu0
          %v2747 = vpop.trf.xlu0
          %v2748 = vpop.trf.xlu0
          %v2749 = vpop.trf.xlu0
          %v2750 = vpop.trf.xlu0
          %v2751 = vpop.trf.xlu0
          %v2752 = vpop.trf.xlu0
          %v2754 = vsel %vm2002, %v2737, 0
          %v2757 = vsel %vm2002, %v2738, 0
          %2759 = vmatpush.msra.mxu0 0.0
          %2760 = vmatpush.msra.mxu0 0.0
          %2761 = vmatpush.msra.mxu0 0.0
          %2762 = vmatpush.msra.mxu0 0.0
          %2763 = vmatpush.msra.mxu0 0.0
          %2764 = vmatpush.msra.mxu0 0.0
          %2765 = vmatpush.msra.mxu0 0.0
          %2766 = vmatpush.msra.mxu0 0.0
          %2767 = vmatpush.msra.mxu0 0.0
          %2768 = vmatpush.msra.mxu0 0.0
          %2769 = vmatpush.msra.mxu0 %v1776
          %2770 = vmatpush.msra.mxu0 %v1775
          %2771 = vmatpush.msra.mxu0 %v1774
          %2772 = vmatpush.msra.mxu0 %v1773
          %2773 = vmatpush.msra.mxu0 %v1772
          %2774 = vmatpush.msra.mxu0 %v1771
          %2775 = vmatmul.f32.gmra.mxu0 %v2754
          %v2776 = vpop.f32.mrf.mxu0
          %v2777 = vadd.f32 0.0, %v2776
          %2778 = vmatmul.f32.gmra.mxu0 %v2757
          %v2779 = vpop.f32.mrf.mxu0
          %v2780 = vadd.f32 0.0, %v2779
          %2781 = vdwg.mxu0
          %s2782 = scalar_lea.vmem [#allocation4], 48
          %2783 = vst.msk [vmem:[%s2782] sm:$0xff] %vm2032, %v2777
          %2784 = vst.msk [vmem:[%s2782 + $0x8] sm:$0xff] %vm2032, %v2780
          %v2785 = vld [vmem:[#allocation3 + $0x4] sm:$0x1]
          %v2786 = vld [vmem:[#allocation3 + $0x14] sm:$0x1]
          %v2787 = vld [vmem:[#allocation3 + $0x24] sm:$0x1]
          %v2788 = vld [vmem:[#allocation3 + $0x34] sm:$0x1]
          %v2789 = vld [vmem:[#allocation3 + $0x44] sm:$0x1]
          %v2790 = vld [vmem:[#allocation3 + $0x54] sm:$0x1]
          %v2791 = vld [vmem:[#allocation3 + $0x64] sm:$0x1]
          %v2792 = vld [vmem:[#allocation3 + $0x74] sm:$0x1]
          %v2793 = vld [vmem:[#allocation3 + $0x84] sm:$0x1]
          %v2794 = vld [vmem:[#allocation3 + $0x94] sm:$0x1]
          %v2795 = vld [vmem:[#allocation3 + $0xa4] sm:$0x1]
          %v2796 = vld [vmem:[#allocation3 + $0xb4] sm:$0x1]
          %v2797 = vld [vmem:[#allocation3 + $0xc4] sm:$0x1]
          %v2798 = vld [vmem:[#allocation3 + $0xd4] sm:$0x1]
          %v2799 = vld [vmem:[#allocation3 + $0xe4] sm:$0x1]
          %v2800 = vld [vmem:[#allocation3 + $0xf4] sm:$0x1]
          %v2801 = vld [vmem:[#allocation3 + $0x104] sm:$0x1]
          %v2802 = vld [vmem:[#allocation3 + $0x114] sm:$0x1]
          %v2803 = vld [vmem:[#allocation3 + $0x124] sm:$0x1]
          %v2804 = vld [vmem:[#allocation3 + $0x134] sm:$0x1]
          %v2805 = vld [vmem:[#allocation3 + $0x144] sm:$0x1]
          %v2806 = vld [vmem:[#allocation3 + $0x154] sm:$0x1]
          %v2807 = vld [vmem:[#allocation3 + $0x164] sm:$0x1]
          %v2808 = vld [vmem:[#allocation3 + $0x174] sm:$0x1]
          %v2809 = vld [vmem:[#allocation3 + $0xc] sm:$0x1]
          %v2810 = vld [vmem:[#allocation3 + $0x1c] sm:$0x1]
          %v2811 = vld [vmem:[#allocation3 + $0x2c] sm:$0x1]
          %v2812 = vld [vmem:[#allocation3 + $0x3c] sm:$0x1]
          %v2813 = vld [vmem:[#allocation3 + $0x4c] sm:$0x1]
          %v2814 = vld [vmem:[#allocation3 + $0x5c] sm:$0x1]
          %v2815 = vld [vmem:[#allocation3 + $0x6c] sm:$0x1]
          %v2816 = vld [vmem:[#allocation3 + $0x7c] sm:$0x1]
          %v2817 = vld [vmem:[#allocation3 + $0x8c] sm:$0x1]
          %v2818 = vld [vmem:[#allocation3 + $0x9c] sm:$0x1]
          %v2819 = vld [vmem:[#allocation3 + $0xac] sm:$0x1]
          %v2820 = vld [vmem:[#allocation3 + $0xbc] sm:$0x1]
          %v2821 = vld [vmem:[#allocation3 + $0xcc] sm:$0x1]
          %v2822 = vld [vmem:[#allocation3 + $0xdc] sm:$0x1]
          %v2823 = vld [vmem:[#allocation3 + $0xec] sm:$0x1]
          %v2824 = vld [vmem:[#allocation3 + $0xfc] sm:$0x1]
          %v2825 = vld [vmem:[#allocation3 + $0x10c] sm:$0x1]
          %v2826 = vld [vmem:[#allocation3 + $0x11c] sm:$0x1]
          %v2827 = vld [vmem:[#allocation3 + $0x12c] sm:$0x1]
          %v2828 = vld [vmem:[#allocation3 + $0x13c] sm:$0x1]
          %v2829 = vld [vmem:[#allocation3 + $0x14c] sm:$0x1]
          %v2830 = vld [vmem:[#allocation3 + $0x15c] sm:$0x1]
          %v2831 = vld [vmem:[#allocation3 + $0x16c] sm:$0x1]
          %v2832 = vld [vmem:[#allocation3 + $0x17c] sm:$0x1]
          %v2857 = vrot.slane %v2786, 7
          %v2858 = vsel %vm1850, %v2857, %v2785
          %v2859 = vrot.slane %v2787, 6
          %v2860 = vsel %vm1853, %v2859, %v2858
          %v2861 = vrot.slane %v2788, 5
          %v2862 = vsel %vm1856, %v2861, %v2860
          %v2863 = vrot.slane %v2789, 4
          %v2864 = vsel %vm1859, %v2863, %v2862
          %v2865 = vrot.slane %v2790, 3
          %v2866 = vsel %vm1862, %v2865, %v2864
          %v2867 = vrot.slane %v2791, 2
          %v2868 = vsel %vm1865, %v2867, %v2866
          %v2869 = vrot.slane %v2792, 1
          %v2870 = vsel %vm1868, %v2869, %v2868
          %v2871 = vrot.slane %v2794, 7
          %v2872 = vsel %vm1850, %v2871, %v2793
          %v2873 = vrot.slane %v2795, 6
          %v2874 = vsel %vm1853, %v2873, %v2872
          %v2875 = vrot.slane %v2796, 5
          %v2876 = vsel %vm1856, %v2875, %v2874
          %v2877 = vrot.slane %v2797, 4
          %v2878 = vsel %vm1859, %v2877, %v2876
          %v2879 = vrot.slane %v2798, 3
          %v2880 = vsel %vm1862, %v2879, %v2878
          %v2881 = vrot.slane %v2799, 2
          %v2882 = vsel %vm1865, %v2881, %v2880
          %v2883 = vrot.slane %v2800, 1
          %v2884 = vsel %vm1868, %v2883, %v2882
          %v2885 = vrot.slane %v2802, 7
          %v2886 = vsel %vm1850, %v2885, %v2801
          %v2887 = vrot.slane %v2803, 6
          %v2888 = vsel %vm1853, %v2887, %v2886
          %v2889 = vrot.slane %v2804, 5
          %v2890 = vsel %vm1856, %v2889, %v2888
          %v2891 = vrot.slane %v2805, 4
          %v2892 = vsel %vm1859, %v2891, %v2890
          %v2893 = vrot.slane %v2806, 3
          %v2894 = vsel %vm1862, %v2893, %v2892
          %v2895 = vrot.slane %v2807, 2
          %v2896 = vsel %vm1865, %v2895, %v2894
          %v2897 = vrot.slane %v2808, 1
          %v2898 = vsel %vm1868, %v2897, %v2896
          %v2926 = vrot.slane %v2810, 7
          %v2927 = vsel %vm1850, %v2926, %v2809
          %v2928 = vrot.slane %v2811, 6
          %v2929 = vsel %vm1853, %v2928, %v2927
          %v2930 = vrot.slane %v2812, 5
          %v2931 = vsel %vm1856, %v2930, %v2929
          %v2932 = vrot.slane %v2813, 4
          %v2933 = vsel %vm1859, %v2932, %v2931
          %v2934 = vrot.slane %v2814, 3
          %v2935 = vsel %vm1862, %v2934, %v2933
          %v2936 = vrot.slane %v2815, 2
          %v2937 = vsel %vm1865, %v2936, %v2935
          %v2938 = vrot.slane %v2816, 1
          %v2939 = vsel %vm1868, %v2938, %v2937
          %v2940 = vrot.slane %v2818, 7
          %v2941 = vsel %vm1850, %v2940, %v2817
          %v2942 = vrot.slane %v2819, 6
          %v2943 = vsel %vm1853, %v2942, %v2941
          %v2944 = vrot.slane %v2820, 5
          %v2945 = vsel %vm1856, %v2944, %v2943
          %v2946 = vrot.slane %v2821, 4
          %v2947 = vsel %vm1859, %v2946, %v2945
          %v2948 = vrot.slane %v2822, 3
          %v2949 = vsel %vm1862, %v2948, %v2947
          %v2950 = vrot.slane %v2823, 2
          %v2951 = vsel %vm1865, %v2950, %v2949
          %v2952 = vrot.slane %v2824, 1
          %v2953 = vsel %vm1868, %v2952, %v2951
          %v2954 = vrot.slane %v2826, 7
          %v2955 = vsel %vm1850, %v2954, %v2825
          %v2956 = vrot.slane %v2827, 6
          %v2957 = vsel %vm1853, %v2956, %v2955
          %v2958 = vrot.slane %v2828, 5
          %v2959 = vsel %vm1856, %v2958, %v2957
          %v2960 = vrot.slane %v2829, 4
          %v2961 = vsel %vm1859, %v2960, %v2959
          %v2962 = vrot.slane %v2830, 3
          %v2963 = vsel %vm1862, %v2962, %v2961
          %v2964 = vrot.slane %v2831, 2
          %v2965 = vsel %vm1865, %v2964, %v2963
          %v2966 = vrot.slane %v2832, 1
          %v2967 = vsel %vm1868, %v2966, %v2965
          %2971 = vxpose.xlu0.b32.start [1/16] %v2870, 128
          %2972 = vxpose.xlu0.b32.cont [2/16] %v2884, 128
          %2973 = vxpose.xlu0.b32.cont [3/16] %v2898, 128
          %2974 = vxpose.xlu0.b32.cont [4/16] %v2939, 128
          %2975 = vxpose.xlu0.b32.cont [5/16] %v2953, 128
          %2976 = vxpose.xlu0.b32.cont [6/16] %v2967, 128
          %2977 = vxpose.xlu0.b32.cont [7/16] 0.0, 128
          %2978 = vxpose.xlu0.b32.cont [8/16] 0.0, 128
          %2979 = vxpose.xlu0.b32.cont [9/16] 0.0, 128
          %2980 = vxpose.xlu0.b32.cont [10/16] 0.0, 128
          %2981 = vxpose.xlu0.b32.cont [11/16] 0.0, 128
          %2982 = vxpose.xlu0.b32.cont [12/16] 0.0, 128
          %2983 = vxpose.xlu0.b32.cont [13/16] 0.0, 128
          %2984 = vxpose.xlu0.b32.cont [14/16] 0.0, 128
          %2985 = vxpose.xlu0.b32.cont [15/16] 0.0, 128
          %2986 = vxpose.xlu0.b32.end [16/16] 0.0, 128
          %v2987 = vpop.trf.xlu0
          %v2988 = vpop.trf.xlu0
          %v2989 = vpop.trf.xlu0
          %v2990 = vpop.trf.xlu0
          %v2991 = vpop.trf.xlu0
          %v2992 = vpop.trf.xlu0
          %v2993 = vpop.trf.xlu0
          %v2994 = vpop.trf.xlu0
          %v2995 = vpop.trf.xlu0
          %v2996 = vpop.trf.xlu0
          %v2997 = vpop.trf.xlu0
          %v2998 = vpop.trf.xlu0
          %v2999 = vpop.trf.xlu0
          %v3000 = vpop.trf.xlu0
          %v3001 = vpop.trf.xlu0
          %v3002 = vpop.trf.xlu0
          %v3004 = vsel %vm2002, %v2987, 0
          %v3007 = vsel %vm2002, %v2988, 0
          %3009 = vmatpush.msra.mxu0 0.0
          %3010 = vmatpush.msra.mxu0 0.0
          %3011 = vmatpush.msra.mxu0 0.0
          %3012 = vmatpush.msra.mxu0 0.0
          %3013 = vmatpush.msra.mxu0 0.0
          %3014 = vmatpush.msra.mxu0 0.0
          %3015 = vmatpush.msra.mxu0 0.0
          %3016 = vmatpush.msra.mxu0 0.0
          %3017 = vmatpush.msra.mxu0 0.0
          %3018 = vmatpush.msra.mxu0 0.0
          %3019 = vmatpush.msra.mxu0 %v1776
          %3020 = vmatpush.msra.mxu0 %v1775
          %3021 = vmatpush.msra.mxu0 %v1774
          %3022 = vmatpush.msra.mxu0 %v1773
          %3023 = vmatpush.msra.mxu0 %v1772
          %3024 = vmatpush.msra.mxu0 %v1771
          %3025 = vmatmul.f32.gmra.mxu0 %v3004
          %v3026 = vpop.f32.mrf.mxu0
          %v3027 = vadd.f32 0.0, %v3026
          %3028 = vmatmul.f32.gmra.mxu0 %v3007
          %v3029 = vpop.f32.mrf.mxu0
          %v3030 = vadd.f32 0.0, %v3029
          %3031 = vdwg.mxu0
          %s3032 = scalar_lea.vmem [#allocation4], 64
          %3033 = vst.msk [vmem:[%s3032] sm:$0xff] %vm2032, %v3027
          %3034 = vst.msk [vmem:[%s3032 + $0x8] sm:$0xff] %vm2032, %v3030
          %v3035 = vld [vmem:[#allocation3 + $0x5] sm:$0x1]
          %v3036 = vld [vmem:[#allocation3 + $0x15] sm:$0x1]
          %v3037 = vld [vmem:[#allocation3 + $0x25] sm:$0x1]
          %v3038 = vld [vmem:[#allocation3 + $0x35] sm:$0x1]
          %v3039 = vld [vmem:[#allocation3 + $0x45] sm:$0x1]
          %v3040 = vld [vmem:[#allocation3 + $0x55] sm:$0x1]
          %v3041 = vld [vmem:[#allocation3 + $0x65] sm:$0x1]
          %v3042 = vld [vmem:[#allocation3 + $0x75] sm:$0x1]
          %v3043 = vld [vmem:[#allocation3 + $0x85] sm:$0x1]
          %v3044 = vld [vmem:[#allocation3 + $0x95] sm:$0x1]
          %v3045 = vld [vmem:[#allocation3 + $0xa5] sm:$0x1]
          %v3046 = vld [vmem:[#allocation3 + $0xb5] sm:$0x1]
          %v3047 = vld [vmem:[#allocation3 + $0xc5] sm:$0x1]
          %v3048 = vld [vmem:[#allocation3 + $0xd5] sm:$0x1]
          %v3049 = vld [vmem:[#allocation3 + $0xe5] sm:$0x1]
          %v3050 = vld [vmem:[#allocation3 + $0xf5] sm:$0x1]
          %v3051 = vld [vmem:[#allocation3 + $0x105] sm:$0x1]
          %v3052 = vld [vmem:[#allocation3 + $0x115] sm:$0x1]
          %v3053 = vld [vmem:[#allocation3 + $0x125] sm:$0x1]
          %v3054 = vld [vmem:[#allocation3 + $0x135] sm:$0x1]
          %v3055 = vld [vmem:[#allocation3 + $0x145] sm:$0x1]
          %v3056 = vld [vmem:[#allocation3 + $0x155] sm:$0x1]
          %v3057 = vld [vmem:[#allocation3 + $0x165] sm:$0x1]
          %v3058 = vld [vmem:[#allocation3 + $0x175] sm:$0x1]
          %v3059 = vld [vmem:[#allocation3 + $0xd] sm:$0x1]
          %v3060 = vld [vmem:[#allocation3 + $0x1d] sm:$0x1]
          %v3061 = vld [vmem:[#allocation3 + $0x2d] sm:$0x1]
          %v3062 = vld [vmem:[#allocation3 + $0x3d] sm:$0x1]
          %v3063 = vld [vmem:[#allocation3 + $0x4d] sm:$0x1]
          %v3064 = vld [vmem:[#allocation3 + $0x5d] sm:$0x1]
          %v3065 = vld [vmem:[#allocation3 + $0x6d] sm:$0x1]
          %v3066 = vld [vmem:[#allocation3 + $0x7d] sm:$0x1]
          %v3067 = vld [vmem:[#allocation3 + $0x8d] sm:$0x1]
          %v3068 = vld [vmem:[#allocation3 + $0x9d] sm:$0x1]
          %v3069 = vld [vmem:[#allocation3 + $0xad] sm:$0x1]
          %v3070 = vld [vmem:[#allocation3 + $0xbd] sm:$0x1]
          %v3071 = vld [vmem:[#allocation3 + $0xcd] sm:$0x1]
          %v3072 = vld [vmem:[#allocation3 + $0xdd] sm:$0x1]
          %v3073 = vld [vmem:[#allocation3 + $0xed] sm:$0x1]
          %v3074 = vld [vmem:[#allocation3 + $0xfd] sm:$0x1]
          %v3075 = vld [vmem:[#allocation3 + $0x10d] sm:$0x1]
          %v3076 = vld [vmem:[#allocation3 + $0x11d] sm:$0x1]
          %v3077 = vld [vmem:[#allocation3 + $0x12d] sm:$0x1]
          %v3078 = vld [vmem:[#allocation3 + $0x13d] sm:$0x1]
          %v3079 = vld [vmem:[#allocation3 + $0x14d] sm:$0x1]
          %v3080 = vld [vmem:[#allocation3 + $0x15d] sm:$0x1]
          %v3081 = vld [vmem:[#allocation3 + $0x16d] sm:$0x1]
          %v3082 = vld [vmem:[#allocation3 + $0x17d] sm:$0x1]
          %v3107 = vrot.slane %v3036, 7
          %v3108 = vsel %vm1850, %v3107, %v3035
          %v3109 = vrot.slane %v3037, 6
          %v3110 = vsel %vm1853, %v3109, %v3108
          %v3111 = vrot.slane %v3038, 5
          %v3112 = vsel %vm1856, %v3111, %v3110
          %v3113 = vrot.slane %v3039, 4
          %v3114 = vsel %vm1859, %v3113, %v3112
          %v3115 = vrot.slane %v3040, 3
          %v3116 = vsel %vm1862, %v3115, %v3114
          %v3117 = vrot.slane %v3041, 2
          %v3118 = vsel %vm1865, %v3117, %v3116
          %v3119 = vrot.slane %v3042, 1
          %v3120 = vsel %vm1868, %v3119, %v3118
          %v3121 = vrot.slane %v3044, 7
          %v3122 = vsel %vm1850, %v3121, %v3043
          %v3123 = vrot.slane %v3045, 6
          %v3124 = vsel %vm1853, %v3123, %v3122
          %v3125 = vrot.slane %v3046, 5
          %v3126 = vsel %vm1856, %v3125, %v3124
          %v3127 = vrot.slane %v3047, 4
          %v3128 = vsel %vm1859, %v3127, %v3126
          %v3129 = vrot.slane %v3048, 3
          %v3130 = vsel %vm1862, %v3129, %v3128
          %v3131 = vrot.slane %v3049, 2
          %v3132 = vsel %vm1865, %v3131, %v3130
          %v3133 = vrot.slane %v3050, 1
          %v3134 = vsel %vm1868, %v3133, %v3132
          %v3135 = vrot.slane %v3052, 7
          %v3136 = vsel %vm1850, %v3135, %v3051
          %v3137 = vrot.slane %v3053, 6
          %v3138 = vsel %vm1853, %v3137, %v3136
          %v3139 = vrot.slane %v3054, 5
          %v3140 = vsel %vm1856, %v3139, %v3138
          %v3141 = vrot.slane %v3055, 4
          %v3142 = vsel %vm1859, %v3141, %v3140
          %v3143 = vrot.slane %v3056, 3
          %v3144 = vsel %vm1862, %v3143, %v3142
          %v3145 = vrot.slane %v3057, 2
          %v3146 = vsel %vm1865, %v3145, %v3144
          %v3147 = vrot.slane %v3058, 1
          %v3148 = vsel %vm1868, %v3147, %v3146
          %v3176 = vrot.slane %v3060, 7
          %v3177 = vsel %vm1850, %v3176, %v3059
          %v3178 = vrot.slane %v3061, 6
          %v3179 = vsel %vm1853, %v3178, %v3177
          %v3180 = vrot.slane %v3062, 5
          %v3181 = vsel %vm1856, %v3180, %v3179
          %v3182 = vrot.slane %v3063, 4
          %v3183 = vsel %vm1859, %v3182, %v3181
          %v3184 = vrot.slane %v3064, 3
          %v3185 = vsel %vm1862, %v3184, %v3183
          %v3186 = vrot.slane %v3065, 2
          %v3187 = vsel %vm1865, %v3186, %v3185
          %v3188 = vrot.slane %v3066, 1
          %v3189 = vsel %vm1868, %v3188, %v3187
          %v3190 = vrot.slane %v3068, 7
          %v3191 = vsel %vm1850, %v3190, %v3067
          %v3192 = vrot.slane %v3069, 6
          %v3193 = vsel %vm1853, %v3192, %v3191
          %v3194 = vrot.slane %v3070, 5
          %v3195 = vsel %vm1856, %v3194, %v3193
          %v3196 = vrot.slane %v3071, 4
          %v3197 = vsel %vm1859, %v3196, %v3195
          %v3198 = vrot.slane %v3072, 3
          %v3199 = vsel %vm1862, %v3198, %v3197
          %v3200 = vrot.slane %v3073, 2
          %v3201 = vsel %vm1865, %v3200, %v3199
          %v3202 = vrot.slane %v3074, 1
          %v3203 = vsel %vm1868, %v3202, %v3201
          %v3204 = vrot.slane %v3076, 7
          %v3205 = vsel %vm1850, %v3204, %v3075
          %v3206 = vrot.slane %v3077, 6
          %v3207 = vsel %vm1853, %v3206, %v3205
          %v3208 = vrot.slane %v3078, 5
          %v3209 = vsel %vm1856, %v3208, %v3207
          %v3210 = vrot.slane %v3079, 4
          %v3211 = vsel %vm1859, %v3210, %v3209
          %v3212 = vrot.slane %v3080, 3
          %v3213 = vsel %vm1862, %v3212, %v3211
          %v3214 = vrot.slane %v3081, 2
          %v3215 = vsel %vm1865, %v3214, %v3213
          %v3216 = vrot.slane %v3082, 1
          %v3217 = vsel %vm1868, %v3216, %v3215
          %3221 = vxpose.xlu0.b32.start [1/16] %v3120, 128
          %3222 = vxpose.xlu0.b32.cont [2/16] %v3134, 128
          %3223 = vxpose.xlu0.b32.cont [3/16] %v3148, 128
          %3224 = vxpose.xlu0.b32.cont [4/16] %v3189, 128
          %3225 = vxpose.xlu0.b32.cont [5/16] %v3203, 128
          %3226 = vxpose.xlu0.b32.cont [6/16] %v3217, 128
          %3227 = vxpose.xlu0.b32.cont [7/16] 0.0, 128
          %3228 = vxpose.xlu0.b32.cont [8/16] 0.0, 128
          %3229 = vxpose.xlu0.b32.cont [9/16] 0.0, 128
          %3230 = vxpose.xlu0.b32.cont [10/16] 0.0, 128
          %3231 = vxpose.xlu0.b32.cont [11/16] 0.0, 128
          %3232 = vxpose.xlu0.b32.cont [12/16] 0.0, 128
          %3233 = vxpose.xlu0.b32.cont [13/16] 0.0, 128
          %3234 = vxpose.xlu0.b32.cont [14/16] 0.0, 128
          %3235 = vxpose.xlu0.b32.cont [15/16] 0.0, 128
          %3236 = vxpose.xlu0.b32.end [16/16] 0.0, 128
          %v3237 = vpop.trf.xlu0
          %v3238 = vpop.trf.xlu0
          %v3239 = vpop.trf.xlu0
          %v3240 = vpop.trf.xlu0
          %v3241 = vpop.trf.xlu0
          %v3242 = vpop.trf.xlu0
          %v3243 = vpop.trf.xlu0
          %v3244 = vpop.trf.xlu0
          %v3245 = vpop.trf.xlu0
          %v3246 = vpop.trf.xlu0
          %v3247 = vpop.trf.xlu0
          %v3248 = vpop.trf.xlu0
          %v3249 = vpop.trf.xlu0
          %v3250 = vpop.trf.xlu0
          %v3251 = vpop.trf.xlu0
          %v3252 = vpop.trf.xlu0
          %v3254 = vsel %vm2002, %v3237, 0
          %v3257 = vsel %vm2002, %v3238, 0
          %3259 = vmatpush.msra.mxu0 0.0
          %3260 = vmatpush.msra.mxu0 0.0
          %3261 = vmatpush.msra.mxu0 0.0
          %3262 = vmatpush.msra.mxu0 0.0
          %3263 = vmatpush.msra.mxu0 0.0
          %3264 = vmatpush.msra.mxu0 0.0
          %3265 = vmatpush.msra.mxu0 0.0
          %3266 = vmatpush.msra.mxu0 0.0
          %3267 = vmatpush.msra.mxu0 0.0
          %3268 = vmatpush.msra.mxu0 0.0
          %3269 = vmatpush.msra.mxu0 %v1776
          %3270 = vmatpush.msra.mxu0 %v1775
          %3271 = vmatpush.msra.mxu0 %v1774
          %3272 = vmatpush.msra.mxu0 %v1773
          %3273 = vmatpush.msra.mxu0 %v1772
          %3274 = vmatpush.msra.mxu0 %v1771
          %3275 = vmatmul.f32.gmra.mxu0 %v3254
          %v3276 = vpop.f32.mrf.mxu0
          %v3277 = vadd.f32 0.0, %v3276
          %3278 = vmatmul.f32.gmra.mxu0 %v3257
          %v3279 = vpop.f32.mrf.mxu0
          %v3280 = vadd.f32 0.0, %v3279
          %3281 = vdwg.mxu0
          %s3282 = scalar_lea.vmem [#allocation4], 80
          %3283 = vst.msk [vmem:[%s3282] sm:$0xff] %vm2032, %v3277
          %3284 = vst.msk [vmem:[%s3282 + $0x8] sm:$0xff] %vm2032, %v3280
          %v3285 = vld [vmem:[#allocation3 + $0x6] sm:$0x1]
          %v3286 = vld [vmem:[#allocation3 + $0x16] sm:$0x1]
          %v3287 = vld [vmem:[#allocation3 + $0x26] sm:$0x1]
          %v3288 = vld [vmem:[#allocation3 + $0x36] sm:$0x1]
          %v3289 = vld [vmem:[#allocation3 + $0x46] sm:$0x1]
          %v3290 = vld [vmem:[#allocation3 + $0x56] sm:$0x1]
          %v3291 = vld [vmem:[#allocation3 + $0x66] sm:$0x1]
          %v3292 = vld [vmem:[#allocation3 + $0x76] sm:$0x1]
          %v3293 = vld [vmem:[#allocation3 + $0x86] sm:$0x1]
          %v3294 = vld [vmem:[#allocation3 + $0x96] sm:$0x1]
          %v3295 = vld [vmem:[#allocation3 + $0xa6] sm:$0x1]
          %v3296 = vld [vmem:[#allocation3 + $0xb6] sm:$0x1]
          %v3297 = vld [vmem:[#allocation3 + $0xc6] sm:$0x1]
          %v3298 = vld [vmem:[#allocation3 + $0xd6] sm:$0x1]
          %v3299 = vld [vmem:[#allocation3 + $0xe6] sm:$0x1]
          %v3300 = vld [vmem:[#allocation3 + $0xf6] sm:$0x1]
          %v3301 = vld [vmem:[#allocation3 + $0x106] sm:$0x1]
          %v3302 = vld [vmem:[#allocation3 + $0x116] sm:$0x1]
          %v3303 = vld [vmem:[#allocation3 + $0x126] sm:$0x1]
          %v3304 = vld [vmem:[#allocation3 + $0x136] sm:$0x1]
          %v3305 = vld [vmem:[#allocation3 + $0x146] sm:$0x1]
          %v3306 = vld [vmem:[#allocation3 + $0x156] sm:$0x1]
          %v3307 = vld [vmem:[#allocation3 + $0x166] sm:$0x1]
          %v3308 = vld [vmem:[#allocation3 + $0x176] sm:$0x1]
          %v3309 = vld [vmem:[#allocation3 + $0xe] sm:$0x1]
          %v3310 = vld [vmem:[#allocation3 + $0x1e] sm:$0x1]
          %v3311 = vld [vmem:[#allocation3 + $0x2e] sm:$0x1]
          %v3312 = vld [vmem:[#allocation3 + $0x3e] sm:$0x1]
          %v3313 = vld [vmem:[#allocation3 + $0x4e] sm:$0x1]
          %v3314 = vld [vmem:[#allocation3 + $0x5e] sm:$0x1]
          %v3315 = vld [vmem:[#allocation3 + $0x6e] sm:$0x1]
          %v3316 = vld [vmem:[#allocation3 + $0x7e] sm:$0x1]
          %v3317 = vld [vmem:[#allocation3 + $0x8e] sm:$0x1]
          %v3318 = vld [vmem:[#allocation3 + $0x9e] sm:$0x1]
          %v3319 = vld [vmem:[#allocation3 + $0xae] sm:$0x1]
          %v3320 = vld [vmem:[#allocation3 + $0xbe] sm:$0x1]
          %v3321 = vld [vmem:[#allocation3 + $0xce] sm:$0x1]
          %v3322 = vld [vmem:[#allocation3 + $0xde] sm:$0x1]
          %v3323 = vld [vmem:[#allocation3 + $0xee] sm:$0x1]
          %v3324 = vld [vmem:[#allocation3 + $0xfe] sm:$0x1]
          %v3325 = vld [vmem:[#allocation3 + $0x10e] sm:$0x1]
          %v3326 = vld [vmem:[#allocation3 + $0x11e] sm:$0x1]
          %v3327 = vld [vmem:[#allocation3 + $0x12e] sm:$0x1]
          %v3328 = vld [vmem:[#allocation3 + $0x13e] sm:$0x1]
          %v3329 = vld [vmem:[#allocation3 + $0x14e] sm:$0x1]
          %v3330 = vld [vmem:[#allocation3 + $0x15e] sm:$0x1]
          %v3331 = vld [vmem:[#allocation3 + $0x16e] sm:$0x1]
          %v3332 = vld [vmem:[#allocation3 + $0x17e] sm:$0x1]
          %v3357 = vrot.slane %v3286, 7
          %v3358 = vsel %vm1850, %v3357, %v3285
          %v3359 = vrot.slane %v3287, 6
          %v3360 = vsel %vm1853, %v3359, %v3358
          %v3361 = vrot.slane %v3288, 5
          %v3362 = vsel %vm1856, %v3361, %v3360
          %v3363 = vrot.slane %v3289, 4
          %v3364 = vsel %vm1859, %v3363, %v3362
          %v3365 = vrot.slane %v3290, 3
          %v3366 = vsel %vm1862, %v3365, %v3364
          %v3367 = vrot.slane %v3291, 2
          %v3368 = vsel %vm1865, %v3367, %v3366
          %v3369 = vrot.slane %v3292, 1
          %v3370 = vsel %vm1868, %v3369, %v3368
          %v3371 = vrot.slane %v3294, 7
          %v3372 = vsel %vm1850, %v3371, %v3293
          %v3373 = vrot.slane %v3295, 6
          %v3374 = vsel %vm1853, %v3373, %v3372
          %v3375 = vrot.slane %v3296, 5
          %v3376 = vsel %vm1856, %v3375, %v3374
          %v3377 = vrot.slane %v3297, 4
          %v3378 = vsel %vm1859, %v3377, %v3376
          %v3379 = vrot.slane %v3298, 3
          %v3380 = vsel %vm1862, %v3379, %v3378
          %v3381 = vrot.slane %v3299, 2
          %v3382 = vsel %vm1865, %v3381, %v3380
          %v3383 = vrot.slane %v3300, 1
          %v3384 = vsel %vm1868, %v3383, %v3382
          %v3385 = vrot.slane %v3302, 7
          %v3386 = vsel %vm1850, %v3385, %v3301
          %v3387 = vrot.slane %v3303, 6
          %v3388 = vsel %vm1853, %v3387, %v3386
          %v3389 = vrot.slane %v3304, 5
          %v3390 = vsel %vm1856, %v3389, %v3388
          %v3391 = vrot.slane %v3305, 4
          %v3392 = vsel %vm1859, %v3391, %v3390
          %v3393 = vrot.slane %v3306, 3
          %v3394 = vsel %vm1862, %v3393, %v3392
          %v3395 = vrot.slane %v3307, 2
          %v3396 = vsel %vm1865, %v3395, %v3394
          %v3397 = vrot.slane %v3308, 1
          %v3398 = vsel %vm1868, %v3397, %v3396
          %v3426 = vrot.slane %v3310, 7
          %v3427 = vsel %vm1850, %v3426, %v3309
          %v3428 = vrot.slane %v3311, 6
          %v3429 = vsel %vm1853, %v3428, %v3427
          %v3430 = vrot.slane %v3312, 5
          %v3431 = vsel %vm1856, %v3430, %v3429
          %v3432 = vrot.slane %v3313, 4
          %v3433 = vsel %vm1859, %v3432, %v3431
          %v3434 = vrot.slane %v3314, 3
          %v3435 = vsel %vm1862, %v3434, %v3433
          %v3436 = vrot.slane %v3315, 2
          %v3437 = vsel %vm1865, %v3436, %v3435
          %v3438 = vrot.slane %v3316, 1
          %v3439 = vsel %vm1868, %v3438, %v3437
          %v3440 = vrot.slane %v3318, 7
          %v3441 = vsel %vm1850, %v3440, %v3317
          %v3442 = vrot.slane %v3319, 6
          %v3443 = vsel %vm1853, %v3442, %v3441
          %v3444 = vrot.slane %v3320, 5
          %v3445 = vsel %vm1856, %v3444, %v3443
          %v3446 = vrot.slane %v3321, 4
          %v3447 = vsel %vm1859, %v3446, %v3445
          %v3448 = vrot.slane %v3322, 3
          %v3449 = vsel %vm1862, %v3448, %v3447
          %v3450 = vrot.slane %v3323, 2
          %v3451 = vsel %vm1865, %v3450, %v3449
          %v3452 = vrot.slane %v3324, 1
          %v3453 = vsel %vm1868, %v3452, %v3451
          %v3454 = vrot.slane %v3326, 7
          %v3455 = vsel %vm1850, %v3454, %v3325
          %v3456 = vrot.slane %v3327, 6
          %v3457 = vsel %vm1853, %v3456, %v3455
          %v3458 = vrot.slane %v3328, 5
          %v3459 = vsel %vm1856, %v3458, %v3457
          %v3460 = vrot.slane %v3329, 4
          %v3461 = vsel %vm1859, %v3460, %v3459
          %v3462 = vrot.slane %v3330, 3
          %v3463 = vsel %vm1862, %v3462, %v3461
          %v3464 = vrot.slane %v3331, 2
          %v3465 = vsel %vm1865, %v3464, %v3463
          %v3466 = vrot.slane %v3332, 1
          %v3467 = vsel %vm1868, %v3466, %v3465
          %3471 = vxpose.xlu0.b32.start [1/16] %v3370, 128
          %3472 = vxpose.xlu0.b32.cont [2/16] %v3384, 128
          %3473 = vxpose.xlu0.b32.cont [3/16] %v3398, 128
          %3474 = vxpose.xlu0.b32.cont [4/16] %v3439, 128
          %3475 = vxpose.xlu0.b32.cont [5/16] %v3453, 128
          %3476 = vxpose.xlu0.b32.cont [6/16] %v3467, 128
          %3477 = vxpose.xlu0.b32.cont [7/16] 0.0, 128
          %3478 = vxpose.xlu0.b32.cont [8/16] 0.0, 128
          %3479 = vxpose.xlu0.b32.cont [9/16] 0.0, 128
          %3480 = vxpose.xlu0.b32.cont [10/16] 0.0, 128
          %3481 = vxpose.xlu0.b32.cont [11/16] 0.0, 128
          %3482 = vxpose.xlu0.b32.cont [12/16] 0.0, 128
          %3483 = vxpose.xlu0.b32.cont [13/16] 0.0, 128
          %3484 = vxpose.xlu0.b32.cont [14/16] 0.0, 128
          %3485 = vxpose.xlu0.b32.cont [15/16] 0.0, 128
          %3486 = vxpose.xlu0.b32.end [16/16] 0.0, 128
          %v3487 = vpop.trf.xlu0
          %v3488 = vpop.trf.xlu0
          %v3489 = vpop.trf.xlu0
          %v3490 = vpop.trf.xlu0
          %v3491 = vpop.trf.xlu0
          %v3492 = vpop.trf.xlu0
          %v3493 = vpop.trf.xlu0
          %v3494 = vpop.trf.xlu0
          %v3495 = vpop.trf.xlu0
          %v3496 = vpop.trf.xlu0
          %v3497 = vpop.trf.xlu0
          %v3498 = vpop.trf.xlu0
          %v3499 = vpop.trf.xlu0
          %v3500 = vpop.trf.xlu0
          %v3501 = vpop.trf.xlu0
          %v3502 = vpop.trf.xlu0
          %v3504 = vsel %vm2002, %v3487, 0
          %v3507 = vsel %vm2002, %v3488, 0
          %3509 = vmatpush.msra.mxu0 0.0
          %3510 = vmatpush.msra.mxu0 0.0
          %3511 = vmatpush.msra.mxu0 0.0
          %3512 = vmatpush.msra.mxu0 0.0
          %3513 = vmatpush.msra.mxu0 0.0
          %3514 = vmatpush.msra.mxu0 0.0
          %3515 = vmatpush.msra.mxu0 0.0
          %3516 = vmatpush.msra.mxu0 0.0
          %3517 = vmatpush.msra.mxu0 0.0
          %3518 = vmatpush.msra.mxu0 0.0
          %3519 = vmatpush.msra.mxu0 %v1776
          %3520 = vmatpush.msra.mxu0 %v1775
          %3521 = vmatpush.msra.mxu0 %v1774
          %3522 = vmatpush.msra.mxu0 %v1773
          %3523 = vmatpush.msra.mxu0 %v1772
          %3524 = vmatpush.msra.mxu0 %v1771
          %3525 = vmatmul.f32.gmra.mxu0 %v3504
          %v3526 = vpop.f32.mrf.mxu0
          %v3527 = vadd.f32 0.0, %v3526
          %3528 = vmatmul.f32.gmra.mxu0 %v3507
          %v3529 = vpop.f32.mrf.mxu0
          %v3530 = vadd.f32 0.0, %v3529
          %3531 = vdwg.mxu0
          %s3532 = scalar_lea.vmem [#allocation4], 96
          %3533 = vst.msk [vmem:[%s3532] sm:$0xff] %vm2032, %v3527
          %3534 = vst.msk [vmem:[%s3532 + $0x8] sm:$0xff] %vm2032, %v3530
          %v3535 = vld [vmem:[#allocation3 + $0x7] sm:$0x1]
          %v3536 = vld [vmem:[#allocation3 + $0x17] sm:$0x1]
          %v3537 = vld [vmem:[#allocation3 + $0x27] sm:$0x1]
          %v3538 = vld [vmem:[#allocation3 + $0x37] sm:$0x1]
          %v3539 = vld [vmem:[#allocation3 + $0x47] sm:$0x1]
          %v3540 = vld [vmem:[#allocation3 + $0x57] sm:$0x1]
          %v3541 = vld [vmem:[#allocation3 + $0x67] sm:$0x1]
          %v3542 = vld [vmem:[#allocation3 + $0x77] sm:$0x1]
          %v3543 = vld [vmem:[#allocation3 + $0x87] sm:$0x1]
          %v3544 = vld [vmem:[#allocation3 + $0x97] sm:$0x1]
          %v3545 = vld [vmem:[#allocation3 + $0xa7] sm:$0x1]
          %v3546 = vld [vmem:[#allocation3 + $0xb7] sm:$0x1]
          %v3547 = vld [vmem:[#allocation3 + $0xc7] sm:$0x1]
          %v3548 = vld [vmem:[#allocation3 + $0xd7] sm:$0x1]
          %v3549 = vld [vmem:[#allocation3 + $0xe7] sm:$0x1]
          %v3550 = vld [vmem:[#allocation3 + $0xf7] sm:$0x1]
          %v3551 = vld [vmem:[#allocation3 + $0x107] sm:$0x1]
          %v3552 = vld [vmem:[#allocation3 + $0x117] sm:$0x1]
          %v3553 = vld [vmem:[#allocation3 + $0x127] sm:$0x1]
          %v3554 = vld [vmem:[#allocation3 + $0x137] sm:$0x1]
          %v3555 = vld [vmem:[#allocation3 + $0x147] sm:$0x1]
          %v3556 = vld [vmem:[#allocation3 + $0x157] sm:$0x1]
          %v3557 = vld [vmem:[#allocation3 + $0x167] sm:$0x1]
          %v3558 = vld [vmem:[#allocation3 + $0x177] sm:$0x1]
          %v3559 = vld [vmem:[#allocation3 + $0xf] sm:$0x1]
          %v3560 = vld [vmem:[#allocation3 + $0x1f] sm:$0x1]
          %v3561 = vld [vmem:[#allocation3 + $0x2f] sm:$0x1]
          %v3562 = vld [vmem:[#allocation3 + $0x3f] sm:$0x1]
          %v3563 = vld [vmem:[#allocation3 + $0x4f] sm:$0x1]
          %v3564 = vld [vmem:[#allocation3 + $0x5f] sm:$0x1]
          %v3565 = vld [vmem:[#allocation3 + $0x6f] sm:$0x1]
          %v3566 = vld [vmem:[#allocation3 + $0x7f] sm:$0x1]
          %v3567 = vld [vmem:[#allocation3 + $0x8f] sm:$0x1]
          %v3568 = vld [vmem:[#allocation3 + $0x9f] sm:$0x1]
          %v3569 = vld [vmem:[#allocation3 + $0xaf] sm:$0x1]
          %v3570 = vld [vmem:[#allocation3 + $0xbf] sm:$0x1]
          %v3571 = vld [vmem:[#allocation3 + $0xcf] sm:$0x1]
          %v3572 = vld [vmem:[#allocation3 + $0xdf] sm:$0x1]
          %v3573 = vld [vmem:[#allocation3 + $0xef] sm:$0x1]
          %v3574 = vld [vmem:[#allocation3 + $0xff] sm:$0x1]
          %v3575 = vld [vmem:[#allocation3 + $0x10f] sm:$0x1]
          %v3576 = vld [vmem:[#allocation3 + $0x11f] sm:$0x1]
          %v3577 = vld [vmem:[#allocation3 + $0x12f] sm:$0x1]
          %v3578 = vld [vmem:[#allocation3 + $0x13f] sm:$0x1]
          %v3579 = vld [vmem:[#allocation3 + $0x14f] sm:$0x1]
          %v3580 = vld [vmem:[#allocation3 + $0x15f] sm:$0x1]
          %v3581 = vld [vmem:[#allocation3 + $0x16f] sm:$0x1]
          %v3582 = vld [vmem:[#allocation3 + $0x17f] sm:$0x1]
          %v3607 = vrot.slane %v3536, 7
          %v3608 = vsel %vm1850, %v3607, %v3535
          %v3609 = vrot.slane %v3537, 6
          %v3610 = vsel %vm1853, %v3609, %v3608
          %v3611 = vrot.slane %v3538, 5
          %v3612 = vsel %vm1856, %v3611, %v3610
          %v3613 = vrot.slane %v3539, 4
          %v3614 = vsel %vm1859, %v3613, %v3612
          %v3615 = vrot.slane %v3540, 3
          %v3616 = vsel %vm1862, %v3615, %v3614
          %v3617 = vrot.slane %v3541, 2
          %v3618 = vsel %vm1865, %v3617, %v3616
          %v3619 = vrot.slane %v3542, 1
          %v3620 = vsel %vm1868, %v3619, %v3618
          %v3621 = vrot.slane %v3544, 7
          %v3622 = vsel %vm1850, %v3621, %v3543
          %v3623 = vrot.slane %v3545, 6
          %v3624 = vsel %vm1853, %v3623, %v3622
          %v3625 = vrot.slane %v3546, 5
          %v3626 = vsel %vm1856, %v3625, %v3624
          %v3627 = vrot.slane %v3547, 4
          %v3628 = vsel %vm1859, %v3627, %v3626
          %v3629 = vrot.slane %v3548, 3
          %v3630 = vsel %vm1862, %v3629, %v3628
          %v3631 = vrot.slane %v3549, 2
          %v3632 = vsel %vm1865, %v3631, %v3630
          %v3633 = vrot.slane %v3550, 1
          %v3634 = vsel %vm1868, %v3633, %v3632
          %v3635 = vrot.slane %v3552, 7
          %v3636 = vsel %vm1850, %v3635, %v3551
          %v3637 = vrot.slane %v3553, 6
          %v3638 = vsel %vm1853, %v3637, %v3636
          %v3639 = vrot.slane %v3554, 5
          %v3640 = vsel %vm1856, %v3639, %v3638
          %v3641 = vrot.slane %v3555, 4
          %v3642 = vsel %vm1859, %v3641, %v3640
          %v3643 = vrot.slane %v3556, 3
          %v3644 = vsel %vm1862, %v3643, %v3642
          %v3645 = vrot.slane %v3557, 2
          %v3646 = vsel %vm1865, %v3645, %v3644
          %v3647 = vrot.slane %v3558, 1
          %v3648 = vsel %vm1868, %v3647, %v3646
          %v3676 = vrot.slane %v3560, 7
          %v3677 = vsel %vm1850, %v3676, %v3559
          %v3678 = vrot.slane %v3561, 6
          %v3679 = vsel %vm1853, %v3678, %v3677
          %v3680 = vrot.slane %v3562, 5
          %v3681 = vsel %vm1856, %v3680, %v3679
          %v3682 = vrot.slane %v3563, 4
          %v3683 = vsel %vm1859, %v3682, %v3681
          %v3684 = vrot.slane %v3564, 3
          %v3685 = vsel %vm1862, %v3684, %v3683
          %v3686 = vrot.slane %v3565, 2
          %v3687 = vsel %vm1865, %v3686, %v3685
          %v3688 = vrot.slane %v3566, 1
          %v3689 = vsel %vm1868, %v3688, %v3687
          %v3690 = vrot.slane %v3568, 7
          %v3691 = vsel %vm1850, %v3690, %v3567
          %v3692 = vrot.slane %v3569, 6
          %v3693 = vsel %vm1853, %v3692, %v3691
          %v3694 = vrot.slane %v3570, 5
          %v3695 = vsel %vm1856, %v3694, %v3693
          %v3696 = vrot.slane %v3571, 4
          %v3697 = vsel %vm1859, %v3696, %v3695
          %v3698 = vrot.slane %v3572, 3
          %v3699 = vsel %vm1862, %v3698, %v3697
          %v3700 = vrot.slane %v3573, 2
          %v3701 = vsel %vm1865, %v3700, %v3699
          %v3702 = vrot.slane %v3574, 1
          %v3703 = vsel %vm1868, %v3702, %v3701
          %v3704 = vrot.slane %v3576, 7
          %v3705 = vsel %vm1850, %v3704, %v3575
          %v3706 = vrot.slane %v3577, 6
          %v3707 = vsel %vm1853, %v3706, %v3705
          %v3708 = vrot.slane %v3578, 5
          %v3709 = vsel %vm1856, %v3708, %v3707
          %v3710 = vrot.slane %v3579, 4
          %v3711 = vsel %vm1859, %v3710, %v3709
          %v3712 = vrot.slane %v3580, 3
          %v3713 = vsel %vm1862, %v3712, %v3711
          %v3714 = vrot.slane %v3581, 2
          %v3715 = vsel %vm1865, %v3714, %v3713
          %v3716 = vrot.slane %v3582, 1
          %v3717 = vsel %vm1868, %v3716, %v3715
          %3721 = vxpose.xlu0.b32.start [1/16] %v3620, 128
          %3722 = vxpose.xlu0.b32.cont [2/16] %v3634, 128
          %3723 = vxpose.xlu0.b32.cont [3/16] %v3648, 128
          %3724 = vxpose.xlu0.b32.cont [4/16] %v3689, 128
          %3725 = vxpose.xlu0.b32.cont [5/16] %v3703, 128
          %3726 = vxpose.xlu0.b32.cont [6/16] %v3717, 128
          %3727 = vxpose.xlu0.b32.cont [7/16] 0.0, 128
          %3728 = vxpose.xlu0.b32.cont [8/16] 0.0, 128
          %3729 = vxpose.xlu0.b32.cont [9/16] 0.0, 128
          %3730 = vxpose.xlu0.b32.cont [10/16] 0.0, 128
          %3731 = vxpose.xlu0.b32.cont [11/16] 0.0, 128
          %3732 = vxpose.xlu0.b32.cont [12/16] 0.0, 128
          %3733 = vxpose.xlu0.b32.cont [13/16] 0.0, 128
          %3734 = vxpose.xlu0.b32.cont [14/16] 0.0, 128
          %3735 = vxpose.xlu0.b32.cont [15/16] 0.0, 128
          %3736 = vxpose.xlu0.b32.end [16/16] 0.0, 128
          %v3737 = vpop.trf.xlu0
          %v3738 = vpop.trf.xlu0
          %v3739 = vpop.trf.xlu0
          %v3740 = vpop.trf.xlu0
          %v3741 = vpop.trf.xlu0
          %v3742 = vpop.trf.xlu0
          %v3743 = vpop.trf.xlu0
          %v3744 = vpop.trf.xlu0
          %v3745 = vpop.trf.xlu0
          %v3746 = vpop.trf.xlu0
          %v3747 = vpop.trf.xlu0
          %v3748 = vpop.trf.xlu0
          %v3749 = vpop.trf.xlu0
          %v3750 = vpop.trf.xlu0
          %v3751 = vpop.trf.xlu0
          %v3752 = vpop.trf.xlu0
          %v3754 = vsel %vm2002, %v3737, 0
          %v3757 = vsel %vm2002, %v3738, 0
          %3759 = vmatpush.msra.mxu0 0.0
          %3760 = vmatpush.msra.mxu0 0.0
          %3761 = vmatpush.msra.mxu0 0.0
          %3762 = vmatpush.msra.mxu0 0.0
          %3763 = vmatpush.msra.mxu0 0.0
          %3764 = vmatpush.msra.mxu0 0.0
          %3765 = vmatpush.msra.mxu0 0.0
          %3766 = vmatpush.msra.mxu0 0.0
          %3767 = vmatpush.msra.mxu0 0.0
          %3768 = vmatpush.msra.mxu0 0.0
          %3769 = vmatpush.msra.mxu0 %v1776
          %3770 = vmatpush.msra.mxu0 %v1775
          %3771 = vmatpush.msra.mxu0 %v1774
          %3772 = vmatpush.msra.mxu0 %v1773
          %3773 = vmatpush.msra.mxu0 %v1772
          %3774 = vmatpush.msra.mxu0 %v1771
          %3775 = vmatmul.f32.gmra.mxu0 %v3754
          %v3776 = vpop.f32.mrf.mxu0
          %v3777 = vadd.f32 0.0, %v3776
          %3778 = vmatmul.f32.gmra.mxu0 %v3757
          %v3779 = vpop.f32.mrf.mxu0
          %v3780 = vadd.f32 0.0, %v3779
          %3781 = vdwg.mxu0
          %s3782 = scalar_lea.vmem [#allocation4], 112
          %3783 = vst.msk [vmem:[%s3782] sm:$0xff] %vm2032, %v3777
          %3784 = vst.msk [vmem:[%s3782 + $0x8] sm:$0xff] %vm2032, %v3780
        $region44: #{tpu_custom_call.1} parent=35 // pred_fallthru
          _
        // Predicated region
        $region45: #{tpu_custom_call.1} parent=35 // pred_check
          %p3785 = pneg %p140
        $region46: #{tpu_custom_call.1} parent=35 // pred_check_branch
          %3787 = sbr.rel (%p3785) target = $region48
        $region47: #{tpu_custom_call.1} parent=35 // pred_region
          %s3788 = smul.u32 8, %s20
          %3790 = vsyncadd [#allocation5], 0
          %s3791 = smul.addr %s3788, 2
          %s3792 = smul.addr %s3791, 8
          %s3793 = scalar_lea.hbm %s4, %s3792
          %s3794 = sshll.u32 [#allocation4], 4
          %s3795 = int_to_ptr.vmem [resolvable:$true] %s3794
          %s3796 = sshll.u32 %s3793, 4
          %s3797 = int_to_ptr.hbm [resolvable:$true] %s3796
          %3802 = dma.vmem_to_hbm [thread:$0]  %s3795, 2048, %s3797, [#allocation5], 128, 128, 8
        $region48: #{tpu_custom_call.1} parent=35 // pred_fallthru
          _
        // Predicated region
        $region49: #{tpu_custom_call.1} parent=35 // pred_check
          %p3803 = pneg %p140
        $region50: #{tpu_custom_call.1} parent=35 // pred_check_branch
          %3805 = sbr.rel (%p3803) target = $region52
        $region51: #{tpu_custom_call.1} parent=35 // pred_region
          %3807 = dma.done [#allocation5], 2048
        $region52: #{tpu_custom_call.1} parent=35 // pred_fallthru
          _
      $region36: #{tpu_custom_call.1} parent=5 // pred_fallthru
        _
      %p3808 = scmp.le.s32.totalorder 2, %s11
      // Predicated region
      $region53: #{tpu_custom_call.1} parent=5 // pred_check
        %p3809 = pneg %p3808
      $region54: #{tpu_custom_call.1} parent=5 // pred_check_branch
        %3811 = sbr.rel (%p3809) target = $region56
      $region55: #{tpu_custom_call.1} parent=5 // pred_region
        %s3812 = ssub.s32 %s11, 2
      $region56: #{tpu_custom_call.1} parent=5 // pred_fallthru
        _
    $region6: #{tpu_custom_call.1} parent=1 // loop_footer
      %s15 = sadd.s32 1, %s11
    $region7: #{tpu_custom_call.1} parent=1 // loop_footer_branch
      %10 = sbr.rel target = $region3
    $region8: #{tpu_custom_call.1} parent=1 // loop_exit
      _
    %3813 = vsyncpa [#allocation5], 1
    %s3814 = scalar_lea.sflag [#allocation5], 1
    %3815 = vsyncpa %s3814, 1

</llo_original>
